<compile_context>
chip_gen: v5e
topology: v5e:2x2
jax: 0.10.0
libtpu: 0.0.40
codegen_flags: <defaults>
</compile_context>

<pallas_src>
import functools

import jax
import jax.numpy as jnp
from jax.experimental import pallas as pl
from jax.experimental.pallas import tpu as pltpu

IGNORE_LABEL = -100.0   # xview3 IGNORE_LABEL
FRACTION = 8            # num elements to trim (top-k of neg objectness loss) per sample


# ---------------------------------------------------------------------------
# Pallas kernel
# ---------------------------------------------------------------------------
def _loss_kernel(po_ref, go_ref, pv_ref, gv_ref, pf_ref, gf_ref,
                 ps_ref, gs_ref, pox_ref, poy_ref, gox_ref, goy_ref,
                 out_ref,
                 acc_ref, topv_ref, cneg_ref, cvsl_ref, cfsh_ref, csiz_ref, coff_ref,
                 *, fraction: int):
    f32 = jnp.float32
    i = pl.program_id(0)
    n_tiles = pl.num_programs(0)

    # ---- init accumulators on the first tile --------------------------------
    @pl.when(i == 0)
    def _init():
        for j in range(9):
            acc_ref[j] = 0.0
        topv_ref[...] = jnp.full(topv_ref.shape, -jnp.inf, f32)
        zeros = jnp.zeros(cneg_ref.shape, f32)
        cneg_ref[...] = zeros
        cvsl_ref[...] = zeros
        cfsh_ref[...] = zeros
        csiz_ref[...] = zeros
        coff_ref[...] = zeros

    # ---- load current tile (cast to f32 inside the kernel) ------------------
    po = po_ref[...].astype(f32); go = go_ref[...].astype(f32)
    pv = pv_ref[...].astype(f32); gv = gv_ref[...].astype(f32)
    pf = pf_ref[...].astype(f32); gf = gf_ref[...].astype(f32)
    ps = ps_ref[...].astype(f32); gs = gs_ref[...].astype(f32)
    pox = pox_ref[...].astype(f32); poy = poy_ref[...].astype(f32)
    gox = gox_ref[...].astype(f32); goy = goy_ref[...].astype(f32)

    B, T = po.shape

    # ---- element-wise losses (transcendental reuse) --------------------------
    L_o = jax.nn.log_sigmoid(po)
    p_o = jnp.exp(L_o)                       # sigmoid(po)
    peaks = go == 1.0
    pos_m = peaks.astype(f32)
    neg_m = 1.0 - pos_m
    certain = (go != IGNORE_LABEL).astype(f32)

    one_m_po = 1.0 - p_o
    pos_obj = -(one_m_po * one_m_po) * L_o * pos_m          # peaks can't be ignored
    gterm = 1.0 - go
    gterm2 = gterm * gterm
    # log_sigmoid(-po) == L_o - po ; zero uncertain positions via `certain`
    neg_obj = -(gterm2 * gterm2) * (p_o * p_o) * (L_o - po) * (neg_m * certain)
    ent_o = one_m_po * po - L_o                              # binary shannon entropy

    go_cert = go * certain
    L_v = jax.nn.log_sigmoid(pv)
    vsl = ((1.0 - gv) * pv - L_v) * (gv != IGNORE_LABEL).astype(f32) * go_cert
    ent_v = (1.0 - jnp.exp(L_v)) * pv - L_v

    L_f = jax.nn.log_sigmoid(pf)
    fsh = ((1.0 - gf) * pf - L_f) * (gf != IGNORE_LABEL).astype(f32) * go_cert
    ent_f = (1.0 - jnp.exp(L_f)) * pf - L_f

    valid_size = pos_m * (gs > 0.0).astype(f32)
    dsz = ps - gs
    siz = dsz * dsz * valid_size

    dx = pox - gox
    dy = poy - goy
    off = (dx * dx + dy * dy) * pos_m

    # ---- accumulate untrimmed sums / counts ----------------------------------
    acc_ref[0] += jnp.sum(pos_obj)
    acc_ref[1] += jnp.sum(neg_obj)
    acc_ref[2] += jnp.sum(vsl)
    acc_ref[3] += jnp.sum(fsh)
    acc_ref[4] += jnp.sum(siz)
    acc_ref[5] += jnp.sum(off)
    acc_ref[6] += jnp.sum(pos_m)                                            # num_objects
    acc_ref[7] += jnp.sum(jnp.logical_and(gv == 1.0, peaks).astype(f32))    # num_vessels
    acc_ref[8] += jnp.sum(valid_size)                                       # num with length

    # ---- streaming per-sample top-FRACTION of neg_obj with trim corrections --
    # Correction applied later:  sum_trimmed = sum_untrimmed - sum_selected(correction)
    c_neg = neg_obj - ent_o          # neg loss removed, entropy of pred_obj added
    c_vsl = vsl - ent_v              # vessel loss removed, entropy of pred_vessel added
    c_fsh = fsh - ent_f              # fishing loss removed, entropy of pred_fishing added
    # size / offset are simply zeroed at trimmed positions -> corrections are siz / off.

    run_vals0 = topv_ref[...]
    run_min0 = jnp.min(run_vals0, axis=-1, keepdims=True)
    tile_max0 = jnp.max(neg_obj, axis=-1, keepdims=True)
    any_take = jnp.max((tile_max0 > run_min0).astype(f32)) > 0.0

    @pl.when(any_take)
    def _select():
        lidx = jax.lax.broadcasted_iota(jnp.int32, (B, T), 1)
        sidx = jax.lax.broadcasted_iota(jnp.int32, topv_ref.shape, 1)
        masked = neg_obj
        for _ in range(fraction):
            run_vals = topv_ref[...]
            run_min = jnp.min(run_vals, axis=-1, keepdims=True)
            tile_max = jnp.max(masked, axis=-1, keepdims=True)
            take = tile_max > run_min                           # (B, 1)
            # strict one-hot of the tile arg-max (lowest index wins)
            cand = jnp.where(masked == tile_max, lidx, T)
            sel = jnp.min(cand, axis=-1, keepdims=True)
            onehot = lidx == sel
            onehot_f = onehot.astype(f32)
            e_neg = jnp.sum(c_neg * onehot_f, axis=-1, keepdims=True)
            e_vsl = jnp.sum(c_vsl * onehot_f, axis=-1, keepdims=True)
            e_fsh = jnp.sum(c_fsh * onehot_f, axis=-1, keepdims=True)
            e_siz = jnp.sum(siz * onehot_f, axis=-1, keepdims=True)
            e_off = jnp.sum(off * onehot_f, axis=-1, keepdims=True)
            # strict one-hot of the running-minimum slot (the slot being evicted)
            slot_cand = jnp.where(run_vals == run_min, sidx, fraction)
            slot_sel = jnp.min(slot_cand, axis=-1, keepdims=True)
            slot_onehot = jnp.logical_and(sidx == slot_sel, take)
            topv_ref[...] = jnp.where(slot_onehot, tile_max, run_vals)
            cneg_ref[...] = jnp.where(slot_onehot, e_neg, cneg_ref[...])
            cvsl_ref[...] = jnp.where(slot_onehot, e_vsl, cvsl_ref[...])
            cfsh_ref[...] = jnp.where(slot_onehot, e_fsh, cfsh_ref[...])
            csiz_ref[...] = jnp.where(slot_onehot, e_siz, csiz_ref[...])
            coff_ref[...] = jnp.where(slot_onehot, e_off, coff_ref[...])
            # remove the selected element from this tile before the next iteration
            masked = jnp.where(onehot, -jnp.inf, masked)

    # ---- finalize on the last tile --------------------------------------------
    @pl.when(i == n_tiles - 1)
    def _finalize():
        num_objects = jnp.maximum(acc_ref[6], 1.0)
        num_vessels = jnp.maximum(acc_ref[7], 1.0)
        num_len = jnp.maximum(acc_ref[8], 1.0)
        neg_total = acc_ref[1] - jnp.sum(cneg_ref[...])
        vsl_total = acc_ref[2] - jnp.sum(cvsl_ref[...])
        fsh_total = acc_ref[3] - jnp.sum(cfsh_ref[...])
        siz_total = acc_ref[4] - jnp.sum(csiz_ref[...])
        off_total = acc_ref[5] - jnp.sum(coff_ref[...])
        out_ref[0] = (neg_total + acc_ref[0]) / num_objects
        out_ref[1] = vsl_total / num_objects
        out_ref[2] = fsh_total / num_vessels
        out_ref[3] = siz_total / num_len
        out_ref[4] = off_total / num_objects
        out_ref[5] = 0.0
        out_ref[6] = 0.0
        out_ref[7] = 0.0


# ---------------------------------------------------------------------------
# wrapper
# ---------------------------------------------------------------------------
def _choose_tile_hw(hw: int, batch: int, max_block_elems: int) -> int:
    max_t = max(128, (max_block_elems // max(batch, 1)) // 128 * 128)
    if hw <= max_t:
        return hw
    t = max_t
    while t >= 128:
        if hw % t == 0:
            return t
        t -= 128
    return hw  # no 128-aligned divisor: fall back to a single full-row block


def multilabel_center_trimmed_loss(pred_objectness, gt_objectness,
                                   pred_is_vessel, gt_is_vessel,
                                   pred_is_fishing, gt_is_fishing,
                                   pred_size, gt_size,
                                   pred_offset, gt_offset,
                                   *, fraction: int = FRACTION,
                                   max_block_elems: int = 32 * 1024):
    B = pred_objectness.shape[0]
    hw = pred_objectness.shape[-2] * pred_objectness.shape[-1]

    def flat(x):
        return x.reshape(B, hw)

    poff = pred_offset.reshape(B, 2, hw)
    goff = gt_offset.reshape(B, 2, hw)
    args = (flat(pred_objectness), flat(gt_objectness),
            flat(pred_is_vessel), flat(gt_is_vessel),
            flat(pred_is_fishing), flat(gt_is_fishing),
            flat(pred_size), flat(gt_size),
            poff[:, 0], poff[:, 1], goff[:, 0], goff[:, 1])

    t_hw = _choose_tile_hw(hw, B, max_block_elems)
    num_tiles = hw // t_hw

    tile_spec = pl.BlockSpec((B, t_hw), lambda i: (0, i))
    block_bytes = B * t_hw * 4
    vmem_limit = int(min(max(40 * block_bytes, 16 * 2**20), 56 * 2**20))
    bytes_accessed = int(sum(a.size * a.dtype.itemsize for a in args))

    kernel = functools.partial(_loss_kernel, fraction=fraction)
    out = pl.pallas_call(
        kernel,
        grid=(num_tiles,),
        in_specs=[tile_spec] * len(args),
        out_specs=pl.BlockSpec(memory_space=pltpu.MemorySpace.SMEM),
        out_shape=jax.ShapeDtypeStruct((8,), jnp.float32),
        scratch_shapes=[
            pltpu.SMEM((9,), jnp.float32),              # running sums / counts
            pltpu.VMEM((B, fraction), jnp.float32),     # running top-k neg_obj values
            pltpu.VMEM((B, fraction), jnp.float32),     # neg-objectness corrections
            pltpu.VMEM((B, fraction), jnp.float32),     # vessel corrections
            pltpu.VMEM((B, fraction), jnp.float32),     # fishing corrections
            pltpu.VMEM((B, fraction), jnp.float32),     # size corrections
            pltpu.VMEM((B, fraction), jnp.float32),     # offset corrections
        ],
        compiler_params=pltpu.CompilerParams(
            dimension_semantics=("arbitrary",),
            vmem_limit_bytes=vmem_limit,
        ),
        cost_estimate=pl.CostEstimate(
            flops=160 * B * hw,
            transcendentals=9 * B * hw,
            bytes_accessed=bytes_accessed,
        ),
    )(*args)

    return {
        "objectness": out[0],
        "vessel": out[1],
        "fishing": out[2],
        "size": out[3],
        "offset": out[4],
    }


# ---------------------------------------------------------------------------
# pure-JAX reference (same semantics, uses lax.top_k) for a correctness check
# ---------------------------------------------------------------------------
def _entropy(logits):
    p = jax.nn.sigmoid(logits)
    return -(p * jax.nn.log_sigmoid(logits) + (1.0 - p) * jax.nn.log_sigmoid(-logits))


def _bce_with_logits(logits, target):
    return -(target * jax.nn.log_sigmoid(logits)
             + (1.0 - target) * jax.nn.log_sigmoid(-logits))


def reference_loss(pred_objectness, gt_objectness, pred_is_vessel, gt_is_vessel,
                   pred_is_fishing, gt_is_fishing, pred_size, gt_size,
                   pred_offset, gt_offset, fraction=FRACTION):
    B = pred_objectness.shape[0]
    hw = pred_objectness.shape[-2] * pred_objectness.shape[-1]
    f32 = jnp.float32
    flat = lambda x: x.reshape(B, hw).astype(f32)
    po, go = flat(pred_objectness), flat(gt_objectness)
    pv, gv = flat(pred_is_vessel), flat(gt_is_vessel)
    pf, gf = flat(pred_is_fishing), flat(gt_is_fishing)
    ps, gs = flat(pred_size), flat(gt_size)
    poff = pred_offset.reshape(B, 2, hw).astype(f32)
    goff = gt_offset.reshape(B, 2, hw).astype(f32)

    peaks = go == 1.0
    pos_m = peaks.astype(f32)
    neg_m = 1.0 - pos_m
    uncertain = go == IGNORE_LABEL
    certain = jnp.logical_not(uncertain).astype(f32)

    num_objects = jnp.maximum(jnp.sum(pos_m), 1.0)
    num_vessels = jnp.maximum(jnp.sum(jnp.logical_and(gv == 1.0, peaks).astype(f32)), 1.0)

    pt = jax.nn.sigmoid(po)
    pos_obj = -((1.0 - pt) ** 2) * jax.nn.log_sigmoid(po) * pos_m
    neg_obj = -((1.0 - go) ** 4) * (pt ** 2) * jax.nn.log_sigmoid(-po) * neg_m
    pos_obj = jnp.where(uncertain, 0.0, pos_obj)
    neg_obj = jnp.where(uncertain, 0.0, neg_obj)

    vsl = _bce_with_logits(pv, gv) * (gv != IGNORE_LABEL).astype(f32) * go * certain
    fsh = _bce_with_logits(pf, gf) * (gf != IGNORE_LABEL).astype(f32) * go * certain

    valid_size = pos_m * (gs > 0.0).astype(f32)
    num_len = jnp.maximum(jnp.sum(valid_size), 1.0)
    siz = (ps - gs) ** 2 * valid_size

    doff = poff - goff
    off = (doff[:, 0, :] ** 2 + doff[:, 1, :] ** 2) * pos_m

    _, idx = jax.lax.top_k(neg_obj, fraction)
    mask = jnp.ones_like(neg_obj)
    mask = mask.at[jnp.arange(B)[:, None], idx].set(0.0)
    inv = 1.0 - mask

    neg_obj = neg_obj * mask + _entropy(po) * inv
    vsl = vsl * mask + _entropy(pv) * inv
    fsh = fsh * mask + _entropy(pf) * inv
    off = off * mask
    siz = siz * mask

    return {
        "objectness": (jnp.sum(neg_obj) + jnp.sum(pos_obj)) / num_objects,
        "vessel": jnp.sum(vsl) / num_objects,
        "fishing": jnp.sum(fsh) / num_vessels,
        "size": jnp.sum(siz) / num_len,
        "offset": jnp.sum(off) / num_objects,
    }


# ---------------------------------------------------------------------------
if __name__ == "__main__":
    key = jax.random.PRNGKey(0)
    B, H, W = 2, 32, 32
    ks = jax.random.split(key, 13)

    pred_objectness = jax.random.normal(ks[0], (B, 1, H, W), jnp.float32)
    pred_is_vessel = jax.random.normal(ks[1], (B, 1, H, W), jnp.float32)
    pred_is_fishing = jax.random.normal(ks[2], (B, 1, H, W), jnp.float32)
    pred_size = jax.random.uniform(ks[3], (B, 1, H, W), jnp.float32, 0.0, 5.0)
    pred_offset = jax.random.normal(ks[4], (B, 2, H, W), jnp.float32)

    heat = jax.random.uniform(ks[5], (B, 1, H, W), jnp.float32, 0.0, 0.95)
    peak_mask = jax.random.uniform(ks[6], (B, 1, H, W)) < 0.05
    ign_mask = jnp.logical_and(jax.random.uniform(ks[7], (B, 1, H, W)) < 0.03,
                               jnp.logical_not(peak_mask))
    gt_objectness = jnp.where(peak_mask, 1.0, heat)
    gt_objectness = jnp.where(ign_mask, IGNORE_LABEL, gt_objectness)

    gt_is_vessel = jnp.where(jax.random.uniform(ks[8], (B, 1, H, W)) < 0.5, 1.0, 0.0)
    gt_is_vessel = jnp.where(jax.random.uniform(ks[9], (B, 1, H, W)) < 0.05,
                             IGNORE_LABEL, gt_is_vessel)
    gt_is_fishing = jnp.where(jax.random.uniform(ks[10], (B, 1, H, W)) < 0.3, 1.0, 0.0)
    gt_size = jnp.where(jax.random.uniform(ks[11], (B, 1, H, W)) < 0.7,
                        jax.random.uniform(ks[12], (B, 1, H, W), jnp.float32, 0.5, 10.0),
                        0.0)
    gt_offset = jax.random.normal(jax.random.PRNGKey(1), (B, 2, H, W), jnp.float32) * 0.5

    inputs = (pred_objectness, gt_objectness, pred_is_vessel, gt_is_vessel,
              pred_is_fishing, gt_is_fishing, pred_size, gt_size,
              pred_offset, gt_offset)

    ref = reference_loss(*inputs)

    # multi-tile path (forces 4 HW tiles of 256 lanes each)
    multi = multilabel_center_trimmed_loss(*inputs, max_block_elems=512)
    multi = {k: jax.block_until_ready(v) for k, v in multi.items()}

    # default path (whole row fits in a single tile)
    single = multilabel_center_trimmed_loss(*inputs)
    single = {k: jax.block_until_ready(v) for k, v in single.items()}

    for name in ref:
        b = float(ref[name])
        for got in (multi, single):
            a = float(got[name])
            assert abs(a - b) <= 1e-3 + 2e-3 * abs(b), (name, a, b)

    print("KERNEL_OK")
</pallas_src>

<mosaic_0001>
module attributes {stable_mosaic.version = 11 : i64} {
  func.func @_loss_kernel(%arg0: i32, %arg1: memref<2x256xf32, #tpu.memory_space<vmem>>, %arg2: memref<2x256xf32, #tpu.memory_space<vmem>>, %arg3: memref<2x256xf32, #tpu.memory_space<vmem>>, %arg4: memref<2x256xf32, #tpu.memory_space<vmem>>, %arg5: memref<2x256xf32, #tpu.memory_space<vmem>>, %arg6: memref<2x256xf32, #tpu.memory_space<vmem>>, %arg7: memref<2x256xf32, #tpu.memory_space<vmem>>, %arg8: memref<2x256xf32, #tpu.memory_space<vmem>>, %arg9: memref<2x256xf32, #tpu.memory_space<vmem>>, %arg10: memref<2x256xf32, #tpu.memory_space<vmem>>, %arg11: memref<2x256xf32, #tpu.memory_space<vmem>>, %arg12: memref<2x256xf32, #tpu.memory_space<vmem>>, %arg13: memref<8xf32, #tpu.memory_space<smem>>, %arg14: memref<9xf32, #tpu.memory_space<smem>>, %arg15: memref<2x8xf32, #tpu.memory_space<vmem>>, %arg16: memref<2x8xf32, #tpu.memory_space<vmem>>, %arg17: memref<2x8xf32, #tpu.memory_space<vmem>>, %arg18: memref<2x8xf32, #tpu.memory_space<vmem>>, %arg19: memref<2x8xf32, #tpu.memory_space<vmem>>, %arg20: memref<2x8xf32, #tpu.memory_space<vmem>>) attributes {dimension_semantics = [#tpu.dimension_semantics<arbitrary>], iteration_bounds = array<i64: 4>, scalar_prefetch = 0 : i64, scratch_operands = 7 : i64, tpu.core_type = #tpu.core_type<tc>, window_params = [{transform_indices = @transform_0, window_bounds = array<i64: 2, 256>}, {transform_indices = @transform_1, window_bounds = array<i64: 2, 256>}, {transform_indices = @transform_2, window_bounds = array<i64: 2, 256>}, {transform_indices = @transform_3, window_bounds = array<i64: 2, 256>}, {transform_indices = @transform_4, window_bounds = array<i64: 2, 256>}, {transform_indices = @transform_5, window_bounds = array<i64: 2, 256>}, {transform_indices = @transform_6, window_bounds = array<i64: 2, 256>}, {transform_indices = @transform_7, window_bounds = array<i64: 2, 256>}, {transform_indices = @transform_8, window_bounds = array<i64: 2, 256>}, {transform_indices = @transform_9, window_bounds = array<i64: 2, 256>}, {transform_indices = @transform_10, window_bounds = array<i64: 2, 256>}, {transform_indices = @transform_11, window_bounds = array<i64: 2, 256>}, {transform_indices = @transform_12, window_bounds = array<i64: 8>}]} {
    %c0_i32 = arith.constant 0 : i32
    %0 = arith.cmpi eq, %arg0, %c0_i32 : i32
    %1 = arith.extui %0 : i1 to i32
    %c0_i32_0 = arith.constant 0 : i32
    %2 = arith.cmpi ne, %1, %c0_i32_0 : i32
    scf.if %2 {
      %cst_77 = arith.constant 0.000000e+00 : f32
      %c0_78 = arith.constant 0 : index
      %235 = memref.load %arg14[%c0_78] : memref<9xf32, #tpu.memory_space<smem>>
      memref.store %cst_77, %arg14[%c0_78] : memref<9xf32, #tpu.memory_space<smem>>
      %cst_79 = arith.constant 0.000000e+00 : f32
      %c1_80 = arith.constant 1 : index
      %236 = memref.load %arg14[%c1_80] : memref<9xf32, #tpu.memory_space<smem>>
      memref.store %cst_79, %arg14[%c1_80] : memref<9xf32, #tpu.memory_space<smem>>
      %cst_81 = arith.constant 0.000000e+00 : f32
      %c2_82 = arith.constant 2 : index
      %237 = memref.load %arg14[%c2_82] : memref<9xf32, #tpu.memory_space<smem>>
      memref.store %cst_81, %arg14[%c2_82] : memref<9xf32, #tpu.memory_space<smem>>
      %cst_83 = arith.constant 0.000000e+00 : f32
      %c3_84 = arith.constant 3 : index
      %238 = memref.load %arg14[%c3_84] : memref<9xf32, #tpu.memory_space<smem>>
      memref.store %cst_83, %arg14[%c3_84] : memref<9xf32, #tpu.memory_space<smem>>
      %cst_85 = arith.constant 0.000000e+00 : f32
      %c4_86 = arith.constant 4 : index
      %239 = memref.load %arg14[%c4_86] : memref<9xf32, #tpu.memory_space<smem>>
      memref.store %cst_85, %arg14[%c4_86] : memref<9xf32, #tpu.memory_space<smem>>
      %cst_87 = arith.constant 0.000000e+00 : f32
      %c5_88 = arith.constant 5 : index
      %240 = memref.load %arg14[%c5_88] : memref<9xf32, #tpu.memory_space<smem>>
      memref.store %cst_87, %arg14[%c5_88] : memref<9xf32, #tpu.memory_space<smem>>
      %cst_89 = arith.constant 0.000000e+00 : f32
      %c6_90 = arith.constant 6 : index
      %241 = memref.load %arg14[%c6_90] : memref<9xf32, #tpu.memory_space<smem>>
      memref.store %cst_89, %arg14[%c6_90] : memref<9xf32, #tpu.memory_space<smem>>
      %cst_91 = arith.constant 0.000000e+00 : f32
      %c7_92 = arith.constant 7 : index
      %242 = memref.load %arg14[%c7_92] : memref<9xf32, #tpu.memory_space<smem>>
      memref.store %cst_91, %arg14[%c7_92] : memref<9xf32, #tpu.memory_space<smem>>
      %cst_93 = arith.constant 0.000000e+00 : f32
      %c8_94 = arith.constant 8 : index
      %243 = memref.load %arg14[%c8_94] : memref<9xf32, #tpu.memory_space<smem>>
      memref.store %cst_93, %arg14[%c8_94] : memref<9xf32, #tpu.memory_space<smem>>
      %cst_95 = arith.constant 0xFF800000 : f32
      %244 = vector.broadcast %cst_95 : f32 to vector<2x8xf32>
      %c0_96 = arith.constant 0 : index
      %c0_97 = arith.constant 0 : index
      %245 = vector.load %arg15[%c0_96, %c0_97] : memref<2x8xf32, #tpu.memory_space<vmem>>, vector<2x8xf32>
      tpu.vector_store %arg15[%c0_96, %c0_97], %244 {strides = array<i32>} : memref<2x8xf32, #tpu.memory_space<vmem>>, vector<2x8xf32>,
      %cst_98 = arith.constant 0.000000e+00 : f32
      %246 = vector.broadcast %cst_98 : f32 to vector<2x8xf32>
      %c0_99 = arith.constant 0 : index
      %c0_100 = arith.constant 0 : index
      %247 = vector.load %arg16[%c0_99, %c0_100] : memref<2x8xf32, #tpu.memory_space<vmem>>, vector<2x8xf32>
      tpu.vector_store %arg16[%c0_99, %c0_100], %246 {strides = array<i32>} : memref<2x8xf32, #tpu.memory_space<vmem>>, vector<2x8xf32>,
      %c0_101 = arith.constant 0 : index
      %c0_102 = arith.constant 0 : index
      %248 = vector.load %arg17[%c0_101, %c0_102] : memref<2x8xf32, #tpu.memory_space<vmem>>, vector<2x8xf32>
      tpu.vector_store %arg17[%c0_101, %c0_102], %246 {strides = array<i32>} : memref<2x8xf32, #tpu.memory_space<vmem>>, vector<2x8xf32>,
      %c0_103 = arith.constant 0 : index
      %c0_104 = arith.constant 0 : index
      %249 = vector.load %arg18[%c0_103, %c0_104] : memref<2x8xf32, #tpu.memory_space<vmem>>, vector<2x8xf32>
      tpu.vector_store %arg18[%c0_103, %c0_104], %246 {strides = array<i32>} : memref<2x8xf32, #tpu.memory_space<vmem>>, vector<2x8xf32>,
      %c0_105 = arith.constant 0 : index
      %c0_106 = arith.constant 0 : index
      %250 = vector.load %arg19[%c0_105, %c0_106] : memref<2x8xf32, #tpu.memory_space<vmem>>, vector<2x8xf32>
      tpu.vector_store %arg19[%c0_105, %c0_106], %246 {strides = array<i32>} : memref<2x8xf32, #tpu.memory_space<vmem>>, vector<2x8xf32>,
      %c0_107 = arith.constant 0 : index
      %c0_108 = arith.constant 0 : index
      %251 = vector.load %arg20[%c0_107, %c0_108] : memref<2x8xf32, #tpu.memory_space<vmem>>, vector<2x8xf32>
      tpu.vector_store %arg20[%c0_107, %c0_108], %246 {strides = array<i32>} : memref<2x8xf32, #tpu.memory_space<vmem>>, vector<2x8xf32>,
    } else {
    }
    %c0 = arith.constant 0 : index
    %c0_1 = arith.constant 0 : index
    %3 = vector.load %arg1[%c0, %c0_1] : memref<2x256xf32, #tpu.memory_space<vmem>>, vector<2x256xf32>
    %c0_2 = arith.constant 0 : index
    %c0_3 = arith.constant 0 : index
    %4 = vector.load %arg2[%c0_2, %c0_3] : memref<2x256xf32, #tpu.memory_space<vmem>>, vector<2x256xf32>
    %c0_4 = arith.constant 0 : index
    %c0_5 = arith.constant 0 : index
    %5 = vector.load %arg3[%c0_4, %c0_5] : memref<2x256xf32, #tpu.memory_space<vmem>>, vector<2x256xf32>
    %c0_6 = arith.constant 0 : index
    %c0_7 = arith.constant 0 : index
    %6 = vector.load %arg4[%c0_6, %c0_7] : memref<2x256xf32, #tpu.memory_space<vmem>>, vector<2x256xf32>
    %c0_8 = arith.constant 0 : index
    %c0_9 = arith.constant 0 : index
    %7 = vector.load %arg5[%c0_8, %c0_9] : memref<2x256xf32, #tpu.memory_space<vmem>>, vector<2x256xf32>
    %c0_10 = arith.constant 0 : index
    %c0_11 = arith.constant 0 : index
    %8 = vector.load %arg6[%c0_10, %c0_11] : memref<2x256xf32, #tpu.memory_space<vmem>>, vector<2x256xf32>
    %c0_12 = arith.constant 0 : index
    %c0_13 = arith.constant 0 : index
    %9 = vector.load %arg7[%c0_12, %c0_13] : memref<2x256xf32, #tpu.memory_space<vmem>>, vector<2x256xf32>
    %c0_14 = arith.constant 0 : index
    %c0_15 = arith.constant 0 : index
    %10 = vector.load %arg8[%c0_14, %c0_15] : memref<2x256xf32, #tpu.memory_space<vmem>>, vector<2x256xf32>
    %c0_16 = arith.constant 0 : index
    %c0_17 = arith.constant 0 : index
    %11 = vector.load %arg9[%c0_16, %c0_17] : memref<2x256xf32, #tpu.memory_space<vmem>>, vector<2x256xf32>
    %c0_18 = arith.constant 0 : index
    %c0_19 = arith.constant 0 : index
    %12 = vector.load %arg10[%c0_18, %c0_19] : memref<2x256xf32, #tpu.memory_space<vmem>>, vector<2x256xf32>
    %c0_20 = arith.constant 0 : index
    %c0_21 = arith.constant 0 : index
    %13 = vector.load %arg11[%c0_20, %c0_21] : memref<2x256xf32, #tpu.memory_space<vmem>>, vector<2x256xf32>
    %c0_22 = arith.constant 0 : index
    %c0_23 = arith.constant 0 : index
    %14 = vector.load %arg12[%c0_22, %c0_23] : memref<2x256xf32, #tpu.memory_space<vmem>>, vector<2x256xf32>
    %cst = arith.constant 0.000000e+00 : f32
    %15 = vector.broadcast %cst : f32 to vector<2x256xf32>
    %16 = arith.subf %15, %3 : vector<2x256xf32>
    %cst_24 = arith.constant 0.000000e+00 : f32
    %17 = vector.broadcast %cst_24 : f32 to vector<2x256xf32>
    %18 = arith.maximumf %16, %17 : vector<2x256xf32>
    %19 = vector.broadcast %cst_24 : f32 to vector<2x256xf32>
    %20 = arith.subf %16, %19 : vector<2x256xf32>
    %21 = arith.cmpf one, %20, %20 : vector<2x256xf32>
    %22 = vector.broadcast %cst_24 : f32 to vector<2x256xf32>
    %23 = arith.addf %16, %22 : vector<2x256xf32>
    %24 = math.absf %20 : vector<2x256xf32>
    %cst_25 = arith.constant 0.000000e+00 : f32
    %25 = vector.broadcast %cst_25 : f32 to vector<2x256xf32>
    %26 = arith.subf %25, %24 : vector<2x256xf32>
    %27 = math.exp %26 : vector<2x256xf32>
    %28 = math.log1p %27 : vector<2x256xf32>
    %29 = arith.addf %18, %28 : vector<2x256xf32>
    %30 = arith.select %21, %23, %29 : vector<2x256xi1>, vector<2x256xf32>
    %cst_26 = arith.constant 0.000000e+00 : f32
    %31 = vector.broadcast %cst_26 : f32 to vector<2x256xf32>
    %32 = arith.subf %31, %30 : vector<2x256xf32>
    %33 = math.exp %32 : vector<2x256xf32>
    %cst_27 = arith.constant 1.000000e+00 : f32
    %34 = vector.broadcast %cst_27 : f32 to vector<2x256xf32>
    %35 = arith.cmpf oeq, %4, %34 : vector<2x256xf32>
    %36 = arith.extui %35 : vector<2x256xi1> to vector<2x256xi32>
    %37 = arith.sitofp %36 : vector<2x256xi32> to vector<2x256xf32>
    %cst_28 = arith.constant 1.000000e+00 : f32
    %38 = vector.broadcast %cst_28 : f32 to vector<2x256xf32>
    %39 = arith.subf %38, %37 : vector<2x256xf32>
    %cst_29 = arith.constant -1.000000e+02 : f32
    %40 = vector.broadcast %cst_29 : f32 to vector<2x256xf32>
    %41 = arith.cmpf one, %4, %40 : vector<2x256xf32>
    %42 = arith.extui %41 : vector<2x256xi1> to vector<2x256xi32>
    %43 = arith.sitofp %42 : vector<2x256xi32> to vector<2x256xf32>
    %cst_30 = arith.constant 1.000000e+00 : f32
    %44 = vector.broadcast %cst_30 : f32 to vector<2x256xf32>
    %45 = arith.subf %44, %33 : vector<2x256xf32>
    %46 = arith.mulf %45, %45 : vector<2x256xf32>
    %cst_31 = arith.constant 0.000000e+00 : f32
    %47 = vector.broadcast %cst_31 : f32 to vector<2x256xf32>
    %48 = arith.subf %47, %46 : vector<2x256xf32>
    %49 = arith.mulf %48, %32 : vector<2x256xf32>
    %50 = arith.mulf %49, %37 : vector<2x256xf32>
    %cst_32 = arith.constant 1.000000e+00 : f32
    %51 = vector.broadcast %cst_32 : f32 to vector<2x256xf32>
    %52 = arith.subf %51, %4 : vector<2x256xf32>
    %53 = arith.mulf %52, %52 : vector<2x256xf32>
    %54 = arith.mulf %53, %53 : vector<2x256xf32>
    %cst_33 = arith.constant 0.000000e+00 : f32
    %55 = vector.broadcast %cst_33 : f32 to vector<2x256xf32>
    %56 = arith.subf %55, %54 : vector<2x256xf32>
    %57 = arith.mulf %33, %33 : vector<2x256xf32>
    %58 = arith.mulf %56, %57 : vector<2x256xf32>
    %59 = arith.subf %32, %3 : vector<2x256xf32>
    %60 = arith.mulf %58, %59 : vector<2x256xf32>
    %61 = arith.mulf %39, %43 : vector<2x256xf32>
    %62 = arith.mulf %60, %61 : vector<2x256xf32>
    %63 = arith.mulf %45, %3 : vector<2x256xf32>
    %64 = arith.subf %63, %32 : vector<2x256xf32>
    %65 = arith.mulf %4, %43 : vector<2x256xf32>
    %cst_34 = arith.constant 0.000000e+00 : f32
    %66 = vector.broadcast %cst_34 : f32 to vector<2x256xf32>
    %67 = arith.subf %66, %5 : vector<2x256xf32>
    %cst_35 = arith.constant 0.000000e+00 : f32
    %68 = vector.broadcast %cst_35 : f32 to vector<2x256xf32>
    %69 = arith.maximumf %67, %68 : vector<2x256xf32>
    %70 = vector.broadcast %cst_35 : f32 to vector<2x256xf32>
    %71 = arith.subf %67, %70 : vector<2x256xf32>
    %72 = arith.cmpf one, %71, %71 : vector<2x256xf32>
    %73 = vector.broadcast %cst_35 : f32 to vector<2x256xf32>
    %74 = arith.addf %67, %73 : vector<2x256xf32>
    %75 = math.absf %71 : vector<2x256xf32>
    %cst_36 = arith.constant 0.000000e+00 : f32
    %76 = vector.broadcast %cst_36 : f32 to vector<2x256xf32>
    %77 = arith.subf %76, %75 : vector<2x256xf32>
    %78 = math.exp %77 : vector<2x256xf32>
    %79 = math.log1p %78 : vector<2x256xf32>
    %80 = arith.addf %69, %79 : vector<2x256xf32>
    %81 = arith.select %72, %74, %80 : vector<2x256xi1>, vector<2x256xf32>
    %cst_37 = arith.constant 0.000000e+00 : f32
    %82 = vector.broadcast %cst_37 : f32 to vector<2x256xf32>
    %83 = arith.subf %82, %81 : vector<2x256xf32>
    %cst_38 = arith.constant 1.000000e+00 : f32
    %84 = vector.broadcast %cst_38 : f32 to vector<2x256xf32>
    %85 = arith.subf %84, %6 : vector<2x256xf32>
    %86 = arith.mulf %85, %5 : vector<2x256xf32>
    %87 = arith.subf %86, %83 : vector<2x256xf32>
    %cst_39 = arith.constant -1.000000e+02 : f32
    %88 = vector.broadcast %cst_39 : f32 to vector<2x256xf32>
    %89 = arith.cmpf one, %6, %88 : vector<2x256xf32>
    %90 = arith.extui %89 : vector<2x256xi1> to vector<2x256xi32>
    %91 = arith.sitofp %90 : vector<2x256xi32> to vector<2x256xf32>
    %92 = arith.mulf %87, %91 : vector<2x256xf32>
    %93 = arith.mulf %92, %65 : vector<2x256xf32>
    %94 = math.exp %83 : vector<2x256xf32>
    %cst_40 = arith.constant 1.000000e+00 : f32
    %95 = vector.broadcast %cst_40 : f32 to vector<2x256xf32>
    %96 = arith.subf %95, %94 : vector<2x256xf32>
    %97 = arith.mulf %96, %5 : vector<2x256xf32>
    %98 = arith.subf %97, %83 : vector<2x256xf32>
    %cst_41 = arith.constant 0.000000e+00 : f32
    %99 = vector.broadcast %cst_41 : f32 to vector<2x256xf32>
    %100 = arith.subf %99, %7 : vector<2x256xf32>
    %cst_42 = arith.constant 0.000000e+00 : f32
    %101 = vector.broadcast %cst_42 : f32 to vector<2x256xf32>
    %102 = arith.maximumf %100, %101 : vector<2x256xf32>
    %103 = vector.broadcast %cst_42 : f32 to vector<2x256xf32>
    %104 = arith.subf %100, %103 : vector<2x256xf32>
    %105 = arith.cmpf one, %104, %104 : vector<2x256xf32>
    %106 = vector.broadcast %cst_42 : f32 to vector<2x256xf32>
    %107 = arith.addf %100, %106 : vector<2x256xf32>
    %108 = math.absf %104 : vector<2x256xf32>
    %cst_43 = arith.constant 0.000000e+00 : f32
    %109 = vector.broadcast %cst_43 : f32 to vector<2x256xf32>
    %110 = arith.subf %109, %108 : vector<2x256xf32>
    %111 = math.exp %110 : vector<2x256xf32>
    %112 = math.log1p %111 : vector<2x256xf32>
    %113 = arith.addf %102, %112 : vector<2x256xf32>
    %114 = arith.select %105, %107, %113 : vector<2x256xi1>, vector<2x256xf32>
    %cst_44 = arith.constant 0.000000e+00 : f32
    %115 = vector.broadcast %cst_44 : f32 to vector<2x256xf32>
    %116 = arith.subf %115, %114 : vector<2x256xf32>
    %cst_45 = arith.constant 1.000000e+00 : f32
    %117 = vector.broadcast %cst_45 : f32 to vector<2x256xf32>
    %118 = arith.subf %117, %8 : vector<2x256xf32>
    %119 = arith.mulf %118, %7 : vector<2x256xf32>
    %120 = arith.subf %119, %116 : vector<2x256xf32>
    %cst_46 = arith.constant -1.000000e+02 : f32
    %121 = vector.broadcast %cst_46 : f32 to vector<2x256xf32>
    %122 = arith.cmpf one, %8, %121 : vector<2x256xf32>
    %123 = arith.extui %122 : vector<2x256xi1> to vector<2x256xi32>
    %124 = arith.sitofp %123 : vector<2x256xi32> to vector<2x256xf32>
    %125 = arith.mulf %120, %124 : vector<2x256xf32>
    %126 = arith.mulf %125, %65 : vector<2x256xf32>
    %127 = math.exp %116 : vector<2x256xf32>
    %cst_47 = arith.constant 1.000000e+00 : f32
    %128 = vector.broadcast %cst_47 : f32 to vector<2x256xf32>
    %129 = arith.subf %128, %127 : vector<2x256xf32>
    %130 = arith.mulf %129, %7 : vector<2x256xf32>
    %131 = arith.subf %130, %116 : vector<2x256xf32>
    %cst_48 = arith.constant 0.000000e+00 : f32
    %132 = vector.broadcast %cst_48 : f32 to vector<2x256xf32>
    %133 = arith.cmpf ogt, %10, %132 : vector<2x256xf32>
    %134 = arith.extui %133 : vector<2x256xi1> to vector<2x256xi32>
    %135 = arith.sitofp %134 : vector<2x256xi32> to vector<2x256xf32>
    %136 = arith.mulf %37, %135 : vector<2x256xf32>
    %137 = arith.subf %9, %10 : vector<2x256xf32>
    %138 = arith.mulf %137, %137 : vector<2x256xf32>
    %139 = arith.mulf %138, %136 : vector<2x256xf32>
    %140 = arith.subf %11, %13 : vector<2x256xf32>
    %141 = arith.subf %12, %14 : vector<2x256xf32>
    %142 = arith.mulf %140, %140 : vector<2x256xf32>
    %143 = arith.mulf %141, %141 : vector<2x256xf32>
    %144 = arith.addf %142, %143 : vector<2x256xf32>
    %145 = arith.mulf %144, %37 : vector<2x256xf32>
    %c0_49 = arith.constant 0 : index
    %146 = memref.load %arg14[%c0_49] : memref<9xf32, #tpu.memory_space<smem>>
    %147 = vector.shape_cast %50 : vector<2x256xf32> to vector<1x2x256xf32>
    %cst_50 = arith.constant dense<0.000000e+00> : vector<1xf32>
    %148 = vector.multi_reduction <add>, %147, %cst_50 [1, 2] : vector<1x2x256xf32> to vector<1xf32>
    %149 = vector.shape_cast %148 : vector<1xf32> to vector<1x1x1xf32>
    %150 = vector.extract %149[0, 0, 0] : f32 from vector<1x1x1xf32>
    %151 = arith.addf %146, %150 : f32
    %c0_51 = arith.constant 0 : index
    %152 = memref.load %arg14[%c0_51] : memref<9xf32, #tpu.memory_space<smem>>
    memref.store %151, %arg14[%c0_51] : memref<9xf32, #tpu.memory_space<smem>>
    %c1 = arith.constant 1 : index
    %153 = memref.load %arg14[%c1] : memref<9xf32, #tpu.memory_space<smem>>
    %154 = vector.shape_cast %62 : vector<2x256xf32> to vector<1x2x256xf32>
    %cst_52 = arith.constant dense<0.000000e+00> : vector<1xf32>
    %155 = vector.multi_reduction <add>, %154, %cst_52 [1, 2] : vector<1x2x256xf32> to vector<1xf32>
    %156 = vector.shape_cast %155 : vector<1xf32> to vector<1x1x1xf32>
    %157 = vector.extract %156[0, 0, 0] : f32 from vector<1x1x1xf32>
    %158 = arith.addf %153, %157 : f32
    %c1_53 = arith.constant 1 : index
    %159 = memref.load %arg14[%c1_53] : memref<9xf32, #tpu.memory_space<smem>>
    memref.store %158, %arg14[%c1_53] : memref<9xf32, #tpu.memory_space<smem>>
    %c2 = arith.constant 2 : index
    %160 = memref.load %arg14[%c2] : memref<9xf32, #tpu.memory_space<smem>>
    %161 = vector.shape_cast %93 : vector<2x256xf32> to vector<1x2x256xf32>
    %cst_54 = arith.constant dense<0.000000e+00> : vector<1xf32>
    %162 = vector.multi_reduction <add>, %161, %cst_54 [1, 2] : vector<1x2x256xf32> to vector<1xf32>
    %163 = vector.shape_cast %162 : vector<1xf32> to vector<1x1x1xf32>
    %164 = vector.extract %163[0, 0, 0] : f32 from vector<1x1x1xf32>
    %165 = arith.addf %160, %164 : f32
    %c2_55 = arith.constant 2 : index
    %166 = memref.load %arg14[%c2_55] : memref<9xf32, #tpu.memory_space<smem>>
    memref.store %165, %arg14[%c2_55] : memref<9xf32, #tpu.memory_space<smem>>
    %c3 = arith.constant 3 : index
    %167 = memref.load %arg14[%c3] : memref<9xf32, #tpu.memory_space<smem>>
    %168 = vector.shape_cast %126 : vector<2x256xf32> to vector<1x2x256xf32>
    %cst_56 = arith.constant dense<0.000000e+00> : vector<1xf32>
    %169 = vector.multi_reduction <add>, %168, %cst_56 [1, 2] : vector<1x2x256xf32> to vector<1xf32>
    %170 = vector.shape_cast %169 : vector<1xf32> to vector<1x1x1xf32>
    %171 = vector.extract %170[0, 0, 0] : f32 from vector<1x1x1xf32>
    %172 = arith.addf %167, %171 : f32
    %c3_57 = arith.constant 3 : index
    %173 = memref.load %arg14[%c3_57] : memref<9xf32, #tpu.memory_space<smem>>
    memref.store %172, %arg14[%c3_57] : memref<9xf32, #tpu.memory_space<smem>>
    %c4 = arith.constant 4 : index
    %174 = memref.load %arg14[%c4] : memref<9xf32, #tpu.memory_space<smem>>
    %175 = vector.shape_cast %139 : vector<2x256xf32> to vector<1x2x256xf32>
    %cst_58 = arith.constant dense<0.000000e+00> : vector<1xf32>
    %176 = vector.multi_reduction <add>, %175, %cst_58 [1, 2] : vector<1x2x256xf32> to vector<1xf32>
    %177 = vector.shape_cast %176 : vector<1xf32> to vector<1x1x1xf32>
    %178 = vector.extract %177[0, 0, 0] : f32 from vector<1x1x1xf32>
    %179 = arith.addf %174, %178 : f32
    %c4_59 = arith.constant 4 : index
    %180 = memref.load %arg14[%c4_59] : memref<9xf32, #tpu.memory_space<smem>>
    memref.store %179, %arg14[%c4_59] : memref<9xf32, #tpu.memory_space<smem>>
    %c5 = arith.constant 5 : index
    %181 = memref.load %arg14[%c5] : memref<9xf32, #tpu.memory_space<smem>>
    %182 = vector.shape_cast %145 : vector<2x256xf32> to vector<1x2x256xf32>
    %cst_60 = arith.constant dense<0.000000e+00> : vector<1xf32>
    %183 = vector.multi_reduction <add>, %182, %cst_60 [1, 2] : vector<1x2x256xf32> to vector<1xf32>
    %184 = vector.shape_cast %183 : vector<1xf32> to vector<1x1x1xf32>
    %185 = vector.extract %184[0, 0, 0] : f32 from vector<1x1x1xf32>
    %186 = arith.addf %181, %185 : f32
    %c5_61 = arith.constant 5 : index
    %187 = memref.load %arg14[%c5_61] : memref<9xf32, #tpu.memory_space<smem>>
    memref.store %186, %arg14[%c5_61] : memref<9xf32, #tpu.memory_space<smem>>
    %c6 = arith.constant 6 : index
    %188 = memref.load %arg14[%c6] : memref<9xf32, #tpu.memory_space<smem>>
    %189 = vector.shape_cast %37 : vector<2x256xf32> to vector<1x2x256xf32>
    %cst_62 = arith.constant dense<0.000000e+00> : vector<1xf32>
    %190 = vector.multi_reduction <add>, %189, %cst_62 [1, 2] : vector<1x2x256xf32> to vector<1xf32>
    %191 = vector.shape_cast %190 : vector<1xf32> to vector<1x1x1xf32>
    %192 = vector.extract %191[0, 0, 0] : f32 from vector<1x1x1xf32>
    %193 = arith.addf %188, %192 : f32
    %c6_63 = arith.constant 6 : index
    %194 = memref.load %arg14[%c6_63] : memref<9xf32, #tpu.memory_space<smem>>
    memref.store %193, %arg14[%c6_63] : memref<9xf32, #tpu.memory_space<smem>>
    %c7 = arith.constant 7 : index
    %195 = memref.load %arg14[%c7] : memref<9xf32, #tpu.memory_space<smem>>
    %cst_64 = arith.constant 1.000000e+00 : f32
    %196 = vector.broadcast %cst_64 : f32 to vector<2x256xf32>
    %197 = arith.cmpf oeq, %6, %196 : vector<2x256xf32>
    %198 = arith.andi %197, %35 : vector<2x256xi1>
    %199 = arith.extui %198 : vector<2x256xi1> to vector<2x256xi32>
    %200 = arith.sitofp %199 : vector<2x256xi32> to vector<2x256xf32>
    %201 = vector.shape_cast %200 : vector<2x256xf32> to vector<1x2x256xf32>
    %cst_65 = arith.constant dense<0.000000e+00> : vector<1xf32>
    %202 = vector.multi_reduction <add>, %201, %cst_65 [1, 2] : vector<1x2x256xf32> to vector<1xf32>
    %203 = vector.shape_cast %202 : vector<1xf32> to vector<1x1x1xf32>
    %204 = vector.extract %203[0, 0, 0] : f32 from vector<1x1x1xf32>
    %205 = arith.addf %195, %204 : f32
    %c7_66 = arith.constant 7 : index
    %206 = memref.load %arg14[%c7_66] : memref<9xf32, #tpu.memory_space<smem>>
    memref.store %205, %arg14[%c7_66] : memref<9xf32, #tpu.memory_space<smem>>
    %c8 = arith.constant 8 : index
    %207 = memref.load %arg14[%c8] : memref<9xf32, #tpu.memory_space<smem>>
    %208 = vector.shape_cast %136 : vector<2x256xf32> to vector<1x2x256xf32>
    %cst_67 = arith.constant dense<0.000000e+00> : vector<1xf32>
    %209 = vector.multi_reduction <add>, %208, %cst_67 [1, 2] : vector<1x2x256xf32> to vector<1xf32>
    %210 = vector.shape_cast %209 : vector<1xf32> to vector<1x1x1xf32>
    %211 = vector.extract %210[0, 0, 0] : f32 from vector<1x1x1xf32>
    %212 = arith.addf %207, %211 : f32
    %c8_68 = arith.constant 8 : index
    %213 = memref.load %arg14[%c8_68] : memref<9xf32, #tpu.memory_space<smem>>
    memref.store %212, %arg14[%c8_68] : memref<9xf32, #tpu.memory_space<smem>>
    %214 = arith.subf %62, %64 : vector<2x256xf32>
    %215 = arith.subf %93, %98 : vector<2x256xf32>
    %216 = arith.subf %126, %131 : vector<2x256xf32>
    %c0_69 = arith.constant 0 : index
    %c0_70 = arith.constant 0 : index
    %217 = vector.load %arg15[%c0_69, %c0_70] : memref<2x8xf32, #tpu.memory_space<vmem>>, vector<2x8xf32>
    %cst_71 = arith.constant dense<0x7F800000> : vector<2xf32>
    %218 = vector.multi_reduction <minimumf>, %217, %cst_71 [1] : vector<2x8xf32> to vector<2xf32>
    %219 = vector.shape_cast %218 : vector<2xf32> to vector<2x1xf32>
    %cst_72 = arith.constant dense<0xFF800000> : vector<2xf32>
    %220 = vector.multi_reduction <maximumf>, %62, %cst_72 [1] : vector<2x256xf32> to vector<2xf32>
    %221 = vector.shape_cast %220 : vector<2xf32> to vector<2x1xf32>
    %222 = arith.cmpf ogt, %221, %219 : vector<2x1xf32>
    %223 = arith.extui %222 : vector<2x1xi1> to vector<2x1xi32>
    %224 = arith.sitofp %223 : vector<2x1xi32> to vector<2x1xf32>
    %225 = vector.shape_cast %224 : vector<2x1xf32> to vector<1x2x1xf32>
    %cst_73 = arith.constant dense<0xFF800000> : vector<1xf32>
    %226 = vector.multi_reduction <maximumf>, %225, %cst_73 [1, 2] : vector<1x2x1xf32> to vector<1xf32>
    %227 = vector.shape_cast %226 : vector<1xf32> to vector<1x1x1xf32>
    %228 = vector.extract %227[0, 0, 0] : f32 from vector<1x1x1xf32>
    %cst_74 = arith.constant 0.000000e+00 : f32
    %229 = arith.cmpf ogt, %228, %cst_74 : f32
    %230 = arith.extui %229 : i1 to i32
    %c0_i32_75 = arith.constant 0 : i32
    %231 = arith.cmpi ne, %230, %c0_i32_75 : i32
    scf.if %231 {
      %235 = tpu.iota {dimensions = array<i32: 1>} : vector<2x256xi32>
      %236 = tpu.iota {dimensions = array<i32: 1>} : vector<2x8xi32>
      %c0_77 = arith.constant 0 : index
      %c0_78 = arith.constant 0 : index
      %237 = vector.load %arg15[%c0_77, %c0_78] : memref<2x8xf32, #tpu.memory_space<vmem>>, vector<2x8xf32>
      %cst_79 = arith.constant dense<0x7F800000> : vector<2xf32>
      %238 = vector.multi_reduction <minimumf>, %237, %cst_79 [1] : vector<2x8xf32> to vector<2xf32>
      %239 = vector.shape_cast %238 : vector<2xf32> to vector<2x1xf32>
      %cst_80 = arith.constant dense<0xFF800000> : vector<2xf32>
      %240 = vector.multi_reduction <maximumf>, %62, %cst_80 [1] : vector<2x256xf32> to vector<2xf32>
      %241 = vector.shape_cast %240 : vector<2xf32> to vector<2x1xf32>
      %242 = arith.cmpf ogt, %241, %239 : vector<2x1xf32>
      %243 = vector.broadcast %241 : vector<2x1xf32> to vector<2x256xf32>
      %244 = arith.cmpf oeq, %62, %243 : vector<2x256xf32>
      %c256_i32 = arith.constant 256 : i32
      %245 = vector.broadcast %c256_i32 : i32 to vector<2x256xi32>
      %246 = arith.select %244, %235, %245 : vector<2x256xi1>, vector<2x256xi32>
      %cst_81 = arith.constant dense<2147483647> : vector<2xi32>
      %247 = vector.multi_reduction <minsi>, %246, %cst_81 [1] : vector<2x256xi32> to vector<2xi32>
      %248 = vector.shape_cast %247 : vector<2xi32> to vector<2x1xi32>
      %249 = vector.broadcast %248 : vector<2x1xi32> to vector<2x256xi32>
      %250 = arith.cmpi eq, %235, %249 : vector<2x256xi32>
      %251 = arith.extui %250 : vector<2x256xi1> to vector<2x256xi32>
      %252 = arith.sitofp %251 : vector<2x256xi32> to vector<2x256xf32>
      %253 = arith.mulf %214, %252 : vector<2x256xf32>
      %cst_82 = arith.constant dense<0.000000e+00> : vector<2xf32>
      %254 = vector.multi_reduction <add>, %253, %cst_82 [1] : vector<2x256xf32> to vector<2xf32>
      %255 = vector.shape_cast %254 : vector<2xf32> to vector<2x1xf32>
      %256 = arith.mulf %215, %252 : vector<2x256xf32>
      %cst_83 = arith.constant dense<0.000000e+00> : vector<2xf32>
      %257 = vector.multi_reduction <add>, %256, %cst_83 [1] : vector<2x256xf32> to vector<2xf32>
      %258 = vector.shape_cast %257 : vector<2xf32> to vector<2x1xf32>
      %259 = arith.mulf %216, %252 : vector<2x256xf32>
      %cst_84 = arith.constant dense<0.000000e+00> : vector<2xf32>
      %260 = vector.multi_reduction <add>, %259, %cst_84 [1] : vector<2x256xf32> to vector<2xf32>
      %261 = vector.shape_cast %260 : vector<2xf32> to vector<2x1xf32>
      %262 = arith.mulf %139, %252 : vector<2x256xf32>
      %cst_85 = arith.constant dense<0.000000e+00> : vector<2xf32>
      %263 = vector.multi_reduction <add>, %262, %cst_85 [1] : vector<2x256xf32> to vector<2xf32>
      %264 = vector.shape_cast %263 : vector<2xf32> to vector<2x1xf32>
      %265 = arith.mulf %145, %252 : vector<2x256xf32>
      %cst_86 = arith.constant dense<0.000000e+00> : vector<2xf32>
      %266 = vector.multi_reduction <add>, %265, %cst_86 [1] : vector<2x256xf32> to vector<2xf32>
      %267 = vector.shape_cast %266 : vector<2xf32> to vector<2x1xf32>
      %268 = vector.broadcast %239 : vector<2x1xf32> to vector<2x8xf32>
      %269 = arith.cmpf oeq, %237, %268 : vector<2x8xf32>
      %c8_i32 = arith.constant 8 : i32
      %270 = vector.broadcast %c8_i32 : i32 to vector<2x8xi32>
      %271 = arith.select %269, %236, %270 : vector<2x8xi1>, vector<2x8xi32>
      %cst_87 = arith.constant dense<2147483647> : vector<2xi32>
      %272 = vector.multi_reduction <minsi>, %271, %cst_87 [1] : vector<2x8xi32> to vector<2xi32>
      %273 = vector.shape_cast %272 : vector<2xi32> to vector<2x1xi32>
      %274 = vector.broadcast %273 : vector<2x1xi32> to vector<2x8xi32>
      %275 = arith.cmpi eq, %236, %274 : vector<2x8xi32>
      %276 = vector.broadcast %242 : vector<2x1xi1> to vector<2x8xi1>
      %277 = arith.andi %275, %276 : vector<2x8xi1>
      %278 = vector.shape_cast %241 : vector<2x1xf32> to vector<2x1xf32>
      %279 = vector.broadcast %278 : vector<2x1xf32> to vector<2x8xf32>
      %280 = arith.select %277, %279, %237 : vector<2x8xi1>, vector<2x8xf32>
      %c0_88 = arith.constant 0 : index
      %c0_89 = arith.constant 0 : index
      %281 = vector.load %arg15[%c0_88, %c0_89] : memref<2x8xf32, #tpu.memory_space<vmem>>, vector<2x8xf32>
      tpu.vector_store %arg15[%c0_88, %c0_89], %280 {strides = array<i32>} : memref<2x8xf32, #tpu.memory_space<vmem>>, vector<2x8xf32>,
      %c0_90 = arith.constant 0 : index
      %c0_91 = arith.constant 0 : index
      %282 = vector.load %arg16[%c0_90, %c0_91] : memref<2x8xf32, #tpu.memory_space<vmem>>, vector<2x8xf32>
      %283 = vector.shape_cast %255 : vector<2x1xf32> to vector<2x1xf32>
      %284 = vector.broadcast %283 : vector<2x1xf32> to vector<2x8xf32>
      %285 = arith.select %277, %284, %282 : vector<2x8xi1>, vector<2x8xf32>
      %c0_92 = arith.constant 0 : index
      %c0_93 = arith.constant 0 : index
      %286 = vector.load %arg16[%c0_92, %c0_93] : memref<2x8xf32, #tpu.memory_space<vmem>>, vector<2x8xf32>
      tpu.vector_store %arg16[%c0_92, %c0_93], %285 {strides = array<i32>} : memref<2x8xf32, #tpu.memory_space<vmem>>, vector<2x8xf32>,
      %c0_94 = arith.constant 0 : index
      %c0_95 = arith.constant 0 : index
      %287 = vector.load %arg17[%c0_94, %c0_95] : memref<2x8xf32, #tpu.memory_space<vmem>>, vector<2x8xf32>
      %288 = vector.shape_cast %258 : vector<2x1xf32> to vector<2x1xf32>
      %289 = vector.broadcast %288 : vector<2x1xf32> to vector<2x8xf32>
      %290 = arith.select %277, %289, %287 : vector<2x8xi1>, vector<2x8xf32>
      %c0_96 = arith.constant 0 : index
      %c0_97 = arith.constant 0 : index
      %291 = vector.load %arg17[%c0_96, %c0_97] : memref<2x8xf32, #tpu.memory_space<vmem>>, vector<2x8xf32>
      tpu.vector_store %arg17[%c0_96, %c0_97], %290 {strides = array<i32>} : memref<2x8xf32, #tpu.memory_space<vmem>>, vector<2x8xf32>,
      %c0_98 = arith.constant 0 : index
      %c0_99 = arith.constant 0 : index
      %292 = vector.load %arg18[%c0_98, %c0_99] : memref<2x8xf32, #tpu.memory_space<vmem>>, vector<2x8xf32>
      %293 = vector.shape_cast %261 : vector<2x1xf32> to vector<2x1xf32>
      %294 = vector.broadcast %293 : vector<2x1xf32> to vector<2x8xf32>
      %295 = arith.select %277, %294, %292 : vector<2x8xi1>, vector<2x8xf32>
      %c0_100 = arith.constant 0 : index
      %c0_101 = arith.constant 0 : index
      %296 = vector.load %arg18[%c0_100, %c0_101] : memref<2x8xf32, #tpu.memory_space<vmem>>, vector<2x8xf32>
      tpu.vector_store %arg18[%c0_100, %c0_101], %295 {strides = array<i32>} : memref<2x8xf32, #tpu.memory_space<vmem>>, vector<2x8xf32>,
      %c0_102 = arith.constant 0 : index
      %c0_103 = arith.constant 0 : index
      %297 = vector.load %arg19[%c0_102, %c0_103] : memref<2x8xf32, #tpu.memory_space<vmem>>, vector<2x8xf32>
      %298 = vector.shape_cast %264 : vector<2x1xf32> to vector<2x1xf32>
      %299 = vector.broadcast %298 : vector<2x1xf32> to vector<2x8xf32>
      %300 = arith.select %277, %299, %297 : vector<2x8xi1>, vector<2x8xf32>
      %c0_104 = arith.constant 0 : index
      %c0_105 = arith.constant 0 : index
      %301 = vector.load %arg19[%c0_104, %c0_105] : memref<2x8xf32, #tpu.memory_space<vmem>>, vector<2x8xf32>
      tpu.vector_store %arg19[%c0_104, %c0_105], %300 {strides = array<i32>} : memref<2x8xf32, #tpu.memory_space<vmem>>, vector<2x8xf32>,
      %c0_106 = arith.constant 0 : index
      %c0_107 = arith.constant 0 : index
      %302 = vector.load %arg20[%c0_106, %c0_107] : memref<2x8xf32, #tpu.memory_space<vmem>>, vector<2x8xf32>
      %303 = vector.shape_cast %267 : vector<2x1xf32> to vector<2x1xf32>
      %304 = vector.broadcast %303 : vector<2x1xf32> to vector<2x8xf32>
      %305 = arith.select %277, %304, %302 : vector<2x8xi1>, vector<2x8xf32>
      %c0_108 = arith.constant 0 : index
      %c0_109 = arith.constant 0 : index
      %306 = vector.load %arg20[%c0_108, %c0_109] : memref<2x8xf32, #tpu.memory_space<vmem>>, vector<2x8xf32>
      tpu.vector_store %arg20[%c0_108, %c0_109], %305 {strides = array<i32>} : memref<2x8xf32, #tpu.memory_space<vmem>>, vector<2x8xf32>,
      %cst_110 = arith.constant 0xFF800000 : f32
      %307 = vector.broadcast %cst_110 : f32 to vector<2x256xf32>
      %308 = arith.select %250, %307, %62 : vector<2x256xi1>, vector<2x256xf32>
      %c0_111 = arith.constant 0 : index
      %c0_112 = arith.constant 0 : index
      %309 = vector.load %arg15[%c0_111, %c0_112] : memref<2x8xf32, #tpu.memory_space<vmem>>, vector<2x8xf32>
      %cst_113 = arith.constant dense<0x7F800000> : vector<2xf32>
      %310 = vector.multi_reduction <minimumf>, %309, %cst_113 [1] : vector<2x8xf32> to vector<2xf32>
      %311 = vector.shape_cast %310 : vector<2xf32> to vector<2x1xf32>
      %cst_114 = arith.constant dense<0xFF800000> : vector<2xf32>
      %312 = vector.multi_reduction <maximumf>, %308, %cst_114 [1] : vector<2x256xf32> to vector<2xf32>
      %313 = vector.shape_cast %312 : vector<2xf32> to vector<2x1xf32>
      %314 = arith.cmpf ogt, %313, %311 : vector<2x1xf32>
      %315 = vector.broadcast %313 : vector<2x1xf32> to vector<2x256xf32>
      %316 = arith.cmpf oeq, %308, %315 : vector<2x256xf32>
      %c256_i32_115 = arith.constant 256 : i32
      %317 = vector.broadcast %c256_i32_115 : i32 to vector<2x256xi32>
      %318 = arith.select %316, %235, %317 : vector<2x256xi1>, vector<2x256xi32>
      %cst_116 = arith.constant dense<2147483647> : vector<2xi32>
      %319 = vector.multi_reduction <minsi>, %318, %cst_116 [1] : vector<2x256xi32> to vector<2xi32>
      %320 = vector.shape_cast %319 : vector<2xi32> to vector<2x1xi32>
      %321 = vector.broadcast %320 : vector<2x1xi32> to vector<2x256xi32>
      %322 = arith.cmpi eq, %235, %321 : vector<2x256xi32>
      %323 = arith.extui %322 : vector<2x256xi1> to vector<2x256xi32>
      %324 = arith.sitofp %323 : vector<2x256xi32> to vector<2x256xf32>
      %325 = arith.mulf %214, %324 : vector<2x256xf32>
      %cst_117 = arith.constant dense<0.000000e+00> : vector<2xf32>
      %326 = vector.multi_reduction <add>, %325, %cst_117 [1] : vector<2x256xf32> to vector<2xf32>
      %327 = vector.shape_cast %326 : vector<2xf32> to vector<2x1xf32>
      %328 = arith.mulf %215, %324 : vector<2x256xf32>
      %cst_118 = arith.constant dense<0.000000e+00> : vector<2xf32>
      %329 = vector.multi_reduction <add>, %328, %cst_118 [1] : vector<2x256xf32> to vector<2xf32>
      %330 = vector.shape_cast %329 : vector<2xf32> to vector<2x1xf32>
      %331 = arith.mulf %216, %324 : vector<2x256xf32>
      %cst_119 = arith.constant dense<0.000000e+00> : vector<2xf32>
      %332 = vector.multi_reduction <add>, %331, %cst_119 [1] : vector<2x256xf32> to vector<2xf32>
      %333 = vector.shape_cast %332 : vector<2xf32> to vector<2x1xf32>
      %334 = arith.mulf %139, %324 : vector<2x256xf32>
      %cst_120 = arith.constant dense<0.000000e+00> : vector<2xf32>
      %335 = vector.multi_reduction <add>, %334, %cst_120 [1] : vector<2x256xf32> to vector<2xf32>
      %336 = vector.shape_cast %335 : vector<2xf32> to vector<2x1xf32>
      %337 = arith.mulf %145, %324 : vector<2x256xf32>
      %cst_121 = arith.constant dense<0.000000e+00> : vector<2xf32>
      %338 = vector.multi_reduction <add>, %337, %cst_121 [1] : vector<2x256xf32> to vector<2xf32>
      %339 = vector.shape_cast %338 : vector<2xf32> to vector<2x1xf32>
      %340 = vector.broadcast %311 : vector<2x1xf32> to vector<2x8xf32>
      %341 = arith.cmpf oeq, %309, %340 : vector<2x8xf32>
      %c8_i32_122 = arith.constant 8 : i32
      %342 = vector.broadcast %c8_i32_122 : i32 to vector<2x8xi32>
      %343 = arith.select %341, %236, %342 : vector<2x8xi1>, vector<2x8xi32>
      %cst_123 = arith.constant dense<2147483647> : vector<2xi32>
      %344 = vector.multi_reduction <minsi>, %343, %cst_123 [1] : vector<2x8xi32> to vector<2xi32>
      %345 = vector.shape_cast %344 : vector<2xi32> to vector<2x1xi32>
      %346 = vector.broadcast %345 : vector<2x1xi32> to vector<2x8xi32>
      %347 = arith.cmpi eq, %236, %346 : vector<2x8xi32>
      %348 = vector.broadcast %314 : vector<2x1xi1> to vector<2x8xi1>
      %349 = arith.andi %347, %348 : vector<2x8xi1>
      %350 = vector.shape_cast %313 : vector<2x1xf32> to vector<2x1xf32>
      %351 = vector.broadcast %350 : vector<2x1xf32> to vector<2x8xf32>
      %352 = arith.select %349, %351, %309 : vector<2x8xi1>, vector<2x8xf32>
      %c0_124 = arith.constant 0 : index
      %c0_125 = arith.constant 0 : index
      %353 = vector.load %arg15[%c0_124, %c0_125] : memref<2x8xf32, #tpu.memory_space<vmem>>, vector<2x8xf32>
      tpu.vector_store %arg15[%c0_124, %c0_125], %352 {strides = array<i32>} : memref<2x8xf32, #tpu.memory_space<vmem>>, vector<2x8xf32>,
      %c0_126 = arith.constant 0 : index
      %c0_127 = arith.constant 0 : index
      %354 = vector.load %arg16[%c0_126, %c0_127] : memref<2x8xf32, #tpu.memory_space<vmem>>, vector<2x8xf32>
      %355 = vector.shape_cast %327 : vector<2x1xf32> to vector<2x1xf32>
      %356 = vector.broadcast %355 : vector<2x1xf32> to vector<2x8xf32>
      %357 = arith.select %349, %356, %354 : vector<2x8xi1>, vector<2x8xf32>
      %c0_128 = arith.constant 0 : index
      %c0_129 = arith.constant 0 : index
      %358 = vector.load %arg16[%c0_128, %c0_129] : memref<2x8xf32, #tpu.memory_space<vmem>>, vector<2x8xf32>
      tpu.vector_store %arg16[%c0_128, %c0_129], %357 {strides = array<i32>} : memref<2x8xf32, #tpu.memory_space<vmem>>, vector<2x8xf32>,
      %c0_130 = arith.constant 0 : index
      %c0_131 = arith.constant 0 : index
      %359 = vector.load %arg17[%c0_130, %c0_131] : memref<2x8xf32, #tpu.memory_space<vmem>>, vector<2x8xf32>
      %360 = vector.shape_cast %330 : vector<2x1xf32> to vector<2x1xf32>
      %361 = vector.broadcast %360 : vector<2x1xf32> to vector<2x8xf32>
      %362 = arith.select %349, %361, %359 : vector<2x8xi1>, vector<2x8xf32>
      %c0_132 = arith.constant 0 : index
      %c0_133 = arith.constant 0 : index
      %363 = vector.load %arg17[%c0_132, %c0_133] : memref<2x8xf32, #tpu.memory_space<vmem>>, vector<2x8xf32>
      tpu.vector_store %arg17[%c0_132, %c0_133], %362 {strides = array<i32>} : memref<2x8xf32, #tpu.memory_space<vmem>>, vector<2x8xf32>,
      %c0_134 = arith.constant 0 : index
      %c0_135 = arith.constant 0 : index
      %364 = vector.load %arg18[%c0_134, %c0_135] : memref<2x8xf32, #tpu.memory_space<vmem>>, vector<2x8xf32>
      %365 = vector.shape_cast %333 : vector<2x1xf32> to vector<2x1xf32>
      %366 = vector.broadcast %365 : vector<2x1xf32> to vector<2x8xf32>
      %367 = arith.select %349, %366, %364 : vector<2x8xi1>, vector<2x8xf32>
      %c0_136 = arith.constant 0 : index
      %c0_137 = arith.constant 0 : index
      %368 = vector.load %arg18[%c0_136, %c0_137] : memref<2x8xf32, #tpu.memory_space<vmem>>, vector<2x8xf32>
      tpu.vector_store %arg18[%c0_136, %c0_137], %367 {strides = array<i32>} : memref<2x8xf32, #tpu.memory_space<vmem>>, vector<2x8xf32>,
      %c0_138 = arith.constant 0 : index
      %c0_139 = arith.constant 0 : index
      %369 = vector.load %arg19[%c0_138, %c0_139] : memref<2x8xf32, #tpu.memory_space<vmem>>, vector<2x8xf32>
      %370 = vector.shape_cast %336 : vector<2x1xf32> to vector<2x1xf32>
      %371 = vector.broadcast %370 : vector<2x1xf32> to vector<2x8xf32>
      %372 = arith.select %349, %371, %369 : vector<2x8xi1>, vector<2x8xf32>
      %c0_140 = arith.constant 0 : index
      %c0_141 = arith.constant 0 : index
      %373 = vector.load %arg19[%c0_140, %c0_141] : memref<2x8xf32, #tpu.memory_space<vmem>>, vector<2x8xf32>
      tpu.vector_store %arg19[%c0_140, %c0_141], %372 {strides = array<i32>} : memref<2x8xf32, #tpu.memory_space<vmem>>, vector<2x8xf32>,
      %c0_142 = arith.constant 0 : index
      %c0_143 = arith.constant 0 : index
      %374 = vector.load %arg20[%c0_142, %c0_143] : memref<2x8xf32, #tpu.memory_space<vmem>>, vector<2x8xf32>
      %375 = vector.shape_cast %339 : vector<2x1xf32> to vector<2x1xf32>
      %376 = vector.broadcast %375 : vector<2x1xf32> to vector<2x8xf32>
      %377 = arith.select %349, %376, %374 : vector<2x8xi1>, vector<2x8xf32>
      %c0_144 = arith.constant 0 : index
      %c0_145 = arith.constant 0 : index
      %378 = vector.load %arg20[%c0_144, %c0_145] : memref<2x8xf32, #tpu.memory_space<vmem>>, vector<2x8xf32>
      tpu.vector_store %arg20[%c0_144, %c0_145], %377 {strides = array<i32>} : memref<2x8xf32, #tpu.memory_space<vmem>>, vector<2x8xf32>,
      %cst_146 = arith.constant 0xFF800000 : f32
      %379 = vector.broadcast %cst_146 : f32 to vector<2x256xf32>
      %380 = arith.select %322, %379, %308 : vector<2x256xi1>, vector<2x256xf32>
      %c0_147 = arith.constant 0 : index
      %c0_148 = arith.constant 0 : index
      %381 = vector.load %arg15[%c0_147, %c0_148] : memref<2x8xf32, #tpu.memory_space<vmem>>, vector<2x8xf32>
      %cst_149 = arith.constant dense<0x7F800000> : vector<2xf32>
      %382 = vector.multi_reduction <minimumf>, %381, %cst_149 [1] : vector<2x8xf32> to vector<2xf32>
      %383 = vector.shape_cast %382 : vector<2xf32> to vector<2x1xf32>
      %cst_150 = arith.constant dense<0xFF800000> : vector<2xf32>
      %384 = vector.multi_reduction <maximumf>, %380, %cst_150 [1] : vector<2x256xf32> to vector<2xf32>
      %385 = vector.shape_cast %384 : vector<2xf32> to vector<2x1xf32>
      %386 = arith.cmpf ogt, %385, %383 : vector<2x1xf32>
      %387 = vector.broadcast %385 : vector<2x1xf32> to vector<2x256xf32>
      %388 = arith.cmpf oeq, %380, %387 : vector<2x256xf32>
      %c256_i32_151 = arith.constant 256 : i32
      %389 = vector.broadcast %c256_i32_151 : i32 to vector<2x256xi32>
      %390 = arith.select %388, %235, %389 : vector<2x256xi1>, vector<2x256xi32>
      %cst_152 = arith.constant dense<2147483647> : vector<2xi32>
      %391 = vector.multi_reduction <minsi>, %390, %cst_152 [1] : vector<2x256xi32> to vector<2xi32>
      %392 = vector.shape_cast %391 : vector<2xi32> to vector<2x1xi32>
      %393 = vector.broadcast %392 : vector<2x1xi32> to vector<2x256xi32>
      %394 = arith.cmpi eq, %235, %393 : vector<2x256xi32>
      %395 = arith.extui %394 : vector<2x256xi1> to vector<2x256xi32>
      %396 = arith.sitofp %395 : vector<2x256xi32> to vector<2x256xf32>
      %397 = arith.mulf %214, %396 : vector<2x256xf32>
      %cst_153 = arith.constant dense<0.000000e+00> : vector<2xf32>
      %398 = vector.multi_reduction <add>, %397, %cst_153 [1] : vector<2x256xf32> to vector<2xf32>
      %399 = vector.shape_cast %398 : vector<2xf32> to vector<2x1xf32>
      %400 = arith.mulf %215, %396 : vector<2x256xf32>
      %cst_154 = arith.constant dense<0.000000e+00> : vector<2xf32>
      %401 = vector.multi_reduction <add>, %400, %cst_154 [1] : vector<2x256xf32> to vector<2xf32>
      %402 = vector.shape_cast %401 : vector<2xf32> to vector<2x1xf32>
      %403 = arith.mulf %216, %396 : vector<2x256xf32>
      %cst_155 = arith.constant dense<0.000000e+00> : vector<2xf32>
      %404 = vector.multi_reduction <add>, %403, %cst_155 [1] : vector<2x256xf32> to vector<2xf32>
      %405 = vector.shape_cast %404 : vector<2xf32> to vector<2x1xf32>
      %406 = arith.mulf %139, %396 : vector<2x256xf32>
      %cst_156 = arith.constant dense<0.000000e+00> : vector<2xf32>
      %407 = vector.multi_reduction <add>, %406, %cst_156 [1] : vector<2x256xf32> to vector<2xf32>
      %408 = vector.shape_cast %407 : vector<2xf32> to vector<2x1xf32>
      %409 = arith.mulf %145, %396 : vector<2x256xf32>
      %cst_157 = arith.constant dense<0.000000e+00> : vector<2xf32>
      %410 = vector.multi_reduction <add>, %409, %cst_157 [1] : vector<2x256xf32> to vector<2xf32>
      %411 = vector.shape_cast %410 : vector<2xf32> to vector<2x1xf32>
      %412 = vector.broadcast %383 : vector<2x1xf32> to vector<2x8xf32>
      %413 = arith.cmpf oeq, %381, %412 : vector<2x8xf32>
      %c8_i32_158 = arith.constant 8 : i32
      %414 = vector.broadcast %c8_i32_158 : i32 to vector<2x8xi32>
      %415 = arith.select %413, %236, %414 : vector<2x8xi1>, vector<2x8xi32>
      %cst_159 = arith.constant dense<2147483647> : vector<2xi32>
      %416 = vector.multi_reduction <minsi>, %415, %cst_159 [1] : vector<2x8xi32> to vector<2xi32>
      %417 = vector.shape_cast %416 : vector<2xi32> to vector<2x1xi32>
      %418 = vector.broadcast %417 : vector<2x1xi32> to vector<2x8xi32>
      %419 = arith.cmpi eq, %236, %418 : vector<2x8xi32>
      %420 = vector.broadcast %386 : vector<2x1xi1> to vector<2x8xi1>
      %421 = arith.andi %419, %420 : vector<2x8xi1>
      %422 = vector.shape_cast %385 : vector<2x1xf32> to vector<2x1xf32>
      %423 = vector.broadcast %422 : vector<2x1xf32> to vector<2x8xf32>
      %424 = arith.select %421, %423, %381 : vector<2x8xi1>, vector<2x8xf32>
      %c0_160 = arith.constant 0 : index
      %c0_161 = arith.constant 0 : index
      %425 = vector.load %arg15[%c0_160, %c0_161] : memref<2x8xf32, #tpu.memory_space<vmem>>, vector<2x8xf32>
      tpu.vector_store %arg15[%c0_160, %c0_161], %424 {strides = array<i32>} : memref<2x8xf32, #tpu.memory_space<vmem>>, vector<2x8xf32>,
      %c0_162 = arith.constant 0 : index
      %c0_163 = arith.constant 0 : index
      %426 = vector.load %arg16[%c0_162, %c0_163] : memref<2x8xf32, #tpu.memory_space<vmem>>, vector<2x8xf32>
      %427 = vector.shape_cast %399 : vector<2x1xf32> to vector<2x1xf32>
      %428 = vector.broadcast %427 : vector<2x1xf32> to vector<2x8xf32>
      %429 = arith.select %421, %428, %426 : vector<2x8xi1>, vector<2x8xf32>
      %c0_164 = arith.constant 0 : index
      %c0_165 = arith.constant 0 : index
      %430 = vector.load %arg16[%c0_164, %c0_165] : memref<2x8xf32, #tpu.memory_space<vmem>>, vector<2x8xf32>
      tpu.vector_store %arg16[%c0_164, %c0_165], %429 {strides = array<i32>} : memref<2x8xf32, #tpu.memory_space<vmem>>, vector<2x8xf32>,
      %c0_166 = arith.constant 0 : index
      %c0_167 = arith.constant 0 : index
      %431 = vector.load %arg17[%c0_166, %c0_167] : memref<2x8xf32, #tpu.memory_space<vmem>>, vector<2x8xf32>
      %432 = vector.shape_cast %402 : vector<2x1xf32> to vector<2x1xf32>
      %433 = vector.broadcast %432 : vector<2x1xf32> to vector<2x8xf32>
      %434 = arith.select %421, %433, %431 : vector<2x8xi1>, vector<2x8xf32>
      %c0_168 = arith.constant 0 : index
      %c0_169 = arith.constant 0 : index
      %435 = vector.load %arg17[%c0_168, %c0_169] : memref<2x8xf32, #tpu.memory_space<vmem>>, vector<2x8xf32>
      tpu.vector_store %arg17[%c0_168, %c0_169], %434 {strides = array<i32>} : memref<2x8xf32, #tpu.memory_space<vmem>>, vector<2x8xf32>,
      %c0_170 = arith.constant 0 : index
      %c0_171 = arith.constant 0 : index
      %436 = vector.load %arg18[%c0_170, %c0_171] : memref<2x8xf32, #tpu.memory_space<vmem>>, vector<2x8xf32>
      %437 = vector.shape_cast %405 : vector<2x1xf32> to vector<2x1xf32>
      %438 = vector.broadcast %437 : vector<2x1xf32> to vector<2x8xf32>
      %439 = arith.select %421, %438, %436 : vector<2x8xi1>, vector<2x8xf32>
      %c0_172 = arith.constant 0 : index
      %c0_173 = arith.constant 0 : index
      %440 = vector.load %arg18[%c0_172, %c0_173] : memref<2x8xf32, #tpu.memory_space<vmem>>, vector<2x8xf32>
      tpu.vector_store %arg18[%c0_172, %c0_173], %439 {strides = array<i32>} : memref<2x8xf32, #tpu.memory_space<vmem>>, vector<2x8xf32>,
      %c0_174 = arith.constant 0 : index
      %c0_175 = arith.constant 0 : index
      %441 = vector.load %arg19[%c0_174, %c0_175] : memref<2x8xf32, #tpu.memory_space<vmem>>, vector<2x8xf32>
      %442 = vector.shape_cast %408 : vector<2x1xf32> to vector<2x1xf32>
      %443 = vector.broadcast %442 : vector<2x1xf32> to vector<2x8xf32>
      %444 = arith.select %421, %443, %441 : vector<2x8xi1>, vector<2x8xf32>
      %c0_176 = arith.constant 0 : index
      %c0_177 = arith.constant 0 : index
      %445 = vector.load %arg19[%c0_176, %c0_177] : memref<2x8xf32, #tpu.memory_space<vmem>>, vector<2x8xf32>
      tpu.vector_store %arg19[%c0_176, %c0_177], %444 {strides = array<i32>} : memref<2x8xf32, #tpu.memory_space<vmem>>, vector<2x8xf32>,
      %c0_178 = arith.constant 0 : index
      %c0_179 = arith.constant 0 : index
      %446 = vector.load %arg20[%c0_178, %c0_179] : memref<2x8xf32, #tpu.memory_space<vmem>>, vector<2x8xf32>
      %447 = vector.shape_cast %411 : vector<2x1xf32> to vector<2x1xf32>
      %448 = vector.broadcast %447 : vector<2x1xf32> to vector<2x8xf32>
      %449 = arith.select %421, %448, %446 : vector<2x8xi1>, vector<2x8xf32>
      %c0_180 = arith.constant 0 : index
      %c0_181 = arith.constant 0 : index
      %450 = vector.load %arg20[%c0_180, %c0_181] : memref<2x8xf32, #tpu.memory_space<vmem>>, vector<2x8xf32>
      tpu.vector_store %arg20[%c0_180, %c0_181], %449 {strides = array<i32>} : memref<2x8xf32, #tpu.memory_space<vmem>>, vector<2x8xf32>,
      %cst_182 = arith.constant 0xFF800000 : f32
      %451 = vector.broadcast %cst_182 : f32 to vector<2x256xf32>
      %452 = arith.select %394, %451, %380 : vector<2x256xi1>, vector<2x256xf32>
      %c0_183 = arith.constant 0 : index
      %c0_184 = arith.constant 0 : index
      %453 = vector.load %arg15[%c0_183, %c0_184] : memref<2x8xf32, #tpu.memory_space<vmem>>, vector<2x8xf32>
      %cst_185 = arith.constant dense<0x7F800000> : vector<2xf32>
      %454 = vector.multi_reduction <minimumf>, %453, %cst_185 [1] : vector<2x8xf32> to vector<2xf32>
      %455 = vector.shape_cast %454 : vector<2xf32> to vector<2x1xf32>
      %cst_186 = arith.constant dense<0xFF800000> : vector<2xf32>
      %456 = vector.multi_reduction <maximumf>, %452, %cst_186 [1] : vector<2x256xf32> to vector<2xf32>
      %457 = vector.shape_cast %456 : vector<2xf32> to vector<2x1xf32>
      %458 = arith.cmpf ogt, %457, %455 : vector<2x1xf32>
      %459 = vector.broadcast %457 : vector<2x1xf32> to vector<2x256xf32>
      %460 = arith.cmpf oeq, %452, %459 : vector<2x256xf32>
      %c256_i32_187 = arith.constant 256 : i32
      %461 = vector.broadcast %c256_i32_187 : i32 to vector<2x256xi32>
      %462 = arith.select %460, %235, %461 : vector<2x256xi1>, vector<2x256xi32>
      %cst_188 = arith.constant dense<2147483647> : vector<2xi32>
      %463 = vector.multi_reduction <minsi>, %462, %cst_188 [1] : vector<2x256xi32> to vector<2xi32>
      %464 = vector.shape_cast %463 : vector<2xi32> to vector<2x1xi32>
      %465 = vector.broadcast %464 : vector<2x1xi32> to vector<2x256xi32>
      %466 = arith.cmpi eq, %235, %465 : vector<2x256xi32>
      %467 = arith.extui %466 : vector<2x256xi1> to vector<2x256xi32>
      %468 = arith.sitofp %467 : vector<2x256xi32> to vector<2x256xf32>
      %469 = arith.mulf %214, %468 : vector<2x256xf32>
      %cst_189 = arith.constant dense<0.000000e+00> : vector<2xf32>
      %470 = vector.multi_reduction <add>, %469, %cst_189 [1] : vector<2x256xf32> to vector<2xf32>
      %471 = vector.shape_cast %470 : vector<2xf32> to vector<2x1xf32>
      %472 = arith.mulf %215, %468 : vector<2x256xf32>
      %cst_190 = arith.constant dense<0.000000e+00> : vector<2xf32>
      %473 = vector.multi_reduction <add>, %472, %cst_190 [1] : vector<2x256xf32> to vector<2xf32>
      %474 = vector.shape_cast %473 : vector<2xf32> to vector<2x1xf32>
      %475 = arith.mulf %216, %468 : vector<2x256xf32>
      %cst_191 = arith.constant dense<0.000000e+00> : vector<2xf32>
      %476 = vector.multi_reduction <add>, %475, %cst_191 [1] : vector<2x256xf32> to vector<2xf32>
      %477 = vector.shape_cast %476 : vector<2xf32> to vector<2x1xf32>
      %478 = arith.mulf %139, %468 : vector<2x256xf32>
      %cst_192 = arith.constant dense<0.000000e+00> : vector<2xf32>
      %479 = vector.multi_reduction <add>, %478, %cst_192 [1] : vector<2x256xf32> to vector<2xf32>
      %480 = vector.shape_cast %479 : vector<2xf32> to vector<2x1xf32>
      %481 = arith.mulf %145, %468 : vector<2x256xf32>
      %cst_193 = arith.constant dense<0.000000e+00> : vector<2xf32>
      %482 = vector.multi_reduction <add>, %481, %cst_193 [1] : vector<2x256xf32> to vector<2xf32>
      %483 = vector.shape_cast %482 : vector<2xf32> to vector<2x1xf32>
      %484 = vector.broadcast %455 : vector<2x1xf32> to vector<2x8xf32>
      %485 = arith.cmpf oeq, %453, %484 : vector<2x8xf32>
      %c8_i32_194 = arith.constant 8 : i32
      %486 = vector.broadcast %c8_i32_194 : i32 to vector<2x8xi32>
      %487 = arith.select %485, %236, %486 : vector<2x8xi1>, vector<2x8xi32>
      %cst_195 = arith.constant dense<2147483647> : vector<2xi32>
      %488 = vector.multi_reduction <minsi>, %487, %cst_195 [1] : vector<2x8xi32> to vector<2xi32>
      %489 = vector.shape_cast %488 : vector<2xi32> to vector<2x1xi32>
      %490 = vector.broadcast %489 : vector<2x1xi32> to vector<2x8xi32>
      %491 = arith.cmpi eq, %236, %490 : vector<2x8xi32>
      %492 = vector.broadcast %458 : vector<2x1xi1> to vector<2x8xi1>
      %493 = arith.andi %491, %492 : vector<2x8xi1>
      %494 = vector.shape_cast %457 : vector<2x1xf32> to vector<2x1xf32>
      %495 = vector.broadcast %494 : vector<2x1xf32> to vector<2x8xf32>
      %496 = arith.select %493, %495, %453 : vector<2x8xi1>, vector<2x8xf32>
      %c0_196 = arith.constant 0 : index
      %c0_197 = arith.constant 0 : index
      %497 = vector.load %arg15[%c0_196, %c0_197] : memref<2x8xf32, #tpu.memory_space<vmem>>, vector<2x8xf32>
      tpu.vector_store %arg15[%c0_196, %c0_197], %496 {strides = array<i32>} : memref<2x8xf32, #tpu.memory_space<vmem>>, vector<2x8xf32>,
      %c0_198 = arith.constant 0 : index
      %c0_199 = arith.constant 0 : index
      %498 = vector.load %arg16[%c0_198, %c0_199] : memref<2x8xf32, #tpu.memory_space<vmem>>, vector<2x8xf32>
      %499 = vector.shape_cast %471 : vector<2x1xf32> to vector<2x1xf32>
      %500 = vector.broadcast %499 : vector<2x1xf32> to vector<2x8xf32>
      %501 = arith.select %493, %500, %498 : vector<2x8xi1>, vector<2x8xf32>
      %c0_200 = arith.constant 0 : index
      %c0_201 = arith.constant 0 : index
      %502 = vector.load %arg16[%c0_200, %c0_201] : memref<2x8xf32, #tpu.memory_space<vmem>>, vector<2x8xf32>
      tpu.vector_store %arg16[%c0_200, %c0_201], %501 {strides = array<i32>} : memref<2x8xf32, #tpu.memory_space<vmem>>, vector<2x8xf32>,
      %c0_202 = arith.constant 0 : index
      %c0_203 = arith.constant 0 : index
      %503 = vector.load %arg17[%c0_202, %c0_203] : memref<2x8xf32, #tpu.memory_space<vmem>>, vector<2x8xf32>
      %504 = vector.shape_cast %474 : vector<2x1xf32> to vector<2x1xf32>
      %505 = vector.broadcast %504 : vector<2x1xf32> to vector<2x8xf32>
      %506 = arith.select %493, %505, %503 : vector<2x8xi1>, vector<2x8xf32>
      %c0_204 = arith.constant 0 : index
      %c0_205 = arith.constant 0 : index
      %507 = vector.load %arg17[%c0_204, %c0_205] : memref<2x8xf32, #tpu.memory_space<vmem>>, vector<2x8xf32>
      tpu.vector_store %arg17[%c0_204, %c0_205], %506 {strides = array<i32>} : memref<2x8xf32, #tpu.memory_space<vmem>>, vector<2x8xf32>,
      %c0_206 = arith.constant 0 : index
      %c0_207 = arith.constant 0 : index
      %508 = vector.load %arg18[%c0_206, %c0_207] : memref<2x8xf32, #tpu.memory_space<vmem>>, vector<2x8xf32>
      %509 = vector.shape_cast %477 : vector<2x1xf32> to vector<2x1xf32>
      %510 = vector.broadcast %509 : vector<2x1xf32> to vector<2x8xf32>
      %511 = arith.select %493, %510, %508 : vector<2x8xi1>, vector<2x8xf32>
      %c0_208 = arith.constant 0 : index
      %c0_209 = arith.constant 0 : index
      %512 = vector.load %arg18[%c0_208, %c0_209] : memref<2x8xf32, #tpu.memory_space<vmem>>, vector<2x8xf32>
      tpu.vector_store %arg18[%c0_208, %c0_209], %511 {strides = array<i32>} : memref<2x8xf32, #tpu.memory_space<vmem>>, vector<2x8xf32>,
      %c0_210 = arith.constant 0 : index
      %c0_211 = arith.constant 0 : index
      %513 = vector.load %arg19[%c0_210, %c0_211] : memref<2x8xf32, #tpu.memory_space<vmem>>, vector<2x8xf32>
      %514 = vector.shape_cast %480 : vector<2x1xf32> to vector<2x1xf32>
      %515 = vector.broadcast %514 : vector<2x1xf32> to vector<2x8xf32>
      %516 = arith.select %493, %515, %513 : vector<2x8xi1>, vector<2x8xf32>
      %c0_212 = arith.constant 0 : index
      %c0_213 = arith.constant 0 : index
      %517 = vector.load %arg19[%c0_212, %c0_213] : memref<2x8xf32, #tpu.memory_space<vmem>>, vector<2x8xf32>
      tpu.vector_store %arg19[%c0_212, %c0_213], %516 {strides = array<i32>} : memref<2x8xf32, #tpu.memory_space<vmem>>, vector<2x8xf32>,
      %c0_214 = arith.constant 0 : index
      %c0_215 = arith.constant 0 : index
      %518 = vector.load %arg20[%c0_214, %c0_215] : memref<2x8xf32, #tpu.memory_space<vmem>>, vector<2x8xf32>
      %519 = vector.shape_cast %483 : vector<2x1xf32> to vector<2x1xf32>
      %520 = vector.broadcast %519 : vector<2x1xf32> to vector<2x8xf32>
      %521 = arith.select %493, %520, %518 : vector<2x8xi1>, vector<2x8xf32>
      %c0_216 = arith.constant 0 : index
      %c0_217 = arith.constant 0 : index
      %522 = vector.load %arg20[%c0_216, %c0_217] : memref<2x8xf32, #tpu.memory_space<vmem>>, vector<2x8xf32>
      tpu.vector_store %arg20[%c0_216, %c0_217], %521 {strides = array<i32>} : memref<2x8xf32, #tpu.memory_space<vmem>>, vector<2x8xf32>,
      %cst_218 = arith.constant 0xFF800000 : f32
      %523 = vector.broadcast %cst_218 : f32 to vector<2x256xf32>
      %524 = arith.select %466, %523, %452 : vector<2x256xi1>, vector<2x256xf32>
      %c0_219 = arith.constant 0 : index
      %c0_220 = arith.constant 0 : index
      %525 = vector.load %arg15[%c0_219, %c0_220] : memref<2x8xf32, #tpu.memory_space<vmem>>, vector<2x8xf32>
      %cst_221 = arith.constant dense<0x7F800000> : vector<2xf32>
      %526 = vector.multi_reduction <minimumf>, %525, %cst_221 [1] : vector<2x8xf32> to vector<2xf32>
      %527 = vector.shape_cast %526 : vector<2xf32> to vector<2x1xf32>
      %cst_222 = arith.constant dense<0xFF800000> : vector<2xf32>
      %528 = vector.multi_reduction <maximumf>, %524, %cst_222 [1] : vector<2x256xf32> to vector<2xf32>
      %529 = vector.shape_cast %528 : vector<2xf32> to vector<2x1xf32>
      %530 = arith.cmpf ogt, %529, %527 : vector<2x1xf32>
      %531 = vector.broadcast %529 : vector<2x1xf32> to vector<2x256xf32>
      %532 = arith.cmpf oeq, %524, %531 : vector<2x256xf32>
      %c256_i32_223 = arith.constant 256 : i32
      %533 = vector.broadcast %c256_i32_223 : i32 to vector<2x256xi32>
      %534 = arith.select %532, %235, %533 : vector<2x256xi1>, vector<2x256xi32>
      %cst_224 = arith.constant dense<2147483647> : vector<2xi32>
      %535 = vector.multi_reduction <minsi>, %534, %cst_224 [1] : vector<2x256xi32> to vector<2xi32>
      %536 = vector.shape_cast %535 : vector<2xi32> to vector<2x1xi32>
      %537 = vector.broadcast %536 : vector<2x1xi32> to vector<2x256xi32>
      %538 = arith.cmpi eq, %235, %537 : vector<2x256xi32>
      %539 = arith.extui %538 : vector<2x256xi1> to vector<2x256xi32>
      %540 = arith.sitofp %539 : vector<2x256xi32> to vector<2x256xf32>
      %541 = arith.mulf %214, %540 : vector<2x256xf32>
      %cst_225 = arith.constant dense<0.000000e+00> : vector<2xf32>
      %542 = vector.multi_reduction <add>, %541, %cst_225 [1] : vector<2x256xf32> to vector<2xf32>
      %543 = vector.shape_cast %542 : vector<2xf32> to vector<2x1xf32>
      %544 = arith.mulf %215, %540 : vector<2x256xf32>
      %cst_226 = arith.constant dense<0.000000e+00> : vector<2xf32>
      %545 = vector.multi_reduction <add>, %544, %cst_226 [1] : vector<2x256xf32> to vector<2xf32>
      %546 = vector.shape_cast %545 : vector<2xf32> to vector<2x1xf32>
      %547 = arith.mulf %216, %540 : vector<2x256xf32>
      %cst_227 = arith.constant dense<0.000000e+00> : vector<2xf32>
      %548 = vector.multi_reduction <add>, %547, %cst_227 [1] : vector<2x256xf32> to vector<2xf32>
      %549 = vector.shape_cast %548 : vector<2xf32> to vector<2x1xf32>
      %550 = arith.mulf %139, %540 : vector<2x256xf32>
      %cst_228 = arith.constant dense<0.000000e+00> : vector<2xf32>
      %551 = vector.multi_reduction <add>, %550, %cst_228 [1] : vector<2x256xf32> to vector<2xf32>
      %552 = vector.shape_cast %551 : vector<2xf32> to vector<2x1xf32>
      %553 = arith.mulf %145, %540 : vector<2x256xf32>
      %cst_229 = arith.constant dense<0.000000e+00> : vector<2xf32>
      %554 = vector.multi_reduction <add>, %553, %cst_229 [1] : vector<2x256xf32> to vector<2xf32>
      %555 = vector.shape_cast %554 : vector<2xf32> to vector<2x1xf32>
      %556 = vector.broadcast %527 : vector<2x1xf32> to vector<2x8xf32>
      %557 = arith.cmpf oeq, %525, %556 : vector<2x8xf32>
      %c8_i32_230 = arith.constant 8 : i32
      %558 = vector.broadcast %c8_i32_230 : i32 to vector<2x8xi32>
      %559 = arith.select %557, %236, %558 : vector<2x8xi1>, vector<2x8xi32>
      %cst_231 = arith.constant dense<2147483647> : vector<2xi32>
      %560 = vector.multi_reduction <minsi>, %559, %cst_231 [1] : vector<2x8xi32> to vector<2xi32>
      %561 = vector.shape_cast %560 : vector<2xi32> to vector<2x1xi32>
      %562 = vector.broadcast %561 : vector<2x1xi32> to vector<2x8xi32>
      %563 = arith.cmpi eq, %236, %562 : vector<2x8xi32>
      %564 = vector.broadcast %530 : vector<2x1xi1> to vector<2x8xi1>
      %565 = arith.andi %563, %564 : vector<2x8xi1>
      %566 = vector.shape_cast %529 : vector<2x1xf32> to vector<2x1xf32>
      %567 = vector.broadcast %566 : vector<2x1xf32> to vector<2x8xf32>
      %568 = arith.select %565, %567, %525 : vector<2x8xi1>, vector<2x8xf32>
      %c0_232 = arith.constant 0 : index
      %c0_233 = arith.constant 0 : index
      %569 = vector.load %arg15[%c0_232, %c0_233] : memref<2x8xf32, #tpu.memory_space<vmem>>, vector<2x8xf32>
      tpu.vector_store %arg15[%c0_232, %c0_233], %568 {strides = array<i32>} : memref<2x8xf32, #tpu.memory_space<vmem>>, vector<2x8xf32>,
      %c0_234 = arith.constant 0 : index
      %c0_235 = arith.constant 0 : index
      %570 = vector.load %arg16[%c0_234, %c0_235] : memref<2x8xf32, #tpu.memory_space<vmem>>, vector<2x8xf32>
      %571 = vector.shape_cast %543 : vector<2x1xf32> to vector<2x1xf32>
      %572 = vector.broadcast %571 : vector<2x1xf32> to vector<2x8xf32>
      %573 = arith.select %565, %572, %570 : vector<2x8xi1>, vector<2x8xf32>
      %c0_236 = arith.constant 0 : index
      %c0_237 = arith.constant 0 : index
      %574 = vector.load %arg16[%c0_236, %c0_237] : memref<2x8xf32, #tpu.memory_space<vmem>>, vector<2x8xf32>
      tpu.vector_store %arg16[%c0_236, %c0_237], %573 {strides = array<i32>} : memref<2x8xf32, #tpu.memory_space<vmem>>, vector<2x8xf32>,
      %c0_238 = arith.constant 0 : index
      %c0_239 = arith.constant 0 : index
      %575 = vector.load %arg17[%c0_238, %c0_239] : memref<2x8xf32, #tpu.memory_space<vmem>>, vector<2x8xf32>
      %576 = vector.shape_cast %546 : vector<2x1xf32> to vector<2x1xf32>
      %577 = vector.broadcast %576 : vector<2x1xf32> to vector<2x8xf32>
      %578 = arith.select %565, %577, %575 : vector<2x8xi1>, vector<2x8xf32>
      %c0_240 = arith.constant 0 : index
      %c0_241 = arith.constant 0 : index
      %579 = vector.load %arg17[%c0_240, %c0_241] : memref<2x8xf32, #tpu.memory_space<vmem>>, vector<2x8xf32>
      tpu.vector_store %arg17[%c0_240, %c0_241], %578 {strides = array<i32>} : memref<2x8xf32, #tpu.memory_space<vmem>>, vector<2x8xf32>,
      %c0_242 = arith.constant 0 : index
      %c0_243 = arith.constant 0 : index
      %580 = vector.load %arg18[%c0_242, %c0_243] : memref<2x8xf32, #tpu.memory_space<vmem>>, vector<2x8xf32>
      %581 = vector.shape_cast %549 : vector<2x1xf32> to vector<2x1xf32>
      %582 = vector.broadcast %581 : vector<2x1xf32> to vector<2x8xf32>
      %583 = arith.select %565, %582, %580 : vector<2x8xi1>, vector<2x8xf32>
      %c0_244 = arith.constant 0 : index
      %c0_245 = arith.constant 0 : index
      %584 = vector.load %arg18[%c0_244, %c0_245] : memref<2x8xf32, #tpu.memory_space<vmem>>, vector<2x8xf32>
      tpu.vector_store %arg18[%c0_244, %c0_245], %583 {strides = array<i32>} : memref<2x8xf32, #tpu.memory_space<vmem>>, vector<2x8xf32>,
      %c0_246 = arith.constant 0 : index
      %c0_247 = arith.constant 0 : index
      %585 = vector.load %arg19[%c0_246, %c0_247] : memref<2x8xf32, #tpu.memory_space<vmem>>, vector<2x8xf32>
      %586 = vector.shape_cast %552 : vector<2x1xf32> to vector<2x1xf32>
      %587 = vector.broadcast %586 : vector<2x1xf32> to vector<2x8xf32>
      %588 = arith.select %565, %587, %585 : vector<2x8xi1>, vector<2x8xf32>
      %c0_248 = arith.constant 0 : index
      %c0_249 = arith.constant 0 : index
      %589 = vector.load %arg19[%c0_248, %c0_249] : memref<2x8xf32, #tpu.memory_space<vmem>>, vector<2x8xf32>
      tpu.vector_store %arg19[%c0_248, %c0_249], %588 {strides = array<i32>} : memref<2x8xf32, #tpu.memory_space<vmem>>, vector<2x8xf32>,
      %c0_250 = arith.constant 0 : index
      %c0_251 = arith.constant 0 : index
      %590 = vector.load %arg20[%c0_250, %c0_251] : memref<2x8xf32, #tpu.memory_space<vmem>>, vector<2x8xf32>
      %591 = vector.shape_cast %555 : vector<2x1xf32> to vector<2x1xf32>
      %592 = vector.broadcast %591 : vector<2x1xf32> to vector<2x8xf32>
      %593 = arith.select %565, %592, %590 : vector<2x8xi1>, vector<2x8xf32>
      %c0_252 = arith.constant 0 : index
      %c0_253 = arith.constant 0 : index
      %594 = vector.load %arg20[%c0_252, %c0_253] : memref<2x8xf32, #tpu.memory_space<vmem>>, vector<2x8xf32>
      tpu.vector_store %arg20[%c0_252, %c0_253], %593 {strides = array<i32>} : memref<2x8xf32, #tpu.memory_space<vmem>>, vector<2x8xf32>,
      %cst_254 = arith.constant 0xFF800000 : f32
      %595 = vector.broadcast %cst_254 : f32 to vector<2x256xf32>
      %596 = arith.select %538, %595, %524 : vector<2x256xi1>, vector<2x256xf32>
      %c0_255 = arith.constant 0 : index
      %c0_256 = arith.constant 0 : index
      %597 = vector.load %arg15[%c0_255, %c0_256] : memref<2x8xf32, #tpu.memory_space<vmem>>, vector<2x8xf32>
      %cst_257 = arith.constant dense<0x7F800000> : vector<2xf32>
      %598 = vector.multi_reduction <minimumf>, %597, %cst_257 [1] : vector<2x8xf32> to vector<2xf32>
      %599 = vector.shape_cast %598 : vector<2xf32> to vector<2x1xf32>
      %cst_258 = arith.constant dense<0xFF800000> : vector<2xf32>
      %600 = vector.multi_reduction <maximumf>, %596, %cst_258 [1] : vector<2x256xf32> to vector<2xf32>
      %601 = vector.shape_cast %600 : vector<2xf32> to vector<2x1xf32>
      %602 = arith.cmpf ogt, %601, %599 : vector<2x1xf32>
      %603 = vector.broadcast %601 : vector<2x1xf32> to vector<2x256xf32>
      %604 = arith.cmpf oeq, %596, %603 : vector<2x256xf32>
      %c256_i32_259 = arith.constant 256 : i32
      %605 = vector.broadcast %c256_i32_259 : i32 to vector<2x256xi32>
      %606 = arith.select %604, %235, %605 : vector<2x256xi1>, vector<2x256xi32>
      %cst_260 = arith.constant dense<2147483647> : vector<2xi32>
      %607 = vector.multi_reduction <minsi>, %606, %cst_260 [1] : vector<2x256xi32> to vector<2xi32>
      %608 = vector.shape_cast %607 : vector<2xi32> to vector<2x1xi32>
      %609 = vector.broadcast %608 : vector<2x1xi32> to vector<2x256xi32>
      %610 = arith.cmpi eq, %235, %609 : vector<2x256xi32>
      %611 = arith.extui %610 : vector<2x256xi1> to vector<2x256xi32>
      %612 = arith.sitofp %611 : vector<2x256xi32> to vector<2x256xf32>
      %613 = arith.mulf %214, %612 : vector<2x256xf32>
      %cst_261 = arith.constant dense<0.000000e+00> : vector<2xf32>
      %614 = vector.multi_reduction <add>, %613, %cst_261 [1] : vector<2x256xf32> to vector<2xf32>
      %615 = vector.shape_cast %614 : vector<2xf32> to vector<2x1xf32>
      %616 = arith.mulf %215, %612 : vector<2x256xf32>
      %cst_262 = arith.constant dense<0.000000e+00> : vector<2xf32>
      %617 = vector.multi_reduction <add>, %616, %cst_262 [1] : vector<2x256xf32> to vector<2xf32>
      %618 = vector.shape_cast %617 : vector<2xf32> to vector<2x1xf32>
      %619 = arith.mulf %216, %612 : vector<2x256xf32>
      %cst_263 = arith.constant dense<0.000000e+00> : vector<2xf32>
      %620 = vector.multi_reduction <add>, %619, %cst_263 [1] : vector<2x256xf32> to vector<2xf32>
      %621 = vector.shape_cast %620 : vector<2xf32> to vector<2x1xf32>
      %622 = arith.mulf %139, %612 : vector<2x256xf32>
      %cst_264 = arith.constant dense<0.000000e+00> : vector<2xf32>
      %623 = vector.multi_reduction <add>, %622, %cst_264 [1] : vector<2x256xf32> to vector<2xf32>
      %624 = vector.shape_cast %623 : vector<2xf32> to vector<2x1xf32>
      %625 = arith.mulf %145, %612 : vector<2x256xf32>
      %cst_265 = arith.constant dense<0.000000e+00> : vector<2xf32>
      %626 = vector.multi_reduction <add>, %625, %cst_265 [1] : vector<2x256xf32> to vector<2xf32>
      %627 = vector.shape_cast %626 : vector<2xf32> to vector<2x1xf32>
      %628 = vector.broadcast %599 : vector<2x1xf32> to vector<2x8xf32>
      %629 = arith.cmpf oeq, %597, %628 : vector<2x8xf32>
      %c8_i32_266 = arith.constant 8 : i32
      %630 = vector.broadcast %c8_i32_266 : i32 to vector<2x8xi32>
      %631 = arith.select %629, %236, %630 : vector<2x8xi1>, vector<2x8xi32>
      %cst_267 = arith.constant dense<2147483647> : vector<2xi32>
      %632 = vector.multi_reduction <minsi>, %631, %cst_267 [1] : vector<2x8xi32> to vector<2xi32>
      %633 = vector.shape_cast %632 : vector<2xi32> to vector<2x1xi32>
      %634 = vector.broadcast %633 : vector<2x1xi32> to vector<2x8xi32>
      %635 = arith.cmpi eq, %236, %634 : vector<2x8xi32>
      %636 = vector.broadcast %602 : vector<2x1xi1> to vector<2x8xi1>
      %637 = arith.andi %635, %636 : vector<2x8xi1>
      %638 = vector.shape_cast %601 : vector<2x1xf32> to vector<2x1xf32>
      %639 = vector.broadcast %638 : vector<2x1xf32> to vector<2x8xf32>
      %640 = arith.select %637, %639, %597 : vector<2x8xi1>, vector<2x8xf32>
      %c0_268 = arith.constant 0 : index
      %c0_269 = arith.constant 0 : index
      %641 = vector.load %arg15[%c0_268, %c0_269] : memref<2x8xf32, #tpu.memory_space<vmem>>, vector<2x8xf32>
      tpu.vector_store %arg15[%c0_268, %c0_269], %640 {strides = array<i32>} : memref<2x8xf32, #tpu.memory_space<vmem>>, vector<2x8xf32>,
      %c0_270 = arith.constant 0 : index
      %c0_271 = arith.constant 0 : index
      %642 = vector.load %arg16[%c0_270, %c0_271] : memref<2x8xf32, #tpu.memory_space<vmem>>, vector<2x8xf32>
      %643 = vector.shape_cast %615 : vector<2x1xf32> to vector<2x1xf32>
      %644 = vector.broadcast %643 : vector<2x1xf32> to vector<2x8xf32>
      %645 = arith.select %637, %644, %642 : vector<2x8xi1>, vector<2x8xf32>
      %c0_272 = arith.constant 0 : index
      %c0_273 = arith.constant 0 : index
      %646 = vector.load %arg16[%c0_272, %c0_273] : memref<2x8xf32, #tpu.memory_space<vmem>>, vector<2x8xf32>
      tpu.vector_store %arg16[%c0_272, %c0_273], %645 {strides = array<i32>} : memref<2x8xf32, #tpu.memory_space<vmem>>, vector<2x8xf32>,
      %c0_274 = arith.constant 0 : index
      %c0_275 = arith.constant 0 : index
      %647 = vector.load %arg17[%c0_274, %c0_275] : memref<2x8xf32, #tpu.memory_space<vmem>>, vector<2x8xf32>
      %648 = vector.shape_cast %618 : vector<2x1xf32> to vector<2x1xf32>
      %649 = vector.broadcast %648 : vector<2x1xf32> to vector<2x8xf32>
      %650 = arith.select %637, %649, %647 : vector<2x8xi1>, vector<2x8xf32>
      %c0_276 = arith.constant 0 : index
      %c0_277 = arith.constant 0 : index
      %651 = vector.load %arg17[%c0_276, %c0_277] : memref<2x8xf32, #tpu.memory_space<vmem>>, vector<2x8xf32>
      tpu.vector_store %arg17[%c0_276, %c0_277], %650 {strides = array<i32>} : memref<2x8xf32, #tpu.memory_space<vmem>>, vector<2x8xf32>,
      %c0_278 = arith.constant 0 : index
      %c0_279 = arith.constant 0 : index
      %652 = vector.load %arg18[%c0_278, %c0_279] : memref<2x8xf32, #tpu.memory_space<vmem>>, vector<2x8xf32>
      %653 = vector.shape_cast %621 : vector<2x1xf32> to vector<2x1xf32>
      %654 = vector.broadcast %653 : vector<2x1xf32> to vector<2x8xf32>
      %655 = arith.select %637, %654, %652 : vector<2x8xi1>, vector<2x8xf32>
      %c0_280 = arith.constant 0 : index
      %c0_281 = arith.constant 0 : index
      %656 = vector.load %arg18[%c0_280, %c0_281] : memref<2x8xf32, #tpu.memory_space<vmem>>, vector<2x8xf32>
      tpu.vector_store %arg18[%c0_280, %c0_281], %655 {strides = array<i32>} : memref<2x8xf32, #tpu.memory_space<vmem>>, vector<2x8xf32>,
      %c0_282 = arith.constant 0 : index
      %c0_283 = arith.constant 0 : index
      %657 = vector.load %arg19[%c0_282, %c0_283] : memref<2x8xf32, #tpu.memory_space<vmem>>, vector<2x8xf32>
      %658 = vector.shape_cast %624 : vector<2x1xf32> to vector<2x1xf32>
      %659 = vector.broadcast %658 : vector<2x1xf32> to vector<2x8xf32>
      %660 = arith.select %637, %659, %657 : vector<2x8xi1>, vector<2x8xf32>
      %c0_284 = arith.constant 0 : index
      %c0_285 = arith.constant 0 : index
      %661 = vector.load %arg19[%c0_284, %c0_285] : memref<2x8xf32, #tpu.memory_space<vmem>>, vector<2x8xf32>
      tpu.vector_store %arg19[%c0_284, %c0_285], %660 {strides = array<i32>} : memref<2x8xf32, #tpu.memory_space<vmem>>, vector<2x8xf32>,
      %c0_286 = arith.constant 0 : index
      %c0_287 = arith.constant 0 : index
      %662 = vector.load %arg20[%c0_286, %c0_287] : memref<2x8xf32, #tpu.memory_space<vmem>>, vector<2x8xf32>
      %663 = vector.shape_cast %627 : vector<2x1xf32> to vector<2x1xf32>
      %664 = vector.broadcast %663 : vector<2x1xf32> to vector<2x8xf32>
      %665 = arith.select %637, %664, %662 : vector<2x8xi1>, vector<2x8xf32>
      %c0_288 = arith.constant 0 : index
      %c0_289 = arith.constant 0 : index
      %666 = vector.load %arg20[%c0_288, %c0_289] : memref<2x8xf32, #tpu.memory_space<vmem>>, vector<2x8xf32>
      tpu.vector_store %arg20[%c0_288, %c0_289], %665 {strides = array<i32>} : memref<2x8xf32, #tpu.memory_space<vmem>>, vector<2x8xf32>,
      %cst_290 = arith.constant 0xFF800000 : f32
      %667 = vector.broadcast %cst_290 : f32 to vector<2x256xf32>
      %668 = arith.select %610, %667, %596 : vector<2x256xi1>, vector<2x256xf32>
      %c0_291 = arith.constant 0 : index
      %c0_292 = arith.constant 0 : index
      %669 = vector.load %arg15[%c0_291, %c0_292] : memref<2x8xf32, #tpu.memory_space<vmem>>, vector<2x8xf32>
      %cst_293 = arith.constant dense<0x7F800000> : vector<2xf32>
      %670 = vector.multi_reduction <minimumf>, %669, %cst_293 [1] : vector<2x8xf32> to vector<2xf32>
      %671 = vector.shape_cast %670 : vector<2xf32> to vector<2x1xf32>
      %cst_294 = arith.constant dense<0xFF800000> : vector<2xf32>
      %672 = vector.multi_reduction <maximumf>, %668, %cst_294 [1] : vector<2x256xf32> to vector<2xf32>
      %673 = vector.shape_cast %672 : vector<2xf32> to vector<2x1xf32>
      %674 = arith.cmpf ogt, %673, %671 : vector<2x1xf32>
      %675 = vector.broadcast %673 : vector<2x1xf32> to vector<2x256xf32>
      %676 = arith.cmpf oeq, %668, %675 : vector<2x256xf32>
      %c256_i32_295 = arith.constant 256 : i32
      %677 = vector.broadcast %c256_i32_295 : i32 to vector<2x256xi32>
      %678 = arith.select %676, %235, %677 : vector<2x256xi1>, vector<2x256xi32>
      %cst_296 = arith.constant dense<2147483647> : vector<2xi32>
      %679 = vector.multi_reduction <minsi>, %678, %cst_296 [1] : vector<2x256xi32> to vector<2xi32>
      %680 = vector.shape_cast %679 : vector<2xi32> to vector<2x1xi32>
      %681 = vector.broadcast %680 : vector<2x1xi32> to vector<2x256xi32>
      %682 = arith.cmpi eq, %235, %681 : vector<2x256xi32>
      %683 = arith.extui %682 : vector<2x256xi1> to vector<2x256xi32>
      %684 = arith.sitofp %683 : vector<2x256xi32> to vector<2x256xf32>
      %685 = arith.mulf %214, %684 : vector<2x256xf32>
      %cst_297 = arith.constant dense<0.000000e+00> : vector<2xf32>
      %686 = vector.multi_reduction <add>, %685, %cst_297 [1] : vector<2x256xf32> to vector<2xf32>
      %687 = vector.shape_cast %686 : vector<2xf32> to vector<2x1xf32>
      %688 = arith.mulf %215, %684 : vector<2x256xf32>
      %cst_298 = arith.constant dense<0.000000e+00> : vector<2xf32>
      %689 = vector.multi_reduction <add>, %688, %cst_298 [1] : vector<2x256xf32> to vector<2xf32>
      %690 = vector.shape_cast %689 : vector<2xf32> to vector<2x1xf32>
      %691 = arith.mulf %216, %684 : vector<2x256xf32>
      %cst_299 = arith.constant dense<0.000000e+00> : vector<2xf32>
      %692 = vector.multi_reduction <add>, %691, %cst_299 [1] : vector<2x256xf32> to vector<2xf32>
      %693 = vector.shape_cast %692 : vector<2xf32> to vector<2x1xf32>
      %694 = arith.mulf %139, %684 : vector<2x256xf32>
      %cst_300 = arith.constant dense<0.000000e+00> : vector<2xf32>
      %695 = vector.multi_reduction <add>, %694, %cst_300 [1] : vector<2x256xf32> to vector<2xf32>
      %696 = vector.shape_cast %695 : vector<2xf32> to vector<2x1xf32>
      %697 = arith.mulf %145, %684 : vector<2x256xf32>
      %cst_301 = arith.constant dense<0.000000e+00> : vector<2xf32>
      %698 = vector.multi_reduction <add>, %697, %cst_301 [1] : vector<2x256xf32> to vector<2xf32>
      %699 = vector.shape_cast %698 : vector<2xf32> to vector<2x1xf32>
      %700 = vector.broadcast %671 : vector<2x1xf32> to vector<2x8xf32>
      %701 = arith.cmpf oeq, %669, %700 : vector<2x8xf32>
      %c8_i32_302 = arith.constant 8 : i32
      %702 = vector.broadcast %c8_i32_302 : i32 to vector<2x8xi32>
      %703 = arith.select %701, %236, %702 : vector<2x8xi1>, vector<2x8xi32>
      %cst_303 = arith.constant dense<2147483647> : vector<2xi32>
      %704 = vector.multi_reduction <minsi>, %703, %cst_303 [1] : vector<2x8xi32> to vector<2xi32>
      %705 = vector.shape_cast %704 : vector<2xi32> to vector<2x1xi32>
      %706 = vector.broadcast %705 : vector<2x1xi32> to vector<2x8xi32>
      %707 = arith.cmpi eq, %236, %706 : vector<2x8xi32>
      %708 = vector.broadcast %674 : vector<2x1xi1> to vector<2x8xi1>
      %709 = arith.andi %707, %708 : vector<2x8xi1>
      %710 = vector.shape_cast %673 : vector<2x1xf32> to vector<2x1xf32>
      %711 = vector.broadcast %710 : vector<2x1xf32> to vector<2x8xf32>
      %712 = arith.select %709, %711, %669 : vector<2x8xi1>, vector<2x8xf32>
      %c0_304 = arith.constant 0 : index
      %c0_305 = arith.constant 0 : index
      %713 = vector.load %arg15[%c0_304, %c0_305] : memref<2x8xf32, #tpu.memory_space<vmem>>, vector<2x8xf32>
      tpu.vector_store %arg15[%c0_304, %c0_305], %712 {strides = array<i32>} : memref<2x8xf32, #tpu.memory_space<vmem>>, vector<2x8xf32>,
      %c0_306 = arith.constant 0 : index
      %c0_307 = arith.constant 0 : index
      %714 = vector.load %arg16[%c0_306, %c0_307] : memref<2x8xf32, #tpu.memory_space<vmem>>, vector<2x8xf32>
      %715 = vector.shape_cast %687 : vector<2x1xf32> to vector<2x1xf32>
      %716 = vector.broadcast %715 : vector<2x1xf32> to vector<2x8xf32>
      %717 = arith.select %709, %716, %714 : vector<2x8xi1>, vector<2x8xf32>
      %c0_308 = arith.constant 0 : index
      %c0_309 = arith.constant 0 : index
      %718 = vector.load %arg16[%c0_308, %c0_309] : memref<2x8xf32, #tpu.memory_space<vmem>>, vector<2x8xf32>
      tpu.vector_store %arg16[%c0_308, %c0_309], %717 {strides = array<i32>} : memref<2x8xf32, #tpu.memory_space<vmem>>, vector<2x8xf32>,
      %c0_310 = arith.constant 0 : index
      %c0_311 = arith.constant 0 : index
      %719 = vector.load %arg17[%c0_310, %c0_311] : memref<2x8xf32, #tpu.memory_space<vmem>>, vector<2x8xf32>
      %720 = vector.shape_cast %690 : vector<2x1xf32> to vector<2x1xf32>
      %721 = vector.broadcast %720 : vector<2x1xf32> to vector<2x8xf32>
      %722 = arith.select %709, %721, %719 : vector<2x8xi1>, vector<2x8xf32>
      %c0_312 = arith.constant 0 : index
      %c0_313 = arith.constant 0 : index
      %723 = vector.load %arg17[%c0_312, %c0_313] : memref<2x8xf32, #tpu.memory_space<vmem>>, vector<2x8xf32>
      tpu.vector_store %arg17[%c0_312, %c0_313], %722 {strides = array<i32>} : memref<2x8xf32, #tpu.memory_space<vmem>>, vector<2x8xf32>,
      %c0_314 = arith.constant 0 : index
      %c0_315 = arith.constant 0 : index
      %724 = vector.load %arg18[%c0_314, %c0_315] : memref<2x8xf32, #tpu.memory_space<vmem>>, vector<2x8xf32>
      %725 = vector.shape_cast %693 : vector<2x1xf32> to vector<2x1xf32>
      %726 = vector.broadcast %725 : vector<2x1xf32> to vector<2x8xf32>
      %727 = arith.select %709, %726, %724 : vector<2x8xi1>, vector<2x8xf32>
      %c0_316 = arith.constant 0 : index
      %c0_317 = arith.constant 0 : index
      %728 = vector.load %arg18[%c0_316, %c0_317] : memref<2x8xf32, #tpu.memory_space<vmem>>, vector<2x8xf32>
      tpu.vector_store %arg18[%c0_316, %c0_317], %727 {strides = array<i32>} : memref<2x8xf32, #tpu.memory_space<vmem>>, vector<2x8xf32>,
      %c0_318 = arith.constant 0 : index
      %c0_319 = arith.constant 0 : index
      %729 = vector.load %arg19[%c0_318, %c0_319] : memref<2x8xf32, #tpu.memory_space<vmem>>, vector<2x8xf32>
      %730 = vector.shape_cast %696 : vector<2x1xf32> to vector<2x1xf32>
      %731 = vector.broadcast %730 : vector<2x1xf32> to vector<2x8xf32>
      %732 = arith.select %709, %731, %729 : vector<2x8xi1>, vector<2x8xf32>
      %c0_320 = arith.constant 0 : index
      %c0_321 = arith.constant 0 : index
      %733 = vector.load %arg19[%c0_320, %c0_321] : memref<2x8xf32, #tpu.memory_space<vmem>>, vector<2x8xf32>
      tpu.vector_store %arg19[%c0_320, %c0_321], %732 {strides = array<i32>} : memref<2x8xf32, #tpu.memory_space<vmem>>, vector<2x8xf32>,
      %c0_322 = arith.constant 0 : index
      %c0_323 = arith.constant 0 : index
      %734 = vector.load %arg20[%c0_322, %c0_323] : memref<2x8xf32, #tpu.memory_space<vmem>>, vector<2x8xf32>
      %735 = vector.shape_cast %699 : vector<2x1xf32> to vector<2x1xf32>
      %736 = vector.broadcast %735 : vector<2x1xf32> to vector<2x8xf32>
      %737 = arith.select %709, %736, %734 : vector<2x8xi1>, vector<2x8xf32>
      %c0_324 = arith.constant 0 : index
      %c0_325 = arith.constant 0 : index
      %738 = vector.load %arg20[%c0_324, %c0_325] : memref<2x8xf32, #tpu.memory_space<vmem>>, vector<2x8xf32>
      tpu.vector_store %arg20[%c0_324, %c0_325], %737 {strides = array<i32>} : memref<2x8xf32, #tpu.memory_space<vmem>>, vector<2x8xf32>,
      %cst_326 = arith.constant 0xFF800000 : f32
      %739 = vector.broadcast %cst_326 : f32 to vector<2x256xf32>
      %740 = arith.select %682, %739, %668 : vector<2x256xi1>, vector<2x256xf32>
      %c0_327 = arith.constant 0 : index
      %c0_328 = arith.constant 0 : index
      %741 = vector.load %arg15[%c0_327, %c0_328] : memref<2x8xf32, #tpu.memory_space<vmem>>, vector<2x8xf32>
      %cst_329 = arith.constant dense<0x7F800000> : vector<2xf32>
      %742 = vector.multi_reduction <minimumf>, %741, %cst_329 [1] : vector<2x8xf32> to vector<2xf32>
      %743 = vector.shape_cast %742 : vector<2xf32> to vector<2x1xf32>
      %cst_330 = arith.constant dense<0xFF800000> : vector<2xf32>
      %744 = vector.multi_reduction <maximumf>, %740, %cst_330 [1] : vector<2x256xf32> to vector<2xf32>
      %745 = vector.shape_cast %744 : vector<2xf32> to vector<2x1xf32>
      %746 = arith.cmpf ogt, %745, %743 : vector<2x1xf32>
      %747 = vector.broadcast %745 : vector<2x1xf32> to vector<2x256xf32>
      %748 = arith.cmpf oeq, %740, %747 : vector<2x256xf32>
      %c256_i32_331 = arith.constant 256 : i32
      %749 = vector.broadcast %c256_i32_331 : i32 to vector<2x256xi32>
      %750 = arith.select %748, %235, %749 : vector<2x256xi1>, vector<2x256xi32>
      %cst_332 = arith.constant dense<2147483647> : vector<2xi32>
      %751 = vector.multi_reduction <minsi>, %750, %cst_332 [1] : vector<2x256xi32> to vector<2xi32>
      %752 = vector.shape_cast %751 : vector<2xi32> to vector<2x1xi32>
      %753 = vector.broadcast %752 : vector<2x1xi32> to vector<2x256xi32>
      %754 = arith.cmpi eq, %235, %753 : vector<2x256xi32>
      %755 = arith.extui %754 : vector<2x256xi1> to vector<2x256xi32>
      %756 = arith.sitofp %755 : vector<2x256xi32> to vector<2x256xf32>
      %757 = arith.mulf %214, %756 : vector<2x256xf32>
      %cst_333 = arith.constant dense<0.000000e+00> : vector<2xf32>
      %758 = vector.multi_reduction <add>, %757, %cst_333 [1] : vector<2x256xf32> to vector<2xf32>
      %759 = vector.shape_cast %758 : vector<2xf32> to vector<2x1xf32>
      %760 = arith.mulf %215, %756 : vector<2x256xf32>
      %cst_334 = arith.constant dense<0.000000e+00> : vector<2xf32>
      %761 = vector.multi_reduction <add>, %760, %cst_334 [1] : vector<2x256xf32> to vector<2xf32>
      %762 = vector.shape_cast %761 : vector<2xf32> to vector<2x1xf32>
      %763 = arith.mulf %216, %756 : vector<2x256xf32>
      %cst_335 = arith.constant dense<0.000000e+00> : vector<2xf32>
      %764 = vector.multi_reduction <add>, %763, %cst_335 [1] : vector<2x256xf32> to vector<2xf32>
      %765 = vector.shape_cast %764 : vector<2xf32> to vector<2x1xf32>
      %766 = arith.mulf %139, %756 : vector<2x256xf32>
      %cst_336 = arith.constant dense<0.000000e+00> : vector<2xf32>
      %767 = vector.multi_reduction <add>, %766, %cst_336 [1] : vector<2x256xf32> to vector<2xf32>
      %768 = vector.shape_cast %767 : vector<2xf32> to vector<2x1xf32>
      %769 = arith.mulf %145, %756 : vector<2x256xf32>
      %cst_337 = arith.constant dense<0.000000e+00> : vector<2xf32>
      %770 = vector.multi_reduction <add>, %769, %cst_337 [1] : vector<2x256xf32> to vector<2xf32>
      %771 = vector.shape_cast %770 : vector<2xf32> to vector<2x1xf32>
      %772 = vector.broadcast %743 : vector<2x1xf32> to vector<2x8xf32>
      %773 = arith.cmpf oeq, %741, %772 : vector<2x8xf32>
      %c8_i32_338 = arith.constant 8 : i32
      %774 = vector.broadcast %c8_i32_338 : i32 to vector<2x8xi32>
      %775 = arith.select %773, %236, %774 : vector<2x8xi1>, vector<2x8xi32>
      %cst_339 = arith.constant dense<2147483647> : vector<2xi32>
      %776 = vector.multi_reduction <minsi>, %775, %cst_339 [1] : vector<2x8xi32> to vector<2xi32>
      %777 = vector.shape_cast %776 : vector<2xi32> to vector<2x1xi32>
      %778 = vector.broadcast %777 : vector<2x1xi32> to vector<2x8xi32>
      %779 = arith.cmpi eq, %236, %778 : vector<2x8xi32>
      %780 = vector.broadcast %746 : vector<2x1xi1> to vector<2x8xi1>
      %781 = arith.andi %779, %780 : vector<2x8xi1>
      %782 = vector.shape_cast %745 : vector<2x1xf32> to vector<2x1xf32>
      %783 = vector.broadcast %782 : vector<2x1xf32> to vector<2x8xf32>
      %784 = arith.select %781, %783, %741 : vector<2x8xi1>, vector<2x8xf32>
      %c0_340 = arith.constant 0 : index
      %c0_341 = arith.constant 0 : index
      %785 = vector.load %arg15[%c0_340, %c0_341] : memref<2x8xf32, #tpu.memory_space<vmem>>, vector<2x8xf32>
      tpu.vector_store %arg15[%c0_340, %c0_341], %784 {strides = array<i32>} : memref<2x8xf32, #tpu.memory_space<vmem>>, vector<2x8xf32>,
      %c0_342 = arith.constant 0 : index
      %c0_343 = arith.constant 0 : index
      %786 = vector.load %arg16[%c0_342, %c0_343] : memref<2x8xf32, #tpu.memory_space<vmem>>, vector<2x8xf32>
      %787 = vector.shape_cast %759 : vector<2x1xf32> to vector<2x1xf32>
      %788 = vector.broadcast %787 : vector<2x1xf32> to vector<2x8xf32>
      %789 = arith.select %781, %788, %786 : vector<2x8xi1>, vector<2x8xf32>
      %c0_344 = arith.constant 0 : index
      %c0_345 = arith.constant 0 : index
      %790 = vector.load %arg16[%c0_344, %c0_345] : memref<2x8xf32, #tpu.memory_space<vmem>>, vector<2x8xf32>
      tpu.vector_store %arg16[%c0_344, %c0_345], %789 {strides = array<i32>} : memref<2x8xf32, #tpu.memory_space<vmem>>, vector<2x8xf32>,
      %c0_346 = arith.constant 0 : index
      %c0_347 = arith.constant 0 : index
      %791 = vector.load %arg17[%c0_346, %c0_347] : memref<2x8xf32, #tpu.memory_space<vmem>>, vector<2x8xf32>
      %792 = vector.shape_cast %762 : vector<2x1xf32> to vector<2x1xf32>
      %793 = vector.broadcast %792 : vector<2x1xf32> to vector<2x8xf32>
      %794 = arith.select %781, %793, %791 : vector<2x8xi1>, vector<2x8xf32>
      %c0_348 = arith.constant 0 : index
      %c0_349 = arith.constant 0 : index
      %795 = vector.load %arg17[%c0_348, %c0_349] : memref<2x8xf32, #tpu.memory_space<vmem>>, vector<2x8xf32>
      tpu.vector_store %arg17[%c0_348, %c0_349], %794 {strides = array<i32>} : memref<2x8xf32, #tpu.memory_space<vmem>>, vector<2x8xf32>,
      %c0_350 = arith.constant 0 : index
      %c0_351 = arith.constant 0 : index
      %796 = vector.load %arg18[%c0_350, %c0_351] : memref<2x8xf32, #tpu.memory_space<vmem>>, vector<2x8xf32>
      %797 = vector.shape_cast %765 : vector<2x1xf32> to vector<2x1xf32>
      %798 = vector.broadcast %797 : vector<2x1xf32> to vector<2x8xf32>
      %799 = arith.select %781, %798, %796 : vector<2x8xi1>, vector<2x8xf32>
      %c0_352 = arith.constant 0 : index
      %c0_353 = arith.constant 0 : index
      %800 = vector.load %arg18[%c0_352, %c0_353] : memref<2x8xf32, #tpu.memory_space<vmem>>, vector<2x8xf32>
      tpu.vector_store %arg18[%c0_352, %c0_353], %799 {strides = array<i32>} : memref<2x8xf32, #tpu.memory_space<vmem>>, vector<2x8xf32>,
      %c0_354 = arith.constant 0 : index
      %c0_355 = arith.constant 0 : index
      %801 = vector.load %arg19[%c0_354, %c0_355] : memref<2x8xf32, #tpu.memory_space<vmem>>, vector<2x8xf32>
      %802 = vector.shape_cast %768 : vector<2x1xf32> to vector<2x1xf32>
      %803 = vector.broadcast %802 : vector<2x1xf32> to vector<2x8xf32>
      %804 = arith.select %781, %803, %801 : vector<2x8xi1>, vector<2x8xf32>
      %c0_356 = arith.constant 0 : index
      %c0_357 = arith.constant 0 : index
      %805 = vector.load %arg19[%c0_356, %c0_357] : memref<2x8xf32, #tpu.memory_space<vmem>>, vector<2x8xf32>
      tpu.vector_store %arg19[%c0_356, %c0_357], %804 {strides = array<i32>} : memref<2x8xf32, #tpu.memory_space<vmem>>, vector<2x8xf32>,
      %c0_358 = arith.constant 0 : index
      %c0_359 = arith.constant 0 : index
      %806 = vector.load %arg20[%c0_358, %c0_359] : memref<2x8xf32, #tpu.memory_space<vmem>>, vector<2x8xf32>
      %807 = vector.shape_cast %771 : vector<2x1xf32> to vector<2x1xf32>
      %808 = vector.broadcast %807 : vector<2x1xf32> to vector<2x8xf32>
      %809 = arith.select %781, %808, %806 : vector<2x8xi1>, vector<2x8xf32>
      %c0_360 = arith.constant 0 : index
      %c0_361 = arith.constant 0 : index
      %810 = vector.load %arg20[%c0_360, %c0_361] : memref<2x8xf32, #tpu.memory_space<vmem>>, vector<2x8xf32>
      tpu.vector_store %arg20[%c0_360, %c0_361], %809 {strides = array<i32>} : memref<2x8xf32, #tpu.memory_space<vmem>>, vector<2x8xf32>,
    } else {
    }
    %c3_i32 = arith.constant 3 : i32
    %232 = arith.cmpi eq, %arg0, %c3_i32 : i32
    %233 = arith.extui %232 : i1 to i32
    %c0_i32_76 = arith.constant 0 : i32
    %234 = arith.cmpi ne, %233, %c0_i32_76 : i32
    scf.if %234 {
      %c6_77 = arith.constant 6 : index
      %235 = memref.load %arg14[%c6_77] : memref<9xf32, #tpu.memory_space<smem>>
      %cst_78 = arith.constant 1.000000e+00 : f32
      %236 = arith.maximumf %235, %cst_78 : f32
      %c7_79 = arith.constant 7 : index
      %237 = memref.load %arg14[%c7_79] : memref<9xf32, #tpu.memory_space<smem>>
      %cst_80 = arith.constant 1.000000e+00 : f32
      %238 = arith.maximumf %237, %cst_80 : f32
      %c8_81 = arith.constant 8 : index
      %239 = memref.load %arg14[%c8_81] : memref<9xf32, #tpu.memory_space<smem>>
      %cst_82 = arith.constant 1.000000e+00 : f32
      %240 = arith.maximumf %239, %cst_82 : f32
      %c1_83 = arith.constant 1 : index
      %241 = memref.load %arg14[%c1_83] : memref<9xf32, #tpu.memory_space<smem>>
      %c0_84 = arith.constant 0 : index
      %c0_85 = arith.constant 0 : index
      %242 = vector.load %arg16[%c0_84, %c0_85] : memref<2x8xf32, #tpu.memory_space<vmem>>, vector<2x8xf32>
      %243 = vector.shape_cast %242 : vector<2x8xf32> to vector<1x2x8xf32>
      %cst_86 = arith.constant dense<0.000000e+00> : vector<1xf32>
      %244 = vector.multi_reduction <add>, %243, %cst_86 [1, 2] : vector<1x2x8xf32> to vector<1xf32>
      %245 = vector.shape_cast %244 : vector<1xf32> to vector<1x1x1xf32>
      %246 = vector.extract %245[0, 0, 0] : f32 from vector<1x1x1xf32>
      %247 = arith.subf %241, %246 : f32
      %c2_87 = arith.constant 2 : index
      %248 = memref.load %arg14[%c2_87] : memref<9xf32, #tpu.memory_space<smem>>
      %c0_88 = arith.constant 0 : index
      %c0_89 = arith.constant 0 : index
      %249 = vector.load %arg17[%c0_88, %c0_89] : memref<2x8xf32, #tpu.memory_space<vmem>>, vector<2x8xf32>
      %250 = vector.shape_cast %249 : vector<2x8xf32> to vector<1x2x8xf32>
      %cst_90 = arith.constant dense<0.000000e+00> : vector<1xf32>
      %251 = vector.multi_reduction <add>, %250, %cst_90 [1, 2] : vector<1x2x8xf32> to vector<1xf32>
      %252 = vector.shape_cast %251 : vector<1xf32> to vector<1x1x1xf32>
      %253 = vector.extract %252[0, 0, 0] : f32 from vector<1x1x1xf32>
      %254 = arith.subf %248, %253 : f32
      %c3_91 = arith.constant 3 : index
      %255 = memref.load %arg14[%c3_91] : memref<9xf32, #tpu.memory_space<smem>>
      %c0_92 = arith.constant 0 : index
      %c0_93 = arith.constant 0 : index
      %256 = vector.load %arg18[%c0_92, %c0_93] : memref<2x8xf32, #tpu.memory_space<vmem>>, vector<2x8xf32>
      %257 = vector.shape_cast %256 : vector<2x8xf32> to vector<1x2x8xf32>
      %cst_94 = arith.constant dense<0.000000e+00> : vector<1xf32>
      %258 = vector.multi_reduction <add>, %257, %cst_94 [1, 2] : vector<1x2x8xf32> to vector<1xf32>
      %259 = vector.shape_cast %258 : vector<1xf32> to vector<1x1x1xf32>
      %260 = vector.extract %259[0, 0, 0] : f32 from vector<1x1x1xf32>
      %261 = arith.subf %255, %260 : f32
      %c4_95 = arith.constant 4 : index
      %262 = memref.load %arg14[%c4_95] : memref<9xf32, #tpu.memory_space<smem>>
      %c0_96 = arith.constant 0 : index
      %c0_97 = arith.constant 0 : index
      %263 = vector.load %arg19[%c0_96, %c0_97] : memref<2x8xf32, #tpu.memory_space<vmem>>, vector<2x8xf32>
      %264 = vector.shape_cast %263 : vector<2x8xf32> to vector<1x2x8xf32>
      %cst_98 = arith.constant dense<0.000000e+00> : vector<1xf32>
      %265 = vector.multi_reduction <add>, %264, %cst_98 [1, 2] : vector<1x2x8xf32> to vector<1xf32>
      %266 = vector.shape_cast %265 : vector<1xf32> to vector<1x1x1xf32>
      %267 = vector.extract %266[0, 0, 0] : f32 from vector<1x1x1xf32>
      %268 = arith.subf %262, %267 : f32
      %c5_99 = arith.constant 5 : index
      %269 = memref.load %arg14[%c5_99] : memref<9xf32, #tpu.memory_space<smem>>
      %c0_100 = arith.constant 0 : index
      %c0_101 = arith.constant 0 : index
      %270 = vector.load %arg20[%c0_100, %c0_101] : memref<2x8xf32, #tpu.memory_space<vmem>>, vector<2x8xf32>
      %271 = vector.shape_cast %270 : vector<2x8xf32> to vector<1x2x8xf32>
      %cst_102 = arith.constant dense<0.000000e+00> : vector<1xf32>
      %272 = vector.multi_reduction <add>, %271, %cst_102 [1, 2] : vector<1x2x8xf32> to vector<1xf32>
      %273 = vector.shape_cast %272 : vector<1xf32> to vector<1x1x1xf32>
      %274 = vector.extract %273[0, 0, 0] : f32 from vector<1x1x1xf32>
      %275 = arith.subf %269, %274 : f32
      %c0_103 = arith.constant 0 : index
      %276 = memref.load %arg14[%c0_103] : memref<9xf32, #tpu.memory_space<smem>>
      %277 = arith.addf %247, %276 : f32
      %278 = arith.divf %277, %236 : f32
      %c0_104 = arith.constant 0 : index
      %279 = memref.load %arg13[%c0_104] : memref<8xf32, #tpu.memory_space<smem>>
      memref.store %278, %arg13[%c0_104] : memref<8xf32, #tpu.memory_space<smem>>
      %280 = arith.divf %254, %236 : f32
      %c1_105 = arith.constant 1 : index
      %281 = memref.load %arg13[%c1_105] : memref<8xf32, #tpu.memory_space<smem>>
      memref.store %280, %arg13[%c1_105] : memref<8xf32, #tpu.memory_space<smem>>
      %282 = arith.divf %261, %238 : f32
      %c2_106 = arith.constant 2 : index
      %283 = memref.load %arg13[%c2_106] : memref<8xf32, #tpu.memory_space<smem>>
      memref.store %282, %arg13[%c2_106] : memref<8xf32, #tpu.memory_space<smem>>
      %284 = arith.divf %268, %240 : f32
      %c3_107 = arith.constant 3 : index
      %285 = memref.load %arg13[%c3_107] : memref<8xf32, #tpu.memory_space<smem>>
      memref.store %284, %arg13[%c3_107] : memref<8xf32, #tpu.memory_space<smem>>
      %286 = arith.divf %275, %236 : f32
      %c4_108 = arith.constant 4 : index
      %287 = memref.load %arg13[%c4_108] : memref<8xf32, #tpu.memory_space<smem>>
      memref.store %286, %arg13[%c4_108] : memref<8xf32, #tpu.memory_space<smem>>
      %cst_109 = arith.constant 0.000000e+00 : f32
      %c5_110 = arith.constant 5 : index
      %288 = memref.load %arg13[%c5_110] : memref<8xf32, #tpu.memory_space<smem>>
      memref.store %cst_109, %arg13[%c5_110] : memref<8xf32, #tpu.memory_space<smem>>
      %cst_111 = arith.constant 0.000000e+00 : f32
      %c6_112 = arith.constant 6 : index
      %289 = memref.load %arg13[%c6_112] : memref<8xf32, #tpu.memory_space<smem>>
      memref.store %cst_111, %arg13[%c6_112] : memref<8xf32, #tpu.memory_space<smem>>
      %cst_113 = arith.constant 0.000000e+00 : f32
      %c7_114 = arith.constant 7 : index
      %290 = memref.load %arg13[%c7_114] : memref<8xf32, #tpu.memory_space<smem>>
      memref.store %cst_113, %arg13[%c7_114] : memref<8xf32, #tpu.memory_space<smem>>
    } else {
    }
    return
  }
  func.func @transform_0(%arg0: i32) -> (i32, i32) {
    %c0_i32 = arith.constant 0 : i32
    %c0_i32_0 = arith.constant 0 : i32
    return %c0_i32, %arg0 : i32, i32
  }
  func.func @transform_1(%arg0: i32) -> (i32, i32) {
    %c0_i32 = arith.constant 0 : i32
    %c0_i32_0 = arith.constant 0 : i32
    return %c0_i32, %arg0 : i32, i32
  }
  func.func @transform_2(%arg0: i32) -> (i32, i32) {
    %c0_i32 = arith.constant 0 : i32
    %c0_i32_0 = arith.constant 0 : i32
    return %c0_i32, %arg0 : i32, i32
  }
  func.func @transform_3(%arg0: i32) -> (i32, i32) {
    %c0_i32 = arith.constant 0 : i32
    %c0_i32_0 = arith.constant 0 : i32
    return %c0_i32, %arg0 : i32, i32
  }
  func.func @transform_4(%arg0: i32) -> (i32, i32) {
    %c0_i32 = arith.constant 0 : i32
    %c0_i32_0 = arith.constant 0 : i32
    return %c0_i32, %arg0 : i32, i32
  }
  func.func @transform_5(%arg0: i32) -> (i32, i32) {
    %c0_i32 = arith.constant 0 : i32
    %c0_i32_0 = arith.constant 0 : i32
    return %c0_i32, %arg0 : i32, i32
  }
  func.func @transform_6(%arg0: i32) -> (i32, i32) {
    %c0_i32 = arith.constant 0 : i32
    %c0_i32_0 = arith.constant 0 : i32
    return %c0_i32, %arg0 : i32, i32
  }
  func.func @transform_7(%arg0: i32) -> (i32, i32) {
    %c0_i32 = arith.constant 0 : i32
    %c0_i32_0 = arith.constant 0 : i32
    return %c0_i32, %arg0 : i32, i32
  }
  func.func @transform_8(%arg0: i32) -> (i32, i32) {
    %c0_i32 = arith.constant 0 : i32
    %c0_i32_0 = arith.constant 0 : i32
    return %c0_i32, %arg0 : i32, i32
  }
  func.func @transform_9(%arg0: i32) -> (i32, i32) {
    %c0_i32 = arith.constant 0 : i32
    %c0_i32_0 = arith.constant 0 : i32
    return %c0_i32, %arg0 : i32, i32
  }
  func.func @transform_10(%arg0: i32) -> (i32, i32) {
    %c0_i32 = arith.constant 0 : i32
    %c0_i32_0 = arith.constant 0 : i32
    return %c0_i32, %arg0 : i32, i32
  }
  func.func @transform_11(%arg0: i32) -> (i32, i32) {
    %c0_i32 = arith.constant 0 : i32
    %c0_i32_0 = arith.constant 0 : i32
    return %c0_i32, %arg0 : i32, i32
  }
  func.func @transform_12(%arg0: i32) -> i32 {
    %c0_i32 = arith.constant 0 : i32
    %c0_i32_0 = arith.constant 0 : i32
    return %c0_i32 : i32
  }
}

</mosaic_0001>

<llo_original>
// kernel: tpu_custom_call.1
$region0: #{tpu_custom_call.1}
  #allocation0 [shape = 'u32[]', space=smem, size = 0x4, offset = 0x4, fixed_abs, tag = 'smem constant byte address 0x4 - core index']
  #allocation1 [shape = 'u32[72,128]{1,0:T(1,128)}', space=vmem, size = 0x9000, scoped, tag = 'internal scratch']
  #allocation2 [shape = 'f32[9]{0:T(128)}', space=smem, size = 0x200, scoped, tag = 'scratch operand']
  #allocation3 [shape = 'f32[2,8]{1,0:T(2,128)}', space=vmem, size = 0x400, scoped, tag = 'scratch operand']
  #allocation4 [shape = 'f32[2,8]{1,0:T(2,128)}', space=vmem, size = 0x400, scoped, tag = 'scratch operand']
  #allocation5 [shape = 'f32[2,8]{1,0:T(2,128)}', space=vmem, size = 0x400, scoped, tag = 'scratch operand']
  #allocation6 [shape = 'f32[2,8]{1,0:T(2,128)}', space=vmem, size = 0x400, scoped, tag = 'scratch operand']
  #allocation7 [shape = 'f32[2,8]{1,0:T(2,128)}', space=vmem, size = 0x400, scoped, tag = 'scratch operand']
  #allocation8 [shape = 'f32[2,8]{1,0:T(2,128)}', space=vmem, size = 0x400, scoped, tag = 'scratch operand']
  %s0 = inlined_call_operand.hbm [shape: f32[2,1024], index: 0, kind: input, shape index: {}]
  %s1 = inlined_call_operand.hbm [shape: f32[2,1024], index: 1, kind: input, shape index: {}]
  %s2 = inlined_call_operand.hbm [shape: f32[2,1024], index: 2, kind: input, shape index: {}]
  %s3 = inlined_call_operand.hbm [shape: f32[2,1024], index: 3, kind: input, shape index: {}]
  %s4 = inlined_call_operand.hbm [shape: f32[2,1024], index: 4, kind: input, shape index: {}]
  %s5 = inlined_call_operand.hbm [shape: f32[2,1024], index: 5, kind: input, shape index: {}]
  %s6 = inlined_call_operand.hbm [shape: f32[2,1024], index: 6, kind: input, shape index: {}]
  %s7 = inlined_call_operand.hbm [shape: f32[2,1024], index: 7, kind: input, shape index: {}]
  %s8 = inlined_call_operand.hbm [shape: f32[2,1024], index: 8, kind: input, shape index: {}]
  %s9 = inlined_call_operand.hbm [shape: f32[2,1024], index: 9, kind: input, shape index: {}]
  %s10 = inlined_call_operand.hbm [shape: f32[2,1024], index: 10, kind: input, shape index: {}]
  %s11 = inlined_call_operand.hbm [shape: f32[2,1024], index: 11, kind: input, shape index: {}]
  %s12 = inlined_call_operand.hbm [shape: f32[8], index: 12, kind: output, shape index: {}]
  %s13 = sld [smem:[#allocation0]]
  $region141: #{tpu_custom_call.1} parent=0
    _
  %s15 = ssub.s32 1, %s13
  %s16 = scalar_select 0, %s15, %s13
  $region1: #{tpu_custom_call.1} parent=0
    #allocation9 [shape = 'u8[4096]{0}', space=vmem, size = 0x1000, scoped, tag = 'input window, operand 0']
    #allocation10 [shape = 's32[2]{0}', space=sflag, size = 0x8, scoped, tag = 'scoped memory for tpu_custom_call.1']
    #allocation11 [shape = 's32[2]{0}', space=sflag, size = 0x8, scoped, tag = 'scoped memory for tpu_custom_call.1']
    #allocation12 [shape = 'u8[4096]{0}', space=vmem, size = 0x1000, scoped, tag = 'input window, operand 1']
    #allocation13 [shape = 's32[2]{0}', space=sflag, size = 0x8, scoped, tag = 'scoped memory for tpu_custom_call.1']
    #allocation14 [shape = 'u8[4096]{0}', space=vmem, size = 0x1000, scoped, tag = 'input window, operand 2']
    #allocation15 [shape = 'u8[4096]{0}', space=vmem, size = 0x1000, scoped, tag = 'input window, operand 3']
    #allocation16 [shape = 's32[2]{0}', space=sflag, size = 0x8, scoped, tag = 'scoped memory for tpu_custom_call.1']
    #allocation17 [shape = 'u8[4096]{0}', space=vmem, size = 0x1000, scoped, tag = 'input window, operand 4']
    #allocation18 [shape = 'u8[4096]{0}', space=vmem, size = 0x1000, scoped, tag = 'input window, operand 5']
    #allocation19 [shape = 's32[2]{0}', space=sflag, size = 0x8, scoped, tag = 'scoped memory for tpu_custom_call.1']
    #allocation20 [shape = 'u8[4096]{0}', space=vmem, size = 0x1000, scoped, tag = 'input window, operand 6']
    #allocation21 [shape = 'u8[4096]{0}', space=vmem, size = 0x1000, scoped, tag = 'input window, operand 7']
    #allocation22 [shape = 's32[2]{0}', space=sflag, size = 0x8, scoped, tag = 'scoped memory for tpu_custom_call.1']
    #allocation23 [shape = 'u8[4096]{0}', space=vmem, size = 0x1000, scoped, tag = 'input window, operand 8']
    #allocation24 [shape = 'u8[4096]{0}', space=vmem, size = 0x1000, scoped, tag = 'input window, operand 9']
    #allocation25 [shape = 's32[2]{0}', space=sflag, size = 0x8, scoped, tag = 'scoped memory for tpu_custom_call.1']
    #allocation26 [shape = 'u8[4096]{0}', space=vmem, size = 0x1000, scoped, tag = 'input window, operand 10']
    #allocation27 [shape = 'u8[4096]{0}', space=vmem, size = 0x1000, scoped, tag = 'input window, operand 11']
    #allocation28 [shape = 's32[2]{0}', space=sflag, size = 0x8, scoped, tag = 'scoped memory for tpu_custom_call.1']
    #allocation29 [shape = 'u8[512]{0}', space=smem, size = 0x200, scoped, tag = 'output window, operand 0, single buffered']
    %17 = vsyncpa [#allocation10], 0
    %s18 = scalar_lea.sflag [#allocation10], 1
    %19 = vsyncpa %s18, 0
    %20 = vsyncpa [#allocation13], 0
    %s21 = scalar_lea.sflag [#allocation13], 1
    %22 = vsyncpa %s21, 0
    %23 = vsyncpa [#allocation16], 0
    %s24 = scalar_lea.sflag [#allocation16], 1
    %25 = vsyncpa %s24, 0
    %26 = vsyncpa [#allocation19], 0
    %s27 = scalar_lea.sflag [#allocation19], 1
    %28 = vsyncpa %s27, 0
    %29 = vsyncpa [#allocation22], 0
    %s30 = scalar_lea.sflag [#allocation22], 1
    %31 = vsyncpa %s30, 0
    %32 = vsyncpa [#allocation25], 0
    %s33 = scalar_lea.sflag [#allocation25], 1
    %34 = vsyncpa %s33, 0
    %35 = vsyncpa [#allocation28], 0
    %s36 = scalar_lea.sflag [#allocation28], 1
    %37 = vsyncpa %s36, 0
    %38 = vsyncpa [#allocation11], 0
    loop: start=0, step=1, limit=6
    $region2: #{tpu_custom_call.1} parent=1 // loop_pre_header
      _
    $region3: #{tpu_custom_call.1} parent=1 // loop_header
      %s40 = sphi 0, %s44
      %p41 = scmp.ge.s32.totalorder %s40, 6
      %s50 = sphi 0, %s52
      %s53 = sphi 0, %s50
      %s54 = sphi 0, %s53
      %s70 = sphi 0, %s54
      %s76 = sphi 0, %s78
      %s79 = sphi 0, %s76
      %s80 = sphi 0, %s79
      %s96 = sphi 0, %s80
      %s102 = sphi 0, %s104
      %s105 = sphi 0, %s102
      %s106 = sphi 0, %s105
      %s122 = sphi 0, %s106
      %s128 = sphi 0, %s130
      %s131 = sphi 0, %s128
      %s132 = sphi 0, %s131
      %s148 = sphi 0, %s132
      %s154 = sphi 0, %s156
      %s157 = sphi 0, %s154
      %s158 = sphi 0, %s157
      %s174 = sphi 0, %s158
      %s180 = sphi 0, %s182
      %s183 = sphi 0, %s180
      %s184 = sphi 0, %s183
      %s200 = sphi 0, %s184
      %s206 = sphi 0, %s208
      %s209 = sphi 0, %s206
      %s210 = sphi 0, %s209
      %s226 = sphi 0, %s210
      %s232 = sphi 0, %s234
      %s235 = sphi 0, %s232
      %s236 = sphi 0, %s235
      %s252 = sphi 0, %s236
      %s258 = sphi 0, %s260
      %s261 = sphi 0, %s258
      %s262 = sphi 0, %s261
      %s278 = sphi 0, %s262
      %s284 = sphi 0, %s286
      %s287 = sphi 0, %s284
      %s288 = sphi 0, %s287
      %s304 = sphi 0, %s288
      %s310 = sphi 0, %s312
      %s313 = sphi 0, %s310
      %s314 = sphi 0, %s313
      %s330 = sphi 0, %s314
      %s336 = sphi 0, %s338
      %s339 = sphi 0, %s336
      %s340 = sphi 0, %s339
      %s356 = sphi 0, %s340
      %s360 = sphi 0, %s360
      %s362 = sphi 0, %s360
      %s363 = sphi 0, %s362
      %s377 = sphi 0, %s363
    $region4: #{tpu_custom_call.1} parent=1 // loop_header_branch
      %43 = sbr.rel (%p41) target = $region8
    $region5: #{tpu_custom_call.1} parent=1 // loop_body
      %s45 = ssub.s32 %s40, 1
      %s46 = ssub.s32 %s40, 2
      %s47 = sadd.s32 %s40, 1
      %s48 = ssub.s32 %s40, %s47
      %p49 = scmp.eq.s32.totalorder %s48, 0
      %s51 = sadd.s32 %s50, 1
      %s52 = scalar_select %p49, %s50, %s51
      %p55 = pneg %p49
      %p56 = scmp.eq.s32.totalorder %s40, 3
      %p57 = por %p55, %p56
      %p58 = scmp.ne.s32.totalorder %s50, %s53
      %p59 = scmp.eq.s32.totalorder %s40, 0
      %p60 = por %p58, %p59
      %p61 = scmp.ne.s32.totalorder %s50, %s53
      %p62 = scmp.eq.s32.totalorder %s45, 3
      %p63 = por %p61, %p62
      %p64 = scmp.ne.s32.totalorder %s53, %s54
      %p65 = scmp.eq.s32.totalorder %s45, 0
      %p66 = por %p64, %p65
      %p67 = scmp.ne.s32.totalorder %s53, %s54
      %p68 = scmp.eq.s32.totalorder %s46, 3
      %p69 = por %p67, %p68
      %p71 = scmp.ne.s32.totalorder %s54, %s70
      %p72 = scmp.eq.s32.totalorder %s46, 0
      %p73 = por %p71, %p72
      %s74 = ssub.s32 %s40, %s47
      %p75 = scmp.eq.s32.totalorder %s74, 0
      %s77 = sadd.s32 %s76, 1
      %s78 = scalar_select %p75, %s76, %s77
      %p81 = pneg %p75
      %p82 = scmp.eq.s32.totalorder %s40, 3
      %p83 = por %p81, %p82
      %p84 = scmp.ne.s32.totalorder %s76, %s79
      %p85 = scmp.eq.s32.totalorder %s40, 0
      %p86 = por %p84, %p85
      %p87 = scmp.ne.s32.totalorder %s76, %s79
      %p88 = scmp.eq.s32.totalorder %s45, 3
      %p89 = por %p87, %p88
      %p90 = scmp.ne.s32.totalorder %s79, %s80
      %p91 = scmp.eq.s32.totalorder %s45, 0
      %p92 = por %p90, %p91
      %p93 = scmp.ne.s32.totalorder %s79, %s80
      %p94 = scmp.eq.s32.totalorder %s46, 3
      %p95 = por %p93, %p94
      %p97 = scmp.ne.s32.totalorder %s80, %s96
      %p98 = scmp.eq.s32.totalorder %s46, 0
      %p99 = por %p97, %p98
      %s100 = ssub.s32 %s40, %s47
      %p101 = scmp.eq.s32.totalorder %s100, 0
      %s103 = sadd.s32 %s102, 1
      %s104 = scalar_select %p101, %s102, %s103
      %p107 = pneg %p101
      %p108 = scmp.eq.s32.totalorder %s40, 3
      %p109 = por %p107, %p108
      %p110 = scmp.ne.s32.totalorder %s102, %s105
      %p111 = scmp.eq.s32.totalorder %s40, 0
      %p112 = por %p110, %p111
      %p113 = scmp.ne.s32.totalorder %s102, %s105
      %p114 = scmp.eq.s32.totalorder %s45, 3
      %p115 = por %p113, %p114
      %p116 = scmp.ne.s32.totalorder %s105, %s106
      %p117 = scmp.eq.s32.totalorder %s45, 0
      %p118 = por %p116, %p117
      %p119 = scmp.ne.s32.totalorder %s105, %s106
      %p120 = scmp.eq.s32.totalorder %s46, 3
      %p121 = por %p119, %p120
      %p123 = scmp.ne.s32.totalorder %s106, %s122
      %p124 = scmp.eq.s32.totalorder %s46, 0
      %p125 = por %p123, %p124
      %s126 = ssub.s32 %s40, %s47
      %p127 = scmp.eq.s32.totalorder %s126, 0
      %s129 = sadd.s32 %s128, 1
      %s130 = scalar_select %p127, %s128, %s129
      %p133 = pneg %p127
      %p134 = scmp.eq.s32.totalorder %s40, 3
      %p135 = por %p133, %p134
      %p136 = scmp.ne.s32.totalorder %s128, %s131
      %p137 = scmp.eq.s32.totalorder %s40, 0
      %p138 = por %p136, %p137
      %p139 = scmp.ne.s32.totalorder %s128, %s131
      %p140 = scmp.eq.s32.totalorder %s45, 3
      %p141 = por %p139, %p140
      %p142 = scmp.ne.s32.totalorder %s131, %s132
      %p143 = scmp.eq.s32.totalorder %s45, 0
      %p144 = por %p142, %p143
      %p145 = scmp.ne.s32.totalorder %s131, %s132
      %p146 = scmp.eq.s32.totalorder %s46, 3
      %p147 = por %p145, %p146
      %p149 = scmp.ne.s32.totalorder %s132, %s148
      %p150 = scmp.eq.s32.totalorder %s46, 0
      %p151 = por %p149, %p150
      %s152 = ssub.s32 %s40, %s47
      %p153 = scmp.eq.s32.totalorder %s152, 0
      %s155 = sadd.s32 %s154, 1
      %s156 = scalar_select %p153, %s154, %s155
      %p159 = pneg %p153
      %p160 = scmp.eq.s32.totalorder %s40, 3
      %p161 = por %p159, %p160
      %p162 = scmp.ne.s32.totalorder %s154, %s157
      %p163 = scmp.eq.s32.totalorder %s40, 0
      %p164 = por %p162, %p163
      %p165 = scmp.ne.s32.totalorder %s154, %s157
      %p166 = scmp.eq.s32.totalorder %s45, 3
      %p167 = por %p165, %p166
      %p168 = scmp.ne.s32.totalorder %s157, %s158
      %p169 = scmp.eq.s32.totalorder %s45, 0
      %p170 = por %p168, %p169
      %p171 = scmp.ne.s32.totalorder %s157, %s158
      %p172 = scmp.eq.s32.totalorder %s46, 3
      %p173 = por %p171, %p172
      %p175 = scmp.ne.s32.totalorder %s158, %s174
      %p176 = scmp.eq.s32.totalorder %s46, 0
      %p177 = por %p175, %p176
      %s178 = ssub.s32 %s40, %s47
      %p179 = scmp.eq.s32.totalorder %s178, 0
      %s181 = sadd.s32 %s180, 1
      %s182 = scalar_select %p179, %s180, %s181
      %p185 = pneg %p179
      %p186 = scmp.eq.s32.totalorder %s40, 3
      %p187 = por %p185, %p186
      %p188 = scmp.ne.s32.totalorder %s180, %s183
      %p189 = scmp.eq.s32.totalorder %s40, 0
      %p190 = por %p188, %p189
      %p191 = scmp.ne.s32.totalorder %s180, %s183
      %p192 = scmp.eq.s32.totalorder %s45, 3
      %p193 = por %p191, %p192
      %p194 = scmp.ne.s32.totalorder %s183, %s184
      %p195 = scmp.eq.s32.totalorder %s45, 0
      %p196 = por %p194, %p195
      %p197 = scmp.ne.s32.totalorder %s183, %s184
      %p198 = scmp.eq.s32.totalorder %s46, 3
      %p199 = por %p197, %p198
      %p201 = scmp.ne.s32.totalorder %s184, %s200
      %p202 = scmp.eq.s32.totalorder %s46, 0
      %p203 = por %p201, %p202
      %s204 = ssub.s32 %s40, %s47
      %p205 = scmp.eq.s32.totalorder %s204, 0
      %s207 = sadd.s32 %s206, 1
      %s208 = scalar_select %p205, %s206, %s207
      %p211 = pneg %p205
      %p212 = scmp.eq.s32.totalorder %s40, 3
      %p213 = por %p211, %p212
      %p214 = scmp.ne.s32.totalorder %s206, %s209
      %p215 = scmp.eq.s32.totalorder %s40, 0
      %p216 = por %p214, %p215
      %p217 = scmp.ne.s32.totalorder %s206, %s209
      %p218 = scmp.eq.s32.totalorder %s45, 3
      %p219 = por %p217, %p218
      %p220 = scmp.ne.s32.totalorder %s209, %s210
      %p221 = scmp.eq.s32.totalorder %s45, 0
      %p222 = por %p220, %p221
      %p223 = scmp.ne.s32.totalorder %s209, %s210
      %p224 = scmp.eq.s32.totalorder %s46, 3
      %p225 = por %p223, %p224
      %p227 = scmp.ne.s32.totalorder %s210, %s226
      %p228 = scmp.eq.s32.totalorder %s46, 0
      %p229 = por %p227, %p228
      %s230 = ssub.s32 %s40, %s47
      %p231 = scmp.eq.s32.totalorder %s230, 0
      %s233 = sadd.s32 %s232, 1
      %s234 = scalar_select %p231, %s232, %s233
      %p237 = pneg %p231
      %p238 = scmp.eq.s32.totalorder %s40, 3
      %p239 = por %p237, %p238
      %p240 = scmp.ne.s32.totalorder %s232, %s235
      %p241 = scmp.eq.s32.totalorder %s40, 0
      %p242 = por %p240, %p241
      %p243 = scmp.ne.s32.totalorder %s232, %s235
      %p244 = scmp.eq.s32.totalorder %s45, 3
      %p245 = por %p243, %p244
      %p246 = scmp.ne.s32.totalorder %s235, %s236
      %p247 = scmp.eq.s32.totalorder %s45, 0
      %p248 = por %p246, %p247
      %p249 = scmp.ne.s32.totalorder %s235, %s236
      %p250 = scmp.eq.s32.totalorder %s46, 3
      %p251 = por %p249, %p250
      %p253 = scmp.ne.s32.totalorder %s236, %s252
      %p254 = scmp.eq.s32.totalorder %s46, 0
      %p255 = por %p253, %p254
      %s256 = ssub.s32 %s40, %s47
      %p257 = scmp.eq.s32.totalorder %s256, 0
      %s259 = sadd.s32 %s258, 1
      %s260 = scalar_select %p257, %s258, %s259
      %p263 = pneg %p257
      %p264 = scmp.eq.s32.totalorder %s40, 3
      %p265 = por %p263, %p264
      %p266 = scmp.ne.s32.totalorder %s258, %s261
      %p267 = scmp.eq.s32.totalorder %s40, 0
      %p268 = por %p266, %p267
      %p269 = scmp.ne.s32.totalorder %s258, %s261
      %p270 = scmp.eq.s32.totalorder %s45, 3
      %p271 = por %p269, %p270
      %p272 = scmp.ne.s32.totalorder %s261, %s262
      %p273 = scmp.eq.s32.totalorder %s45, 0
      %p274 = por %p272, %p273
      %p275 = scmp.ne.s32.totalorder %s261, %s262
      %p276 = scmp.eq.s32.totalorder %s46, 3
      %p277 = por %p275, %p276
      %p279 = scmp.ne.s32.totalorder %s262, %s278
      %p280 = scmp.eq.s32.totalorder %s46, 0
      %p281 = por %p279, %p280
      %s282 = ssub.s32 %s40, %s47
      %p283 = scmp.eq.s32.totalorder %s282, 0
      %s285 = sadd.s32 %s284, 1
      %s286 = scalar_select %p283, %s284, %s285
      %p289 = pneg %p283
      %p290 = scmp.eq.s32.totalorder %s40, 3
      %p291 = por %p289, %p290
      %p292 = scmp.ne.s32.totalorder %s284, %s287
      %p293 = scmp.eq.s32.totalorder %s40, 0
      %p294 = por %p292, %p293
      %p295 = scmp.ne.s32.totalorder %s284, %s287
      %p296 = scmp.eq.s32.totalorder %s45, 3
      %p297 = por %p295, %p296
      %p298 = scmp.ne.s32.totalorder %s287, %s288
      %p299 = scmp.eq.s32.totalorder %s45, 0
      %p300 = por %p298, %p299
      %p301 = scmp.ne.s32.totalorder %s287, %s288
      %p302 = scmp.eq.s32.totalorder %s46, 3
      %p303 = por %p301, %p302
      %p305 = scmp.ne.s32.totalorder %s288, %s304
      %p306 = scmp.eq.s32.totalorder %s46, 0
      %p307 = por %p305, %p306
      %s308 = ssub.s32 %s40, %s47
      %p309 = scmp.eq.s32.totalorder %s308, 0
      %s311 = sadd.s32 %s310, 1
      %s312 = scalar_select %p309, %s310, %s311
      %p315 = pneg %p309
      %p316 = scmp.eq.s32.totalorder %s40, 3
      %p317 = por %p315, %p316
      %p318 = scmp.ne.s32.totalorder %s310, %s313
      %p319 = scmp.eq.s32.totalorder %s40, 0
      %p320 = por %p318, %p319
      %p321 = scmp.ne.s32.totalorder %s310, %s313
      %p322 = scmp.eq.s32.totalorder %s45, 3
      %p323 = por %p321, %p322
      %p324 = scmp.ne.s32.totalorder %s313, %s314
      %p325 = scmp.eq.s32.totalorder %s45, 0
      %p326 = por %p324, %p325
      %p327 = scmp.ne.s32.totalorder %s313, %s314
      %p328 = scmp.eq.s32.totalorder %s46, 3
      %p329 = por %p327, %p328
      %p331 = scmp.ne.s32.totalorder %s314, %s330
      %p332 = scmp.eq.s32.totalorder %s46, 0
      %p333 = por %p331, %p332
      %s334 = ssub.s32 %s40, %s47
      %p335 = scmp.eq.s32.totalorder %s334, 0
      %s337 = sadd.s32 %s336, 1
      %s338 = scalar_select %p335, %s336, %s337
      %p341 = pneg %p335
      %p342 = scmp.eq.s32.totalorder %s40, 3
      %p343 = por %p341, %p342
      %p344 = scmp.ne.s32.totalorder %s336, %s339
      %p345 = scmp.eq.s32.totalorder %s40, 0
      %p346 = por %p344, %p345
      %p347 = scmp.ne.s32.totalorder %s336, %s339
      %p348 = scmp.eq.s32.totalorder %s45, 3
      %p349 = por %p347, %p348
      %p350 = scmp.ne.s32.totalorder %s339, %s340
      %p351 = scmp.eq.s32.totalorder %s45, 0
      %p352 = por %p350, %p351
      %p353 = scmp.ne.s32.totalorder %s339, %s340
      %p354 = scmp.eq.s32.totalorder %s46, 3
      %p355 = por %p353, %p354
      %p357 = scmp.ne.s32.totalorder %s340, %s356
      %p358 = scmp.eq.s32.totalorder %s46, 0
      %p359 = por %p357, %p358
      %s361 = sadd.s32 %s360, 1
      %p364 = scmp.eq.s32.totalorder %s40, 3
      %p365 = scmp.ne.s32.totalorder %s360, %s362
      %p366 = scmp.eq.s32.totalorder %s40, 0
      %p367 = por %p365, %p366
      %p368 = scmp.ne.s32.totalorder %s360, %s362
      %p369 = scmp.eq.s32.totalorder %s45, 3
      %p370 = por %p368, %p369
      %p371 = scmp.ne.s32.totalorder %s362, %s363
      %p372 = scmp.eq.s32.totalorder %s45, 0
      %p373 = por %p371, %p372
      %p374 = scmp.ne.s32.totalorder %s362, %s363
      %p375 = scmp.eq.s32.totalorder %s46, 3
      %p376 = por %p374, %p375
      %p378 = scmp.ne.s32.totalorder %s363, %s377
      %p379 = scmp.eq.s32.totalorder %s46, 0
      %p380 = por %p378, %p379
      %p381 = scmp.le.s32.totalorder 1, %s40
      %p382 = scmp.lt.s32.totalorder %s40, 5
      %p383 = pnand %p381, %p382
      %p384 = pneg %p383
      // Predicated region
      $region9: #{tpu_custom_call.1} parent=5 // pred_check
        _
      $region10: #{tpu_custom_call.1} parent=5 // pred_check_branch
        %386 = sbr.rel (%p383) target = $region12
      $region11: #{tpu_custom_call.1} parent=5 // pred_region
        %s387 = ssub.s32 %s40, 1
      $region12: #{tpu_custom_call.1} parent=5 // pred_fallthru
        _
      %p388 = scmp.lt.s32.totalorder %s40, 4
      // Predicated region
      $region13: #{tpu_custom_call.1} parent=5 // pred_check
        %p389 = pneg %p388
      $region14: #{tpu_custom_call.1} parent=5 // pred_check_branch
        %391 = sbr.rel (%p389) target = $region16
      $region15: #{tpu_custom_call.1} parent=5 // pred_region
        // Predicated region
        $region17: #{tpu_custom_call.1} parent=15 // pred_check
          %p392 = pneg %p60
        $region18: #{tpu_custom_call.1} parent=15 // pred_check_branch
          %394 = sbr.rel (%p392) target = $region20
        $region19: #{tpu_custom_call.1} parent=15 // pred_region
          %s395 = sand.u32 %s50, 1
          %s396 = scalar_lea.sflag [#allocation10], %s395
          %s397 = sand.u32 %s50, 1
          %s398 = smul.addr %s397, 4
          %s399 = scalar_lea.vmem [#allocation9], %s398
          %s400 = smul.u32 2, %s40
          %402 = vsyncadd %s396, 0
          %s403 = smul.addr %s400, 2
          %s404 = scalar_lea.hbm %s0, %s403
          %s406 = sshll.u32 %s404, 4
          %s407 = int_to_ptr.hbm [resolvable:$true] %s406
          %s408 = sshll.u32 %s399, 4
          %s409 = int_to_ptr.vmem [resolvable:$true] %s408
          %411 = dma.hbm_to_vmem [thread:$0]  %s407, 64, %s409, %s396
        $region20: #{tpu_custom_call.1} parent=15 // pred_fallthru
          _
        // Predicated region
        $region21: #{tpu_custom_call.1} parent=15 // pred_check
          %p412 = pneg %p86
        $region22: #{tpu_custom_call.1} parent=15 // pred_check_branch
          %414 = sbr.rel (%p412) target = $region24
        $region23: #{tpu_custom_call.1} parent=15 // pred_region
          %s415 = sand.u32 %s40, 1
          %s416 = scalar_lea.sflag [#allocation13], %s415
          %s417 = sand.u32 %s76, 1
          %s418 = smul.addr %s417, 4
          %s419 = scalar_lea.vmem [#allocation12], %s418
          %s420 = smul.u32 2, %s40
          %422 = vsyncadd %s416, 0
          %s423 = smul.addr %s420, 2
          %s424 = scalar_lea.hbm %s1, %s423
          %s426 = sshll.u32 %s424, 4
          %s427 = int_to_ptr.hbm [resolvable:$true] %s426
          %s428 = sshll.u32 %s419, 4
          %s429 = int_to_ptr.vmem [resolvable:$true] %s428
          %431 = dma.hbm_to_vmem [thread:$0]  %s427, 64, %s429, %s416
        $region24: #{tpu_custom_call.1} parent=15 // pred_fallthru
          _
        // Predicated region
        $region25: #{tpu_custom_call.1} parent=15 // pred_check
          %p432 = pneg %p112
        $region26: #{tpu_custom_call.1} parent=15 // pred_check_branch
          %434 = sbr.rel (%p432) target = $region28
        $region27: #{tpu_custom_call.1} parent=15 // pred_region
          %s435 = sand.u32 %s40, 1
          %s436 = scalar_lea.sflag [#allocation13], %s435
          %s437 = sand.u32 %s102, 1
          %s438 = smul.addr %s437, 4
          %s439 = scalar_lea.vmem [#allocation14], %s438
          %s440 = smul.u32 2, %s40
          %442 = vsyncadd %s436, 0
          %s443 = smul.addr %s440, 2
          %s444 = scalar_lea.hbm %s2, %s443
          %s446 = sshll.u32 %s444, 4
          %s447 = int_to_ptr.hbm [resolvable:$true] %s446
          %s448 = sshll.u32 %s439, 4
          %s449 = int_to_ptr.vmem [resolvable:$true] %s448
          %451 = dma.hbm_to_vmem [thread:$0]  %s447, 64, %s449, %s436
        $region28: #{tpu_custom_call.1} parent=15 // pred_fallthru
          _
        // Predicated region
        $region29: #{tpu_custom_call.1} parent=15 // pred_check
          %p452 = pneg %p138
        $region30: #{tpu_custom_call.1} parent=15 // pred_check_branch
          %454 = sbr.rel (%p452) target = $region32
        $region31: #{tpu_custom_call.1} parent=15 // pred_region
          %s455 = sand.u32 %s40, 1
          %s456 = scalar_lea.sflag [#allocation16], %s455
          %s457 = sand.u32 %s128, 1
          %s458 = smul.addr %s457, 4
          %s459 = scalar_lea.vmem [#allocation15], %s458
          %s460 = smul.u32 2, %s40
          %462 = vsyncadd %s456, 0
          %s463 = smul.addr %s460, 2
          %s464 = scalar_lea.hbm %s3, %s463
          %s466 = sshll.u32 %s464, 4
          %s467 = int_to_ptr.hbm [resolvable:$true] %s466
          %s468 = sshll.u32 %s459, 4
          %s469 = int_to_ptr.vmem [resolvable:$true] %s468
          %471 = dma.hbm_to_vmem [thread:$0]  %s467, 64, %s469, %s456
        $region32: #{tpu_custom_call.1} parent=15 // pred_fallthru
          _
        // Predicated region
        $region33: #{tpu_custom_call.1} parent=15 // pred_check
          %p472 = pneg %p164
        $region34: #{tpu_custom_call.1} parent=15 // pred_check_branch
          %474 = sbr.rel (%p472) target = $region36
        $region35: #{tpu_custom_call.1} parent=15 // pred_region
          %s475 = sand.u32 %s40, 1
          %s476 = scalar_lea.sflag [#allocation16], %s475
          %s477 = sand.u32 %s154, 1
          %s478 = smul.addr %s477, 4
          %s479 = scalar_lea.vmem [#allocation17], %s478
          %s480 = smul.u32 2, %s40
          %482 = vsyncadd %s476, 0
          %s483 = smul.addr %s480, 2
          %s484 = scalar_lea.hbm %s4, %s483
          %s486 = sshll.u32 %s484, 4
          %s487 = int_to_ptr.hbm [resolvable:$true] %s486
          %s488 = sshll.u32 %s479, 4
          %s489 = int_to_ptr.vmem [resolvable:$true] %s488
          %491 = dma.hbm_to_vmem [thread:$0]  %s487, 64, %s489, %s476
        $region36: #{tpu_custom_call.1} parent=15 // pred_fallthru
          _
        // Predicated region
        $region37: #{tpu_custom_call.1} parent=15 // pred_check
          %p492 = pneg %p190
        $region38: #{tpu_custom_call.1} parent=15 // pred_check_branch
          %494 = sbr.rel (%p492) target = $region40
        $region39: #{tpu_custom_call.1} parent=15 // pred_region
          %s495 = sand.u32 %s40, 1
          %s496 = scalar_lea.sflag [#allocation19], %s495
          %s497 = sand.u32 %s180, 1
          %s498 = smul.addr %s497, 4
          %s499 = scalar_lea.vmem [#allocation18], %s498
          %s500 = smul.u32 2, %s40
          %502 = vsyncadd %s496, 0
          %s503 = smul.addr %s500, 2
          %s504 = scalar_lea.hbm %s5, %s503
          %s506 = sshll.u32 %s504, 4
          %s507 = int_to_ptr.hbm [resolvable:$true] %s506
          %s508 = sshll.u32 %s499, 4
          %s509 = int_to_ptr.vmem [resolvable:$true] %s508
          %511 = dma.hbm_to_vmem [thread:$0]  %s507, 64, %s509, %s496
        $region40: #{tpu_custom_call.1} parent=15 // pred_fallthru
          _
        // Predicated region
        $region41: #{tpu_custom_call.1} parent=15 // pred_check
          %p512 = pneg %p216
        $region42: #{tpu_custom_call.1} parent=15 // pred_check_branch
          %514 = sbr.rel (%p512) target = $region44
        $region43: #{tpu_custom_call.1} parent=15 // pred_region
          %s515 = sand.u32 %s40, 1
          %s516 = scalar_lea.sflag [#allocation19], %s515
          %s517 = sand.u32 %s206, 1
          %s518 = smul.addr %s517, 4
          %s519 = scalar_lea.vmem [#allocation20], %s518
          %s520 = smul.u32 2, %s40
          %522 = vsyncadd %s516, 0
          %s523 = smul.addr %s520, 2
          %s524 = scalar_lea.hbm %s6, %s523
          %s526 = sshll.u32 %s524, 4
          %s527 = int_to_ptr.hbm [resolvable:$true] %s526
          %s528 = sshll.u32 %s519, 4
          %s529 = int_to_ptr.vmem [resolvable:$true] %s528
          %531 = dma.hbm_to_vmem [thread:$0]  %s527, 64, %s529, %s516
        $region44: #{tpu_custom_call.1} parent=15 // pred_fallthru
          _
        // Predicated region
        $region45: #{tpu_custom_call.1} parent=15 // pred_check
          %p532 = pneg %p242
        $region46: #{tpu_custom_call.1} parent=15 // pred_check_branch
          %534 = sbr.rel (%p532) target = $region48
        $region47: #{tpu_custom_call.1} parent=15 // pred_region
          %s535 = sand.u32 %s40, 1
          %s536 = scalar_lea.sflag [#allocation22], %s535
          %s537 = sand.u32 %s232, 1
          %s538 = smul.addr %s537, 4
          %s539 = scalar_lea.vmem [#allocation21], %s538
          %s540 = smul.u32 2, %s40
          %542 = vsyncadd %s536, 0
          %s543 = smul.addr %s540, 2
          %s544 = scalar_lea.hbm %s7, %s543
          %s546 = sshll.u32 %s544, 4
          %s547 = int_to_ptr.hbm [resolvable:$true] %s546
          %s548 = sshll.u32 %s539, 4
          %s549 = int_to_ptr.vmem [resolvable:$true] %s548
          %551 = dma.hbm_to_vmem [thread:$0]  %s547, 64, %s549, %s536
        $region48: #{tpu_custom_call.1} parent=15 // pred_fallthru
          _
        // Predicated region
        $region49: #{tpu_custom_call.1} parent=15 // pred_check
          %p552 = pneg %p268
        $region50: #{tpu_custom_call.1} parent=15 // pred_check_branch
          %554 = sbr.rel (%p552) target = $region52
        $region51: #{tpu_custom_call.1} parent=15 // pred_region
          %s555 = sand.u32 %s40, 1
          %s556 = scalar_lea.sflag [#allocation22], %s555
          %s557 = sand.u32 %s258, 1
          %s558 = smul.addr %s557, 4
          %s559 = scalar_lea.vmem [#allocation23], %s558
          %s560 = smul.u32 2, %s40
          %562 = vsyncadd %s556, 0
          %s563 = smul.addr %s560, 2
          %s564 = scalar_lea.hbm %s8, %s563
          %s566 = sshll.u32 %s564, 4
          %s567 = int_to_ptr.hbm [resolvable:$true] %s566
          %s568 = sshll.u32 %s559, 4
          %s569 = int_to_ptr.vmem [resolvable:$true] %s568
          %571 = dma.hbm_to_vmem [thread:$0]  %s567, 64, %s569, %s556
        $region52: #{tpu_custom_call.1} parent=15 // pred_fallthru
          _
        // Predicated region
        $region53: #{tpu_custom_call.1} parent=15 // pred_check
          %p572 = pneg %p294
        $region54: #{tpu_custom_call.1} parent=15 // pred_check_branch
          %574 = sbr.rel (%p572) target = $region56
        $region55: #{tpu_custom_call.1} parent=15 // pred_region
          %s575 = sand.u32 %s40, 1
          %s576 = scalar_lea.sflag [#allocation25], %s575
          %s577 = sand.u32 %s284, 1
          %s578 = smul.addr %s577, 4
          %s579 = scalar_lea.vmem [#allocation24], %s578
          %s580 = smul.u32 2, %s40
          %582 = vsyncadd %s576, 0
          %s583 = smul.addr %s580, 2
          %s584 = scalar_lea.hbm %s9, %s583
          %s586 = sshll.u32 %s584, 4
          %s587 = int_to_ptr.hbm [resolvable:$true] %s586
          %s588 = sshll.u32 %s579, 4
          %s589 = int_to_ptr.vmem [resolvable:$true] %s588
          %591 = dma.hbm_to_vmem [thread:$0]  %s587, 64, %s589, %s576
        $region56: #{tpu_custom_call.1} parent=15 // pred_fallthru
          _
        // Predicated region
        $region57: #{tpu_custom_call.1} parent=15 // pred_check
          %p592 = pneg %p320
        $region58: #{tpu_custom_call.1} parent=15 // pred_check_branch
          %594 = sbr.rel (%p592) target = $region60
        $region59: #{tpu_custom_call.1} parent=15 // pred_region
          %s595 = sand.u32 %s40, 1
          %s596 = scalar_lea.sflag [#allocation25], %s595
          %s597 = sand.u32 %s310, 1
          %s598 = smul.addr %s597, 4
          %s599 = scalar_lea.vmem [#allocation26], %s598
          %s600 = smul.u32 2, %s40
          %602 = vsyncadd %s596, 0
          %s603 = smul.addr %s600, 2
          %s604 = scalar_lea.hbm %s10, %s603
          %s606 = sshll.u32 %s604, 4
          %s607 = int_to_ptr.hbm [resolvable:$true] %s606
          %s608 = sshll.u32 %s599, 4
          %s609 = int_to_ptr.vmem [resolvable:$true] %s608
          %611 = dma.hbm_to_vmem [thread:$0]  %s607, 64, %s609, %s596
        $region60: #{tpu_custom_call.1} parent=15 // pred_fallthru
          _
        // Predicated region
        $region61: #{tpu_custom_call.1} parent=15 // pred_check
          %p612 = pneg %p346
        $region62: #{tpu_custom_call.1} parent=15 // pred_check_branch
          %614 = sbr.rel (%p612) target = $region64
        $region63: #{tpu_custom_call.1} parent=15 // pred_region
          %s615 = sand.u32 %s336, 1
          %s616 = scalar_lea.sflag [#allocation28], %s615
          %s617 = sand.u32 %s336, 1
          %s618 = smul.addr %s617, 4
          %s619 = scalar_lea.vmem [#allocation27], %s618
          %s620 = smul.u32 2, %s40
          %622 = vsyncadd %s616, 0
          %s623 = smul.addr %s620, 2
          %s624 = scalar_lea.hbm %s11, %s623
          %s626 = sshll.u32 %s624, 4
          %s627 = int_to_ptr.hbm [resolvable:$true] %s626
          %s628 = sshll.u32 %s619, 4
          %s629 = int_to_ptr.vmem [resolvable:$true] %s628
          %631 = dma.hbm_to_vmem [thread:$0]  %s627, 64, %s629, %s616
        $region64: #{tpu_custom_call.1} parent=15 // pred_fallthru
          _
      $region16: #{tpu_custom_call.1} parent=5 // pred_fallthru
        _
      %p632 = scmp.le.s32.totalorder 1, %s40
      %p633 = scmp.lt.s32.totalorder %s40, 5
      %p634 = pnand %p632, %p633
      %p635 = pneg %p634
      // Predicated region
      $region65: #{tpu_custom_call.1} parent=5 // pred_check
        _
      $region66: #{tpu_custom_call.1} parent=5 // pred_check_branch
        %637 = sbr.rel (%p634) target = $region68
      $region67: #{tpu_custom_call.1} parent=5 // pred_region
        %s638 = ssub.s32 %s40, 1
        %s639 = sand.u32 %s53, 1
        %s640 = scalar_lea.sflag [#allocation10], %s639
        %s641 = sand.u32 %s53, 1
        %s642 = smul.addr %s641, 4
        %s643 = scalar_lea.vmem [#allocation9], %s642
        // Predicated region
        $region69: #{tpu_custom_call.1} parent=67 // pred_check
          %p644 = pneg %p66
        $region70: #{tpu_custom_call.1} parent=67 // pred_check_branch
          %646 = sbr.rel (%p644) target = $region72
        $region71: #{tpu_custom_call.1} parent=67 // pred_region
          %648 = dma.done %s640, 64
        $region72: #{tpu_custom_call.1} parent=67 // pred_fallthru
          _
        %s649 = sand.u32 %s45, 1
        %s650 = scalar_lea.sflag [#allocation13], %s649
        %s651 = sand.u32 %s79, 1
        %s652 = smul.addr %s651, 4
        %s653 = scalar_lea.vmem [#allocation12], %s652
        // Predicated region
        $region73: #{tpu_custom_call.1} parent=67 // pred_check
          %p654 = pneg %p92
        $region74: #{tpu_custom_call.1} parent=67 // pred_check_branch
          %656 = sbr.rel (%p654) target = $region76
        $region75: #{tpu_custom_call.1} parent=67 // pred_region
          %658 = dma.done %s650, 64
        $region76: #{tpu_custom_call.1} parent=67 // pred_fallthru
          _
        %s659 = sand.u32 %s45, 1
        %s660 = scalar_lea.sflag [#allocation13], %s659
        %s661 = sand.u32 %s105, 1
        %s662 = smul.addr %s661, 4
        %s663 = scalar_lea.vmem [#allocation14], %s662
        // Predicated region
        $region77: #{tpu_custom_call.1} parent=67 // pred_check
          %p664 = pneg %p118
        $region78: #{tpu_custom_call.1} parent=67 // pred_check_branch
          %666 = sbr.rel (%p664) target = $region80
        $region79: #{tpu_custom_call.1} parent=67 // pred_region
          %668 = dma.done %s660, 64
        $region80: #{tpu_custom_call.1} parent=67 // pred_fallthru
          _
        %s669 = sand.u32 %s45, 1
        %s670 = scalar_lea.sflag [#allocation16], %s669
        %s671 = sand.u32 %s131, 1
        %s672 = smul.addr %s671, 4
        %s673 = scalar_lea.vmem [#allocation15], %s672
        // Predicated region
        $region81: #{tpu_custom_call.1} parent=67 // pred_check
          %p674 = pneg %p144
        $region82: #{tpu_custom_call.1} parent=67 // pred_check_branch
          %676 = sbr.rel (%p674) target = $region84
        $region83: #{tpu_custom_call.1} parent=67 // pred_region
          %678 = dma.done %s670, 64
        $region84: #{tpu_custom_call.1} parent=67 // pred_fallthru
          _
        %s679 = sand.u32 %s45, 1
        %s680 = scalar_lea.sflag [#allocation16], %s679
        %s681 = sand.u32 %s157, 1
        %s682 = smul.addr %s681, 4
        %s683 = scalar_lea.vmem [#allocation17], %s682
        // Predicated region
        $region85: #{tpu_custom_call.1} parent=67 // pred_check
          %p684 = pneg %p170
        $region86: #{tpu_custom_call.1} parent=67 // pred_check_branch
          %686 = sbr.rel (%p684) target = $region88
        $region87: #{tpu_custom_call.1} parent=67 // pred_region
          %688 = dma.done %s680, 64
        $region88: #{tpu_custom_call.1} parent=67 // pred_fallthru
          _
        %s689 = sand.u32 %s45, 1
        %s690 = scalar_lea.sflag [#allocation19], %s689
        %s691 = sand.u32 %s183, 1
        %s692 = smul.addr %s691, 4
        %s693 = scalar_lea.vmem [#allocation18], %s692
        // Predicated region
        $region89: #{tpu_custom_call.1} parent=67 // pred_check
          %p694 = pneg %p196
        $region90: #{tpu_custom_call.1} parent=67 // pred_check_branch
          %696 = sbr.rel (%p694) target = $region92
        $region91: #{tpu_custom_call.1} parent=67 // pred_region
          %698 = dma.done %s690, 64
        $region92: #{tpu_custom_call.1} parent=67 // pred_fallthru
          _
        %s699 = sand.u32 %s45, 1
        %s700 = scalar_lea.sflag [#allocation19], %s699
        %s701 = sand.u32 %s209, 1
        %s702 = smul.addr %s701, 4
        %s703 = scalar_lea.vmem [#allocation20], %s702
        // Predicated region
        $region93: #{tpu_custom_call.1} parent=67 // pred_check
          %p704 = pneg %p222
        $region94: #{tpu_custom_call.1} parent=67 // pred_check_branch
          %706 = sbr.rel (%p704) target = $region96
        $region95: #{tpu_custom_call.1} parent=67 // pred_region
          %708 = dma.done %s700, 64
        $region96: #{tpu_custom_call.1} parent=67 // pred_fallthru
          _
        %s709 = sand.u32 %s45, 1
        %s710 = scalar_lea.sflag [#allocation22], %s709
        %s711 = sand.u32 %s235, 1
        %s712 = smul.addr %s711, 4
        %s713 = scalar_lea.vmem [#allocation21], %s712
        // Predicated region
        $region97: #{tpu_custom_call.1} parent=67 // pred_check
          %p714 = pneg %p248
        $region98: #{tpu_custom_call.1} parent=67 // pred_check_branch
          %716 = sbr.rel (%p714) target = $region100
        $region99: #{tpu_custom_call.1} parent=67 // pred_region
          %718 = dma.done %s710, 64
        $region100: #{tpu_custom_call.1} parent=67 // pred_fallthru
          _
        %s719 = sand.u32 %s45, 1
        %s720 = scalar_lea.sflag [#allocation22], %s719
        %s721 = sand.u32 %s261, 1
        %s722 = smul.addr %s721, 4
        %s723 = scalar_lea.vmem [#allocation23], %s722
        // Predicated region
        $region101: #{tpu_custom_call.1} parent=67 // pred_check
          %p724 = pneg %p274
        $region102: #{tpu_custom_call.1} parent=67 // pred_check_branch
          %726 = sbr.rel (%p724) target = $region104
        $region103: #{tpu_custom_call.1} parent=67 // pred_region
          %728 = dma.done %s720, 64
        $region104: #{tpu_custom_call.1} parent=67 // pred_fallthru
          _
        %s729 = sand.u32 %s45, 1
        %s730 = scalar_lea.sflag [#allocation25], %s729
        %s731 = sand.u32 %s287, 1
        %s732 = smul.addr %s731, 4
        %s733 = scalar_lea.vmem [#allocation24], %s732
        // Predicated region
        $region105: #{tpu_custom_call.1} parent=67 // pred_check
          %p734 = pneg %p300
        $region106: #{tpu_custom_call.1} parent=67 // pred_check_branch
          %736 = sbr.rel (%p734) target = $region108
        $region107: #{tpu_custom_call.1} parent=67 // pred_region
          %738 = dma.done %s730, 64
        $region108: #{tpu_custom_call.1} parent=67 // pred_fallthru
          _
        %s739 = sand.u32 %s45, 1
        %s740 = scalar_lea.sflag [#allocation25], %s739
        %s741 = sand.u32 %s313, 1
        %s742 = smul.addr %s741, 4
        %s743 = scalar_lea.vmem [#allocation26], %s742
        // Predicated region
        $region109: #{tpu_custom_call.1} parent=67 // pred_check
          %p744 = pneg %p326
        $region110: #{tpu_custom_call.1} parent=67 // pred_check_branch
          %746 = sbr.rel (%p744) target = $region112
        $region111: #{tpu_custom_call.1} parent=67 // pred_region
          %748 = dma.done %s740, 64
        $region112: #{tpu_custom_call.1} parent=67 // pred_fallthru
          _
        %s749 = sand.u32 %s339, 1
        %s750 = scalar_lea.sflag [#allocation28], %s749
        %s751 = sand.u32 %s339, 1
        %s752 = smul.addr %s751, 4
        %s753 = scalar_lea.vmem [#allocation27], %s752
        // Predicated region
        $region113: #{tpu_custom_call.1} parent=67 // pred_check
          %p754 = pneg %p352
        $region114: #{tpu_custom_call.1} parent=67 // pred_check_branch
          %756 = sbr.rel (%p754) target = $region116
        $region115: #{tpu_custom_call.1} parent=67 // pred_region
          %758 = dma.done %s750, 64
        $region116: #{tpu_custom_call.1} parent=67 // pred_fallthru
          _
        %s759 = sand.u32 %s53, 1
        %s760 = scalar_lea.sflag [#allocation10], %s759
        %s761 = sand.u32 %s53, 1
        %s762 = smul.addr %s761, 4
        %s763 = scalar_lea.vmem [#allocation9], %s762
        %p764 = pneg %p66
        %p765 = pneg %p63
        %s766 = sand.u32 %s45, 1
        %s767 = scalar_lea.sflag [#allocation13], %s766
        %s768 = sand.u32 %s79, 1
        %s769 = smul.addr %s768, 4
        %s770 = scalar_lea.vmem [#allocation12], %s769
        %p771 = pneg %p92
        %p772 = pneg %p89
        %s773 = sand.u32 %s45, 1
        %s774 = scalar_lea.sflag [#allocation13], %s773
        %s775 = sand.u32 %s105, 1
        %s776 = smul.addr %s775, 4
        %s777 = scalar_lea.vmem [#allocation14], %s776
        %p778 = pneg %p118
        %p779 = pneg %p115
        %s780 = sand.u32 %s45, 1
        %s781 = scalar_lea.sflag [#allocation16], %s780
        %s782 = sand.u32 %s131, 1
        %s783 = smul.addr %s782, 4
        %s784 = scalar_lea.vmem [#allocation15], %s783
        %p785 = pneg %p144
        %p786 = pneg %p141
        %s787 = sand.u32 %s45, 1
        %s788 = scalar_lea.sflag [#allocation16], %s787
        %s789 = sand.u32 %s157, 1
        %s790 = smul.addr %s789, 4
        %s791 = scalar_lea.vmem [#allocation17], %s790
        %p792 = pneg %p170
        %p793 = pneg %p167
        %s794 = sand.u32 %s45, 1
        %s795 = scalar_lea.sflag [#allocation19], %s794
        %s796 = sand.u32 %s183, 1
        %s797 = smul.addr %s796, 4
        %s798 = scalar_lea.vmem [#allocation18], %s797
        %p799 = pneg %p196
        %p800 = pneg %p193
        %s801 = sand.u32 %s45, 1
        %s802 = scalar_lea.sflag [#allocation19], %s801
        %s803 = sand.u32 %s209, 1
        %s804 = smul.addr %s803, 4
        %s805 = scalar_lea.vmem [#allocation20], %s804
        %p806 = pneg %p222
        %p807 = pneg %p219
        %s808 = sand.u32 %s45, 1
        %s809 = scalar_lea.sflag [#allocation22], %s808
        %s810 = sand.u32 %s235, 1
        %s811 = smul.addr %s810, 4
        %s812 = scalar_lea.vmem [#allocation21], %s811
        %p813 = pneg %p248
        %p814 = pneg %p245
        %s815 = sand.u32 %s45, 1
        %s816 = scalar_lea.sflag [#allocation22], %s815
        %s817 = sand.u32 %s261, 1
        %s818 = smul.addr %s817, 4
        %s819 = scalar_lea.vmem [#allocation23], %s818
        %p820 = pneg %p274
        %p821 = pneg %p271
        %s822 = sand.u32 %s45, 1
        %s823 = scalar_lea.sflag [#allocation25], %s822
        %s824 = sand.u32 %s287, 1
        %s825 = smul.addr %s824, 4
        %s826 = scalar_lea.vmem [#allocation24], %s825
        %p827 = pneg %p300
        %p828 = pneg %p297
        %s829 = sand.u32 %s45, 1
        %s830 = scalar_lea.sflag [#allocation25], %s829
        %s831 = sand.u32 %s313, 1
        %s832 = smul.addr %s831, 4
        %s833 = scalar_lea.vmem [#allocation26], %s832
        %p834 = pneg %p326
        %p835 = pneg %p323
        %s836 = sand.u32 %s339, 1
        %s837 = scalar_lea.sflag [#allocation28], %s836
        %s838 = sand.u32 %s339, 1
        %s839 = smul.addr %s838, 4
        %s840 = scalar_lea.vmem [#allocation27], %s839
        %p841 = pneg %p352
        %p842 = pneg %p349
        %p843 = pneg %p373
        %p844 = pneg %p370
        %s845 = smul.u32 2, %s45
        %s846 = smul.u32 2, %s45
        %s847 = smul.u32 2, %s45
        %s848 = smul.u32 2, %s45
        %s849 = smul.u32 2, %s45
        %s850 = smul.u32 2, %s45
        %s851 = smul.u32 2, %s45
        %s852 = smul.u32 2, %s45
        %s853 = smul.u32 2, %s45
        %s854 = smul.u32 2, %s45
        %s855 = smul.u32 2, %s45
        %s856 = smul.u32 2, %s45
        %p857 = scmp.eq.s32.totalorder %s45, 0
        // Predicated region
        $region117: #{tpu_custom_call.1} parent=67 // pred_check
          %p858 = pneg %p857
        $region118: #{tpu_custom_call.1} parent=67 // pred_check_branch
          %860 = sbr.rel (%p858) target = $region120
        $region119: #{tpu_custom_call.1} parent=67 // pred_region
          %s861 = scalar_lea.smem [#allocation2], 0
          %862 = sst [smem:[%s861]] 0.0
          %s863 = scalar_lea.smem [#allocation2], 1
          %864 = sst [smem:[%s863]] 0.0
          %s865 = scalar_lea.smem [#allocation2], 2
          %866 = sst [smem:[%s865]] 0.0
          %s867 = scalar_lea.smem [#allocation2], 3
          %868 = sst [smem:[%s867]] 0.0
          %s869 = scalar_lea.smem [#allocation2], 4
          %870 = sst [smem:[%s869]] 0.0
          %s871 = scalar_lea.smem [#allocation2], 5
          %872 = sst [smem:[%s871]] 0.0
          %s873 = scalar_lea.smem [#allocation2], 6
          %874 = sst [smem:[%s873]] 0.0
          %s875 = scalar_lea.smem [#allocation2], 7
          %876 = sst [smem:[%s875]] 0.0
          %s877 = scalar_lea.smem [#allocation2], 8
          %878 = sst [smem:[%s877]] 0.0
          %vm879 = vcmask 58368
          %880 = vst.msk [vmem:[#allocation3] sm:$0x3] %vm879, -inf
          %881 = vst.msk [vmem:[#allocation4] sm:$0x3] %vm879, 0.0
          %882 = vst.msk [vmem:[#allocation5] sm:$0x3] %vm879, 0.0
          %883 = vst.msk [vmem:[#allocation6] sm:$0x3] %vm879, 0.0
          %884 = vst.msk [vmem:[#allocation7] sm:$0x3] %vm879, 0.0
          %885 = vst.msk [vmem:[#allocation8] sm:$0x3] %vm879, 0.0
        $region120: #{tpu_custom_call.1} parent=67 // pred_fallthru
          _
        %v886 = vld [vmem:[%s643] sm:$0xf]
        %v887 = vld [vmem:[%s653] sm:$0xf]
        %v888 = vld [vmem:[%s663] sm:$0xf]
        %v889 = vld [vmem:[%s673] sm:$0xf]
        %v890 = vld [vmem:[%s683] sm:$0xf]
        %v891 = vld [vmem:[%s693] sm:$0xf]
        %v892 = vld [vmem:[%s703] sm:$0xf]
        %v893 = vld [vmem:[%s713] sm:$0xf]
        %v894 = vld [vmem:[%s723] sm:$0xf]
        %v895 = vld [vmem:[%s733] sm:$0xf]
        %v896 = vld [vmem:[%s743] sm:$0xf]
        %v897 = vld [vmem:[%s753] sm:$0xf]
        %v898 = vsub.f32 0.0, %v886
        %v899 = vmax.f32 %v898, 0.0
        %vm900 = vcmp.ne.f32.partialorder %v898, %v898
        %v901 = vadd.f32 %v898, 0.0
        %v902 = vand.u32 2147483647, %v898
        %v903 = vsub.f32 0.0, %v902
        %v904 = vmul.f32 %v903, 1.442695
        %v905 = vpow.pop %v904
        %v906 = vadd.f32 %v905, 1.0
        %v907 = vlog2.pop %v906
        %v908 = vmul.f32 %v907, 0.6931472
        %v909 = vmul.f32 -0.5, %v905
        %v910 = vadd.f32 %v909, 1.0
        %v911 = vmul.f32 %v910, %v905
        %v912 = vand.u32 2147483647, %v905
        %vm913 = vcmp.lt.f32.partialorder %v912, 0.0004427343
        %v914 = vsel %vm913, %v911, %v908
        %v915 = vadd.f32 %v899, %v914
        %v916 = vsel %vm900, %v901, %v915
        %v917 = vsub.f32 0.0, %v916
        %v918 = vmul.f32 %v917, 1.442695
        %v919 = vpow.pop %v918
        %vm920 = vcmp.eq.f32.partialorder %v887, 1.0
        %v921 = vsel %vm920, 1, 0
        %v922 = vcvt.s32.f32 %v921
        %v923 = vsub.f32 1.0, %v922
        %vm924 = vcmp.ne.f32.partialorder %v887, -100.0
        %v925 = vsel %vm924, 1, 0
        %v926 = vcvt.s32.f32 %v925
        %v927 = vsub.f32 1.0, %v919
        %v928 = vmul.f32 %v927, %v927
        %v929 = vsub.f32 0.0, %v928
        %v930 = vmul.f32 %v929, %v917
        %v931 = vmul.f32 %v930, %v922
        %v932 = vsub.f32 1.0, %v887
        %v933 = vmul.f32 %v932, %v932
        %v934 = vmul.f32 %v933, %v933
        %v935 = vsub.f32 0.0, %v934
        %v936 = vmul.f32 %v919, %v919
        %v937 = vmul.f32 %v935, %v936
        %v938 = vsub.f32 %v917, %v886
        %v939 = vmul.f32 %v937, %v938
        %v940 = vmul.f32 %v923, %v926
        %v941 = vmul.f32 %v939, %v940
        %v942 = vmul.f32 %v927, %v886
        %v943 = vsub.f32 %v942, %v917
        %v944 = vmul.f32 %v887, %v926
        %v945 = vsub.f32 0.0, %v888
        %v946 = vmax.f32 %v945, 0.0
        %vm947 = vcmp.ne.f32.partialorder %v945, %v945
        %v948 = vadd.f32 %v945, 0.0
        %v949 = vand.u32 2147483647, %v945
        %v950 = vsub.f32 0.0, %v949
        %v951 = vmul.f32 %v950, 1.442695
        %v952 = vpow.pop %v951
        %v953 = vadd.f32 %v952, 1.0
        %v954 = vlog2.pop %v953
        %v955 = vmul.f32 %v954, 0.6931472
        %v956 = vmul.f32 -0.5, %v952
        %v957 = vadd.f32 %v956, 1.0
        %v958 = vmul.f32 %v957, %v952
        %v959 = vand.u32 2147483647, %v952
        %vm960 = vcmp.lt.f32.partialorder %v959, 0.0004427343
        %v961 = vsel %vm960, %v958, %v955
        %v962 = vadd.f32 %v946, %v961
        %v963 = vsel %vm947, %v948, %v962
        %v964 = vsub.f32 0.0, %v963
        %v965 = vsub.f32 1.0, %v889
        %v966 = vmul.f32 %v965, %v888
        %v967 = vsub.f32 %v966, %v964
        %vm968 = vcmp.ne.f32.partialorder %v889, -100.0
        %v969 = vsel %vm968, 1, 0
        %v970 = vcvt.s32.f32 %v969
        %v971 = vmul.f32 %v967, %v970
        %v972 = vmul.f32 %v971, %v944
        %v973 = vmul.f32 %v964, 1.442695
        %v974 = vpow.pop %v973
        %v975 = vsub.f32 1.0, %v974
        %v976 = vmul.f32 %v975, %v888
        %v977 = vsub.f32 %v976, %v964
        %v978 = vsub.f32 0.0, %v890
        %v979 = vmax.f32 %v978, 0.0
        %vm980 = vcmp.ne.f32.partialorder %v978, %v978
        %v981 = vadd.f32 %v978, 0.0
        %v982 = vand.u32 2147483647, %v978
        %v983 = vsub.f32 0.0, %v982
        %v984 = vmul.f32 %v983, 1.442695
        %v985 = vpow.pop %v984
        %v986 = vadd.f32 %v985, 1.0
        %v987 = vlog2.pop %v986
        %v988 = vmul.f32 %v987, 0.6931472
        %v989 = vmul.f32 -0.5, %v985
        %v990 = vadd.f32 %v989, 1.0
        %v991 = vmul.f32 %v990, %v985
        %v992 = vand.u32 2147483647, %v985
        %vm993 = vcmp.lt.f32.partialorder %v992, 0.0004427343
        %v994 = vsel %vm993, %v991, %v988
        %v995 = vadd.f32 %v979, %v994
        %v996 = vsel %vm980, %v981, %v995
        %v997 = vsub.f32 0.0, %v996
        %v998 = vsub.f32 1.0, %v891
        %v999 = vmul.f32 %v998, %v890
        %v1000 = vsub.f32 %v999, %v997
        %vm1001 = vcmp.ne.f32.partialorder %v891, -100.0
        %v1002 = vsel %vm1001, 1, 0
        %v1003 = vcvt.s32.f32 %v1002
        %v1004 = vmul.f32 %v1000, %v1003
        %v1005 = vmul.f32 %v1004, %v944
        %v1006 = vmul.f32 %v997, 1.442695
        %v1007 = vpow.pop %v1006
        %v1008 = vsub.f32 1.0, %v1007
        %v1009 = vmul.f32 %v1008, %v890
        %v1010 = vsub.f32 %v1009, %v997
        %vm1011 = vcmp.gt.f32.partialorder %v893, 0.0
        %v1012 = vsel %vm1011, 1, 0
        %v1013 = vcvt.s32.f32 %v1012
        %v1014 = vmul.f32 %v922, %v1013
        %v1015 = vsub.f32 %v892, %v893
        %v1016 = vmul.f32 %v1015, %v1015
        %v1017 = vmul.f32 %v1016, %v1014
        %v1018 = vsub.f32 %v894, %v896
        %v1019 = vsub.f32 %v895, %v897
        %v1020 = vmul.f32 %v1018, %v1018
        %v1021 = vmul.f32 %v1019, %v1019
        %v1022 = vadd.f32 %v1020, %v1021
        %v1023 = vmul.f32 %v1022, %v922
        %s1024 = sld [smem:[#allocation2]]
        %1026 = vst [vmem:[#allocation1] ss:$4 sm:$0xff] %v931
        %v1027 = vld.sshfl [vmem:[#allocation1] sm:$0xff pattern:$0x73625140]
        %v1028 = vld.sshfl [vmem:[#allocation1 + $0x8] sm:$0xff pattern:$0x73625140]
        %vm1031 = vcmask 1041408
        %v1032 = vsel %vm1031, %v1027, 0.0
        %v1033 = vsel %vm1031, %v1028, 0.0
        %v1034 = vadd.f32 %v1032, %v1033
        %1035 = vadd.xlane.f32.xlu0 %v1034
        %v1036 = vpop.xlane.xlu0 %1035
        %v1037 = vrot.slane %v1036, 4
        %v1038 = vadd.f32 %v1036, %v1037
        %v1039 = vrot.slane %v1038, 2
        %v1040 = vadd.f32 %v1038, %v1039
        %v1041 = vrot.slane %v1040, 1
        %v1042 = vadd.f32 %v1040, %v1041
        %s1043 = vtos %v1042
        %s1044 = sadd.f32 %s1024, %s1043
        %s1045 = scalar_lea.smem [#allocation2], 0
        %1046 = sst [smem:[%s1045]] %s1044
        %s1047 = sld [smem:[#allocation2 + $0x1]]
        %1049 = vst [vmem:[#allocation1] ss:$4 sm:$0xff] %v941
        %v1050 = vld.sshfl [vmem:[#allocation1] sm:$0xff pattern:$0x73625140]
        %v1051 = vld.sshfl [vmem:[#allocation1 + $0x8] sm:$0xff pattern:$0x73625140]
        %v1054 = vsel %vm1031, %v1050, 0.0
        %v1055 = vsel %vm1031, %v1051, 0.0
        %v1056 = vadd.f32 %v1054, %v1055
        %1057 = vadd.xlane.f32.xlu0 %v1056
        %v1058 = vpop.xlane.xlu0 %1057
        %v1059 = vrot.slane %v1058, 4
        %v1060 = vadd.f32 %v1058, %v1059
        %v1061 = vrot.slane %v1060, 2
        %v1062 = vadd.f32 %v1060, %v1061
        %v1063 = vrot.slane %v1062, 1
        %v1064 = vadd.f32 %v1062, %v1063
        %s1065 = vtos %v1064
        %s1066 = sadd.f32 %s1047, %s1065
        %s1067 = scalar_lea.smem [#allocation2], 1
        %1068 = sst [smem:[%s1067]] %s1066
        %s1069 = sld [smem:[#allocation2 + $0x2]]
        %1071 = vst [vmem:[#allocation1] ss:$4 sm:$0xff] %v972
        %v1072 = vld.sshfl [vmem:[#allocation1] sm:$0xff pattern:$0x73625140]
        %v1073 = vld.sshfl [vmem:[#allocation1 + $0x8] sm:$0xff pattern:$0x73625140]
        %v1076 = vsel %vm1031, %v1072, 0.0
        %v1077 = vsel %vm1031, %v1073, 0.0
        %v1078 = vadd.f32 %v1076, %v1077
        %1079 = vadd.xlane.f32.xlu0 %v1078
        %v1080 = vpop.xlane.xlu0 %1079
        %v1081 = vrot.slane %v1080, 4
        %v1082 = vadd.f32 %v1080, %v1081
        %v1083 = vrot.slane %v1082, 2
        %v1084 = vadd.f32 %v1082, %v1083
        %v1085 = vrot.slane %v1084, 1
        %v1086 = vadd.f32 %v1084, %v1085
        %s1087 = vtos %v1086
        %s1088 = sadd.f32 %s1069, %s1087
        %s1089 = scalar_lea.smem [#allocation2], 2
        %1090 = sst [smem:[%s1089]] %s1088
        %s1091 = sld [smem:[#allocation2 + $0x3]]
        %1093 = vst [vmem:[#allocation1] ss:$4 sm:$0xff] %v1005
        %v1094 = vld.sshfl [vmem:[#allocation1] sm:$0xff pattern:$0x73625140]
        %v1095 = vld.sshfl [vmem:[#allocation1 + $0x8] sm:$0xff pattern:$0x73625140]
        %v1098 = vsel %vm1031, %v1094, 0.0
        %v1099 = vsel %vm1031, %v1095, 0.0
        %v1100 = vadd.f32 %v1098, %v1099
        %1101 = vadd.xlane.f32.xlu0 %v1100
        %v1102 = vpop.xlane.xlu0 %1101
        %v1103 = vrot.slane %v1102, 4
        %v1104 = vadd.f32 %v1102, %v1103
        %v1105 = vrot.slane %v1104, 2
        %v1106 = vadd.f32 %v1104, %v1105
        %v1107 = vrot.slane %v1106, 1
        %v1108 = vadd.f32 %v1106, %v1107
        %s1109 = vtos %v1108
        %s1110 = sadd.f32 %s1091, %s1109
        %s1111 = scalar_lea.smem [#allocation2], 3
        %1112 = sst [smem:[%s1111]] %s1110
        %s1113 = sld [smem:[#allocation2 + $0x4]]
        %1115 = vst [vmem:[#allocation1] ss:$4 sm:$0xff] %v1017
        %v1116 = vld.sshfl [vmem:[#allocation1] sm:$0xff pattern:$0x73625140]
        %v1117 = vld.sshfl [vmem:[#allocation1 + $0x8] sm:$0xff pattern:$0x73625140]
        %v1120 = vsel %vm1031, %v1116, 0.0
        %v1121 = vsel %vm1031, %v1117, 0.0
        %v1122 = vadd.f32 %v1120, %v1121
        %1123 = vadd.xlane.f32.xlu0 %v1122
        %v1124 = vpop.xlane.xlu0 %1123
        %v1125 = vrot.slane %v1124, 4
        %v1126 = vadd.f32 %v1124, %v1125
        %v1127 = vrot.slane %v1126, 2
        %v1128 = vadd.f32 %v1126, %v1127
        %v1129 = vrot.slane %v1128, 1
        %v1130 = vadd.f32 %v1128, %v1129
        %s1131 = vtos %v1130
        %s1132 = sadd.f32 %s1113, %s1131
        %s1133 = scalar_lea.smem [#allocation2], 4
        %1134 = sst [smem:[%s1133]] %s1132
        %s1135 = sld [smem:[#allocation2 + $0x5]]
        %1137 = vst [vmem:[#allocation1] ss:$4 sm:$0xff] %v1023
        %v1138 = vld.sshfl [vmem:[#allocation1] sm:$0xff pattern:$0x73625140]
        %v1139 = vld.sshfl [vmem:[#allocation1 + $0x8] sm:$0xff pattern:$0x73625140]
        %v1142 = vsel %vm1031, %v1138, 0.0
        %v1143 = vsel %vm1031, %v1139, 0.0
        %v1144 = vadd.f32 %v1142, %v1143
        %1145 = vadd.xlane.f32.xlu0 %v1144
        %v1146 = vpop.xlane.xlu0 %1145
        %v1147 = vrot.slane %v1146, 4
        %v1148 = vadd.f32 %v1146, %v1147
        %v1149 = vrot.slane %v1148, 2
        %v1150 = vadd.f32 %v1148, %v1149
        %v1151 = vrot.slane %v1150, 1
        %v1152 = vadd.f32 %v1150, %v1151
        %s1153 = vtos %v1152
        %s1154 = sadd.f32 %s1135, %s1153
        %s1155 = scalar_lea.smem [#allocation2], 5
        %1156 = sst [smem:[%s1155]] %s1154
        %s1157 = sld [smem:[#allocation2 + $0x6]]
        %1159 = vst [vmem:[#allocation1] ss:$4 sm:$0xff] %v922
        %v1160 = vld.sshfl [vmem:[#allocation1] sm:$0xff pattern:$0x73625140]
        %v1161 = vld.sshfl [vmem:[#allocation1 + $0x8] sm:$0xff pattern:$0x73625140]
        %v1164 = vsel %vm1031, %v1160, 0.0
        %v1165 = vsel %vm1031, %v1161, 0.0
        %v1166 = vadd.f32 %v1164, %v1165
        %1167 = vadd.xlane.f32.xlu0 %v1166
        %v1168 = vpop.xlane.xlu0 %1167
        %v1169 = vrot.slane %v1168, 4
        %v1170 = vadd.f32 %v1168, %v1169
        %v1171 = vrot.slane %v1170, 2
        %v1172 = vadd.f32 %v1170, %v1171
        %v1173 = vrot.slane %v1172, 1
        %v1174 = vadd.f32 %v1172, %v1173
        %s1175 = vtos %v1174
        %s1176 = sadd.f32 %s1157, %s1175
        %s1177 = scalar_lea.smem [#allocation2], 6
        %1178 = sst [smem:[%s1177]] %s1176
        %s1179 = sld [smem:[#allocation2 + $0x7]]
        %vm1180 = vcmp.eq.f32.partialorder %v889, 1.0
        %vm1181 = vmand %vm1180, %vm920
        %v1182 = vsel %vm1181, 1, 0
        %v1183 = vcvt.s32.f32 %v1182
        %1185 = vst [vmem:[#allocation1] ss:$4 sm:$0xff] %v1183
        %v1186 = vld.sshfl [vmem:[#allocation1] sm:$0xff pattern:$0x73625140]
        %v1187 = vld.sshfl [vmem:[#allocation1 + $0x8] sm:$0xff pattern:$0x73625140]
        %v1190 = vsel %vm1031, %v1186, 0.0
        %v1191 = vsel %vm1031, %v1187, 0.0
        %v1192 = vadd.f32 %v1190, %v1191
        %1193 = vadd.xlane.f32.xlu0 %v1192
        %v1194 = vpop.xlane.xlu0 %1193
        %v1195 = vrot.slane %v1194, 4
        %v1196 = vadd.f32 %v1194, %v1195
        %v1197 = vrot.slane %v1196, 2
        %v1198 = vadd.f32 %v1196, %v1197
        %v1199 = vrot.slane %v1198, 1
        %v1200 = vadd.f32 %v1198, %v1199
        %s1201 = vtos %v1200
        %s1202 = sadd.f32 %s1179, %s1201
        %s1203 = scalar_lea.smem [#allocation2], 7
        %1204 = sst [smem:[%s1203]] %s1202
        %s1205 = sld [smem:[#allocation2 + $0x8]]
        %1207 = vst [vmem:[#allocation1] ss:$4 sm:$0xff] %v1014
        %v1208 = vld.sshfl [vmem:[#allocation1] sm:$0xff pattern:$0x73625140]
        %v1209 = vld.sshfl [vmem:[#allocation1 + $0x8] sm:$0xff pattern:$0x73625140]
        %v1212 = vsel %vm1031, %v1208, 0.0
        %v1213 = vsel %vm1031, %v1209, 0.0
        %v1214 = vadd.f32 %v1212, %v1213
        %1215 = vadd.xlane.f32.xlu0 %v1214
        %v1216 = vpop.xlane.xlu0 %1215
        %v1217 = vrot.slane %v1216, 4
        %v1218 = vadd.f32 %v1216, %v1217
        %v1219 = vrot.slane %v1218, 2
        %v1220 = vadd.f32 %v1218, %v1219
        %v1221 = vrot.slane %v1220, 1
        %v1222 = vadd.f32 %v1220, %v1221
        %s1223 = vtos %v1222
        %s1224 = sadd.f32 %s1205, %s1223
        %s1225 = scalar_lea.smem [#allocation2], 8
        %1226 = sst [smem:[%s1225]] %s1224
        %v1227 = vsub.f32 %v941, %v943
        %v1228 = vsub.f32 %v972, %v977
        %v1229 = vsub.f32 %v1005, %v1010
        %v1230 = vld [vmem:[#allocation3] sm:$0x3]
        %vm1231 = vcmask 58368
        %v1232 = vsel %vm1231, %v1230, inf
        %1233 = vmin.xlane.f32.xlu0 %v1232
        %v1234 = vpop.xlane.xlu0 %1233
        %1235 = vst [vmem:[#allocation1] ss:$4 sm:$0xff] %v941
        %v1236 = vld.sshfl [vmem:[#allocation1] sm:$0xff pattern:$0x73625140]
        %v1237 = vld.sshfl [vmem:[#allocation1 + $0x8] sm:$0xff pattern:$0x73625140]
        %v1240 = vsel %vm1031, %v1236, -inf
        %v1241 = vsel %vm1031, %v1237, -inf
        %v1242 = vmax.f32 %v1240, %v1241
        %1243 = vmax.xlane.f32.xlu0 %v1242
        %v1244 = vpop.xlane.xlu0 %1243
        %vm1245 = vcmp.gt.f32.partialorder %v1244, %v1234
        %v1246 = vsel %vm1245, 1, 0
        %v1247 = vcvt.s32.f32 %v1246
        %v1248 = vsel %vm1031, %v1247, -inf
        %v1249 = vrot.slane %v1248, 4
        %v1250 = vmax.f32 %v1248, %v1249
        %v1251 = vrot.slane %v1250, 2
        %v1252 = vmax.f32 %v1250, %v1251
        %v1253 = vrot.slane %v1252, 1
        %v1254 = vmax.f32 %v1252, %v1253
        %s1255 = vtos %v1254
        %p1256 = scmp.gt.f32.partialorder %s1255, 0.0
        // Predicated region
        $region121: #{tpu_custom_call.1} parent=67 // pred_check
          %p1257 = pneg %p1256
        $region122: #{tpu_custom_call.1} parent=67 // pred_check_branch
          %1259 = sbr.rel (%p1257) target = $region124
        $region123: #{tpu_custom_call.1} parent=67 // pred_region
          %v1260 = vlaneseq
          %v1261 = vand.u32 %v1260, 127
          %v1262 = vadd.s32 %v1261, 128
          %v1263 = vld [vmem:[#allocation3] sm:$0x3]
          %v1264 = vsel %vm1231, %v1263, inf
          %1265 = vmin.xlane.f32.xlu0 %v1264
          %v1266 = vpop.xlane.xlu0 %1265
          %vm1267 = vcmp.gt.f32.partialorder %v1244, %v1266
          %v1270 = vunpack.c.l.s4 269488144
          %v1271 = vunpack.c.0.s8 %v1270
          %v1272 = vperm.slane %v1244, %v1271
          %vm1274 = vcmp.eq.f32.partialorder %v941, %v1272
          %v1275 = vrot.slane %v1262, 6
          %v1276 = vsel %vm1031, %v1261, %v1275
          %v1277 = vsel %vm1274, %v1276, 256
          %1278 = vst [vmem:[#allocation1] ss:$4 sm:$0xff] %v1277
          %v1279 = vld.sshfl [vmem:[#allocation1] sm:$0xff pattern:$0x73625140]
          %v1280 = vld.sshfl [vmem:[#allocation1 + $0x8] sm:$0xff pattern:$0x73625140]
          %v1281 = vsel %vm1031, %v1279, 2147483647
          %v1282 = vsel %vm1031, %v1280, 2147483647
          %vm1283 = vcmp.lt.s32.totalorder %v1281, %v1282
          %v1284 = vsel %vm1283, %v1281, %v1282
          %v1285 = vand.u32 %v1284, 65535
          %v1286 = vshra.s32 %v1284, 16
          %v1287 = vcvt.s32.f32 %v1285
          %v1288 = vcvt.s32.f32 %v1286
          %1289 = vmin.xlane.f32.xlu0 %v1288
          %v1290 = vpop.xlane.xlu0 %1289
          %vm1291 = vcmp.eq.f32.partialorder %v1288, %v1290
          %v1292 = vsel %vm1291, %v1287, inf
          %1293 = vmin.xlane.f32.xlu0 %v1292
          %v1294 = vpop.xlane.xlu0 %1293
          %v1295 = vcvt.f32.s32 %v1294
          %v1296 = vcvt.f32.s32 %v1290
          %v1297 = vshll.u32 %v1296, 16
          %v1298 = vadd.s32 %v1297, %v1295
          %vm1299 = vcmp.eq.s32.totalorder %v1261, %v1298
          %vm1300 = vcmp.eq.s32.totalorder %v1262, %v1298
          %v1301 = vsel %vm1299, 1, 0
          %v1302 = vsel %vm1300, 1, 0
          %v1303 = vcvt.s32.f32 %v1301
          %v1304 = vcvt.s32.f32 %v1302
          %v1307 = vrot.slane %v1304, 6
          %v1308 = vsel %vm1031, %v1303, %v1307
          %v1310 = vmul.f32 %v1227, %v1308
          %1312 = vst [vmem:[#allocation1] ss:$4 sm:$0xff] %v1310
          %v1313 = vld.sshfl [vmem:[#allocation1] sm:$0xff pattern:$0x73625140]
          %v1314 = vld.sshfl [vmem:[#allocation1 + $0x8] sm:$0xff pattern:$0x73625140]
          %v1317 = vsel %vm1031, %v1313, 0.0
          %v1318 = vsel %vm1031, %v1314, 0.0
          %v1319 = vadd.f32 %v1317, %v1318
          %1320 = vadd.xlane.f32.xlu0 %v1319
          %v1321 = vpop.xlane.xlu0 %1320
          %v1322 = vmul.f32 %v1228, %v1308
          %1324 = vst [vmem:[#allocation1] ss:$4 sm:$0xff] %v1322
          %v1325 = vld.sshfl [vmem:[#allocation1] sm:$0xff pattern:$0x73625140]
          %v1326 = vld.sshfl [vmem:[#allocation1 + $0x8] sm:$0xff pattern:$0x73625140]
          %v1329 = vsel %vm1031, %v1325, 0.0
          %v1330 = vsel %vm1031, %v1326, 0.0
          %v1331 = vadd.f32 %v1329, %v1330
          %1332 = vadd.xlane.f32.xlu0 %v1331
          %v1333 = vpop.xlane.xlu0 %1332
          %v1334 = vmul.f32 %v1229, %v1308
          %1336 = vst [vmem:[#allocation1] ss:$4 sm:$0xff] %v1334
          %v1337 = vld.sshfl [vmem:[#allocation1] sm:$0xff pattern:$0x73625140]
          %v1338 = vld.sshfl [vmem:[#allocation1 + $0x8] sm:$0xff pattern:$0x73625140]
          %v1341 = vsel %vm1031, %v1337, 0.0
          %v1342 = vsel %vm1031, %v1338, 0.0
          %v1343 = vadd.f32 %v1341, %v1342
          %1344 = vadd.xlane.f32.xlu0 %v1343
          %v1345 = vpop.xlane.xlu0 %1344
          %v1346 = vmul.f32 %v1017, %v1308
          %1348 = vst [vmem:[#allocation1] ss:$4 sm:$0xff] %v1346
          %v1349 = vld.sshfl [vmem:[#allocation1] sm:$0xff pattern:$0x73625140]
          %v1350 = vld.sshfl [vmem:[#allocation1 + $0x8] sm:$0xff pattern:$0x73625140]
          %v1353 = vsel %vm1031, %v1349, 0.0
          %v1354 = vsel %vm1031, %v1350, 0.0
          %v1355 = vadd.f32 %v1353, %v1354
          %1356 = vadd.xlane.f32.xlu0 %v1355
          %v1357 = vpop.xlane.xlu0 %1356
          %v1358 = vmul.f32 %v1023, %v1308
          %1360 = vst [vmem:[#allocation1] ss:$4 sm:$0xff] %v1358
          %v1361 = vld.sshfl [vmem:[#allocation1] sm:$0xff pattern:$0x73625140]
          %v1362 = vld.sshfl [vmem:[#allocation1 + $0x8] sm:$0xff pattern:$0x73625140]
          %v1365 = vsel %vm1031, %v1361, 0.0
          %v1366 = vsel %vm1031, %v1362, 0.0
          %v1367 = vadd.f32 %v1365, %v1366
          %1368 = vadd.xlane.f32.xlu0 %v1367
          %v1369 = vpop.xlane.xlu0 %1368
          %vm1370 = vcmp.eq.f32.partialorder %v1263, %v1266
          %v1371 = vsel %vm1370, %v1261, 8
          %v1372 = vsel %vm1231, %v1371, 2147483647
          %v1373 = vand.u32 %v1372, 65535
          %v1374 = vshra.s32 %v1372, 16
          %v1375 = vcvt.s32.f32 %v1373
          %v1376 = vcvt.s32.f32 %v1374
          %1377 = vmin.xlane.f32.xlu0 %v1376
          %v1378 = vpop.xlane.xlu0 %1377
          %vm1379 = vcmp.eq.f32.partialorder %v1376, %v1378
          %v1380 = vsel %vm1379, %v1375, inf
          %1381 = vmin.xlane.f32.xlu0 %v1380
          %v1382 = vpop.xlane.xlu0 %1381
          %v1383 = vcvt.f32.s32 %v1382
          %v1384 = vcvt.f32.s32 %v1378
          %v1385 = vshll.u32 %v1384, 16
          %v1386 = vadd.s32 %v1385, %v1383
          %vm1387 = vcmp.eq.s32.totalorder %v1261, %v1386
          %v1388 = vsel %vm1267, 1, 0
          %vm1389 = vcmp.eq.s32.totalorder %v1388, 1
          %vm1390 = vmand %vm1387, %vm1389
          %v1391 = vsel %vm1390, %v1244, %v1263
          %1392 = vst.msk [vmem:[#allocation3] sm:$0x3] %vm1231, %v1391
          %v1393 = vld [vmem:[#allocation4] sm:$0x3]
          %v1394 = vsel %vm1390, %v1321, %v1393
          %1395 = vst.msk [vmem:[#allocation4] sm:$0x3] %vm1231, %v1394
          %v1396 = vld [vmem:[#allocation5] sm:$0x3]
          %v1397 = vsel %vm1390, %v1333, %v1396
          %1398 = vst.msk [vmem:[#allocation5] sm:$0x3] %vm1231, %v1397
          %v1399 = vld [vmem:[#allocation6] sm:$0x3]
          %v1400 = vsel %vm1390, %v1345, %v1399
          %1401 = vst.msk [vmem:[#allocation6] sm:$0x3] %vm1231, %v1400
          %v1402 = vld [vmem:[#allocation7] sm:$0x3]
          %v1403 = vsel %vm1390, %v1357, %v1402
          %1404 = vst.msk [vmem:[#allocation7] sm:$0x3] %vm1231, %v1403
          %v1405 = vld [vmem:[#allocation8] sm:$0x3]
          %v1406 = vsel %vm1390, %v1369, %v1405
          %1407 = vst.msk [vmem:[#allocation8] sm:$0x3] %vm1231, %v1406
          %1408 = vst [vmem:[#allocation1] ss:$4 sm:$0xff] %v941
          %v1409 = vld.sshfl [vmem:[#allocation1] sm:$0xff pattern:$0x73625140]
          %v1410 = vld.sshfl [vmem:[#allocation1 + $0x8] sm:$0xff pattern:$0x73625140]
          %v1413 = vsel %vm1299, -inf, %v1409
          %v1414 = vsel %vm1300, -inf, %v1410
          %v1415 = vld [vmem:[#allocation3] sm:$0x3]
          %v1416 = vsel %vm1231, %v1415, inf
          %1417 = vmin.xlane.f32.xlu0 %v1416
          %v1418 = vpop.xlane.xlu0 %1417
          %v1419 = vsel %vm1031, %v1413, -inf
          %v1420 = vsel %vm1031, %v1414, -inf
          %v1421 = vmax.f32 %v1419, %v1420
          %1422 = vmax.xlane.f32.xlu0 %v1421
          %v1423 = vpop.xlane.xlu0 %1422
          %vm1424 = vcmp.gt.f32.partialorder %v1423, %v1418
          %vm1425 = vcmp.eq.f32.partialorder %v1413, %v1423
          %vm1426 = vcmp.eq.f32.partialorder %v1414, %v1423
          %v1427 = vsel %vm1425, %v1261, 256
          %v1428 = vsel %vm1426, %v1262, 256
          %v1429 = vsel %vm1031, %v1427, 2147483647
          %v1430 = vsel %vm1031, %v1428, 2147483647
          %vm1431 = vcmp.lt.s32.totalorder %v1429, %v1430
          %v1432 = vsel %vm1431, %v1429, %v1430
          %v1433 = vand.u32 %v1432, 65535
          %v1434 = vshra.s32 %v1432, 16
          %v1435 = vcvt.s32.f32 %v1433
          %v1436 = vcvt.s32.f32 %v1434
          %1437 = vmin.xlane.f32.xlu0 %v1436
          %v1438 = vpop.xlane.xlu0 %1437
          %vm1439 = vcmp.eq.f32.partialorder %v1436, %v1438
          %v1440 = vsel %vm1439, %v1435, inf
          %1441 = vmin.xlane.f32.xlu0 %v1440
          %v1442 = vpop.xlane.xlu0 %1441
          %v1443 = vcvt.f32.s32 %v1442
          %v1444 = vcvt.f32.s32 %v1438
          %v1445 = vshll.u32 %v1444, 16
          %v1446 = vadd.s32 %v1445, %v1443
          %vm1447 = vcmp.eq.s32.totalorder %v1261, %v1446
          %vm1448 = vcmp.eq.s32.totalorder %v1262, %v1446
          %v1449 = vsel %vm1447, 1, 0
          %v1450 = vsel %vm1448, 1, 0
          %v1451 = vcvt.s32.f32 %v1449
          %v1452 = vcvt.s32.f32 %v1450
          %v1455 = vrot.slane %v1452, 6
          %v1456 = vsel %vm1031, %v1451, %v1455
          %v1458 = vmul.f32 %v1227, %v1456
          %1460 = vst [vmem:[#allocation1] ss:$4 sm:$0xff] %v1458
          %v1461 = vld.sshfl [vmem:[#allocation1] sm:$0xff pattern:$0x73625140]
          %v1462 = vld.sshfl [vmem:[#allocation1 + $0x8] sm:$0xff pattern:$0x73625140]
          %v1465 = vsel %vm1031, %v1461, 0.0
          %v1466 = vsel %vm1031, %v1462, 0.0
          %v1467 = vadd.f32 %v1465, %v1466
          %1468 = vadd.xlane.f32.xlu0 %v1467
          %v1469 = vpop.xlane.xlu0 %1468
          %v1470 = vmul.f32 %v1228, %v1456
          %1472 = vst [vmem:[#allocation1] ss:$4 sm:$0xff] %v1470
          %v1473 = vld.sshfl [vmem:[#allocation1] sm:$0xff pattern:$0x73625140]
          %v1474 = vld.sshfl [vmem:[#allocation1 + $0x8] sm:$0xff pattern:$0x73625140]
          %v1477 = vsel %vm1031, %v1473, 0.0
          %v1478 = vsel %vm1031, %v1474, 0.0
          %v1479 = vadd.f32 %v1477, %v1478
          %1480 = vadd.xlane.f32.xlu0 %v1479
          %v1481 = vpop.xlane.xlu0 %1480
          %v1482 = vmul.f32 %v1229, %v1456
          %1484 = vst [vmem:[#allocation1] ss:$4 sm:$0xff] %v1482
          %v1485 = vld.sshfl [vmem:[#allocation1] sm:$0xff pattern:$0x73625140]
          %v1486 = vld.sshfl [vmem:[#allocation1 + $0x8] sm:$0xff pattern:$0x73625140]
          %v1489 = vsel %vm1031, %v1485, 0.0
          %v1490 = vsel %vm1031, %v1486, 0.0
          %v1491 = vadd.f32 %v1489, %v1490
          %1492 = vadd.xlane.f32.xlu0 %v1491
          %v1493 = vpop.xlane.xlu0 %1492
          %v1494 = vmul.f32 %v1017, %v1456
          %1496 = vst [vmem:[#allocation1] ss:$4 sm:$0xff] %v1494
          %v1497 = vld.sshfl [vmem:[#allocation1] sm:$0xff pattern:$0x73625140]
          %v1498 = vld.sshfl [vmem:[#allocation1 + $0x8] sm:$0xff pattern:$0x73625140]
          %v1501 = vsel %vm1031, %v1497, 0.0
          %v1502 = vsel %vm1031, %v1498, 0.0
          %v1503 = vadd.f32 %v1501, %v1502
          %1504 = vadd.xlane.f32.xlu0 %v1503
          %v1505 = vpop.xlane.xlu0 %1504
          %v1506 = vmul.f32 %v1023, %v1456
          %1508 = vst [vmem:[#allocation1] ss:$4 sm:$0xff] %v1506
          %v1509 = vld.sshfl [vmem:[#allocation1] sm:$0xff pattern:$0x73625140]
          %v1510 = vld.sshfl [vmem:[#allocation1 + $0x8] sm:$0xff pattern:$0x73625140]
          %v1513 = vsel %vm1031, %v1509, 0.0
          %v1514 = vsel %vm1031, %v1510, 0.0
          %v1515 = vadd.f32 %v1513, %v1514
          %1516 = vadd.xlane.f32.xlu0 %v1515
          %v1517 = vpop.xlane.xlu0 %1516
          %vm1518 = vcmp.eq.f32.partialorder %v1415, %v1418
          %v1519 = vsel %vm1518, %v1261, 8
          %v1520 = vsel %vm1231, %v1519, 2147483647
          %v1521 = vand.u32 %v1520, 65535
          %v1522 = vshra.s32 %v1520, 16
          %v1523 = vcvt.s32.f32 %v1521
          %v1524 = vcvt.s32.f32 %v1522
          %1525 = vmin.xlane.f32.xlu0 %v1524
          %v1526 = vpop.xlane.xlu0 %1525
          %vm1527 = vcmp.eq.f32.partialorder %v1524, %v1526
          %v1528 = vsel %vm1527, %v1523, inf
          %1529 = vmin.xlane.f32.xlu0 %v1528
          %v1530 = vpop.xlane.xlu0 %1529
          %v1531 = vcvt.f32.s32 %v1530
          %v1532 = vcvt.f32.s32 %v1526
          %v1533 = vshll.u32 %v1532, 16
          %v1534 = vadd.s32 %v1533, %v1531
          %vm1535 = vcmp.eq.s32.totalorder %v1261, %v1534
          %v1536 = vsel %vm1424, 1, 0
          %vm1537 = vcmp.eq.s32.totalorder %v1536, 1
          %vm1538 = vmand %vm1535, %vm1537
          %v1539 = vsel %vm1538, %v1423, %v1415
          %1540 = vst.msk [vmem:[#allocation3] sm:$0x3] %vm1231, %v1539
          %v1541 = vld [vmem:[#allocation4] sm:$0x3]
          %v1542 = vsel %vm1538, %v1469, %v1541
          %1543 = vst.msk [vmem:[#allocation4] sm:$0x3] %vm1231, %v1542
          %v1544 = vld [vmem:[#allocation5] sm:$0x3]
          %v1545 = vsel %vm1538, %v1481, %v1544
          %1546 = vst.msk [vmem:[#allocation5] sm:$0x3] %vm1231, %v1545
          %v1547 = vld [vmem:[#allocation6] sm:$0x3]
          %v1548 = vsel %vm1538, %v1493, %v1547
          %1549 = vst.msk [vmem:[#allocation6] sm:$0x3] %vm1231, %v1548
          %v1550 = vld [vmem:[#allocation7] sm:$0x3]
          %v1551 = vsel %vm1538, %v1505, %v1550
          %1552 = vst.msk [vmem:[#allocation7] sm:$0x3] %vm1231, %v1551
          %v1553 = vld [vmem:[#allocation8] sm:$0x3]
          %v1554 = vsel %vm1538, %v1517, %v1553
          %1555 = vst.msk [vmem:[#allocation8] sm:$0x3] %vm1231, %v1554
          %v1556 = vsel %vm1447, -inf, %v1413
          %v1557 = vsel %vm1448, -inf, %v1414
          %v1558 = vld [vmem:[#allocation3] sm:$0x3]
          %v1559 = vsel %vm1231, %v1558, inf
          %1560 = vmin.xlane.f32.xlu0 %v1559
          %v1561 = vpop.xlane.xlu0 %1560
          %v1562 = vsel %vm1031, %v1556, -inf
          %v1563 = vsel %vm1031, %v1557, -inf
          %v1564 = vmax.f32 %v1562, %v1563
          %1565 = vmax.xlane.f32.xlu0 %v1564
          %v1566 = vpop.xlane.xlu0 %1565
          %vm1567 = vcmp.gt.f32.partialorder %v1566, %v1561
          %vm1568 = vcmp.eq.f32.partialorder %v1556, %v1566
          %vm1569 = vcmp.eq.f32.partialorder %v1557, %v1566
          %v1570 = vsel %vm1568, %v1261, 256
          %v1571 = vsel %vm1569, %v1262, 256
          %v1572 = vsel %vm1031, %v1570, 2147483647
          %v1573 = vsel %vm1031, %v1571, 2147483647
          %vm1574 = vcmp.lt.s32.totalorder %v1572, %v1573
          %v1575 = vsel %vm1574, %v1572, %v1573
          %v1576 = vand.u32 %v1575, 65535
          %v1577 = vshra.s32 %v1575, 16
          %v1578 = vcvt.s32.f32 %v1576
          %v1579 = vcvt.s32.f32 %v1577
          %1580 = vmin.xlane.f32.xlu0 %v1579
          %v1581 = vpop.xlane.xlu0 %1580
          %vm1582 = vcmp.eq.f32.partialorder %v1579, %v1581
          %v1583 = vsel %vm1582, %v1578, inf
          %1584 = vmin.xlane.f32.xlu0 %v1583
          %v1585 = vpop.xlane.xlu0 %1584
          %v1586 = vcvt.f32.s32 %v1585
          %v1587 = vcvt.f32.s32 %v1581
          %v1588 = vshll.u32 %v1587, 16
          %v1589 = vadd.s32 %v1588, %v1586
          %vm1590 = vcmp.eq.s32.totalorder %v1261, %v1589
          %vm1591 = vcmp.eq.s32.totalorder %v1262, %v1589
          %v1592 = vsel %vm1590, 1, 0
          %v1593 = vsel %vm1591, 1, 0
          %v1594 = vcvt.s32.f32 %v1592
          %v1595 = vcvt.s32.f32 %v1593
          %v1598 = vrot.slane %v1595, 6
          %v1599 = vsel %vm1031, %v1594, %v1598
          %v1601 = vmul.f32 %v1227, %v1599
          %1603 = vst [vmem:[#allocation1] ss:$4 sm:$0xff] %v1601
          %v1604 = vld.sshfl [vmem:[#allocation1] sm:$0xff pattern:$0x73625140]
          %v1605 = vld.sshfl [vmem:[#allocation1 + $0x8] sm:$0xff pattern:$0x73625140]
          %v1608 = vsel %vm1031, %v1604, 0.0
          %v1609 = vsel %vm1031, %v1605, 0.0
          %v1610 = vadd.f32 %v1608, %v1609
          %1611 = vadd.xlane.f32.xlu0 %v1610
          %v1612 = vpop.xlane.xlu0 %1611
          %v1613 = vmul.f32 %v1228, %v1599
          %1615 = vst [vmem:[#allocation1] ss:$4 sm:$0xff] %v1613
          %v1616 = vld.sshfl [vmem:[#allocation1] sm:$0xff pattern:$0x73625140]
          %v1617 = vld.sshfl [vmem:[#allocation1 + $0x8] sm:$0xff pattern:$0x73625140]
          %v1620 = vsel %vm1031, %v1616, 0.0
          %v1621 = vsel %vm1031, %v1617, 0.0
          %v1622 = vadd.f32 %v1620, %v1621
          %1623 = vadd.xlane.f32.xlu0 %v1622
          %v1624 = vpop.xlane.xlu0 %1623
          %v1625 = vmul.f32 %v1229, %v1599
          %1627 = vst [vmem:[#allocation1] ss:$4 sm:$0xff] %v1625
          %v1628 = vld.sshfl [vmem:[#allocation1] sm:$0xff pattern:$0x73625140]
          %v1629 = vld.sshfl [vmem:[#allocation1 + $0x8] sm:$0xff pattern:$0x73625140]
          %v1632 = vsel %vm1031, %v1628, 0.0
          %v1633 = vsel %vm1031, %v1629, 0.0
          %v1634 = vadd.f32 %v1632, %v1633
          %1635 = vadd.xlane.f32.xlu0 %v1634
          %v1636 = vpop.xlane.xlu0 %1635
          %v1637 = vmul.f32 %v1017, %v1599
          %1639 = vst [vmem:[#allocation1] ss:$4 sm:$0xff] %v1637
          %v1640 = vld.sshfl [vmem:[#allocation1] sm:$0xff pattern:$0x73625140]
          %v1641 = vld.sshfl [vmem:[#allocation1 + $0x8] sm:$0xff pattern:$0x73625140]
          %v1644 = vsel %vm1031, %v1640, 0.0
          %v1645 = vsel %vm1031, %v1641, 0.0
          %v1646 = vadd.f32 %v1644, %v1645
          %1647 = vadd.xlane.f32.xlu0 %v1646
          %v1648 = vpop.xlane.xlu0 %1647
          %v1649 = vmul.f32 %v1023, %v1599
          %1651 = vst [vmem:[#allocation1] ss:$4 sm:$0xff] %v1649
          %v1652 = vld.sshfl [vmem:[#allocation1] sm:$0xff pattern:$0x73625140]
          %v1653 = vld.sshfl [vmem:[#allocation1 + $0x8] sm:$0xff pattern:$0x73625140]
          %v1656 = vsel %vm1031, %v1652, 0.0
          %v1657 = vsel %vm1031, %v1653, 0.0
          %v1658 = vadd.f32 %v1656, %v1657
          %1659 = vadd.xlane.f32.xlu0 %v1658
          %v1660 = vpop.xlane.xlu0 %1659
          %vm1661 = vcmp.eq.f32.partialorder %v1558, %v1561
          %v1662 = vsel %vm1661, %v1261, 8
          %v1663 = vsel %vm1231, %v1662, 2147483647
          %v1664 = vand.u32 %v1663, 65535
          %v1665 = vshra.s32 %v1663, 16
          %v1666 = vcvt.s32.f32 %v1664
          %v1667 = vcvt.s32.f32 %v1665
          %1668 = vmin.xlane.f32.xlu0 %v1667
          %v1669 = vpop.xlane.xlu0 %1668
          %vm1670 = vcmp.eq.f32.partialorder %v1667, %v1669
          %v1671 = vsel %vm1670, %v1666, inf
          %1672 = vmin.xlane.f32.xlu0 %v1671
          %v1673 = vpop.xlane.xlu0 %1672
          %v1674 = vcvt.f32.s32 %v1673
          %v1675 = vcvt.f32.s32 %v1669
          %v1676 = vshll.u32 %v1675, 16
          %v1677 = vadd.s32 %v1676, %v1674
          %vm1678 = vcmp.eq.s32.totalorder %v1261, %v1677
          %v1679 = vsel %vm1567, 1, 0
          %vm1680 = vcmp.eq.s32.totalorder %v1679, 1
          %vm1681 = vmand %vm1678, %vm1680
          %v1682 = vsel %vm1681, %v1566, %v1558
          %1683 = vst.msk [vmem:[#allocation3] sm:$0x3] %vm1231, %v1682
          %v1684 = vld [vmem:[#allocation4] sm:$0x3]
          %v1685 = vsel %vm1681, %v1612, %v1684
          %1686 = vst.msk [vmem:[#allocation4] sm:$0x3] %vm1231, %v1685
          %v1687 = vld [vmem:[#allocation5] sm:$0x3]
          %v1688 = vsel %vm1681, %v1624, %v1687
          %1689 = vst.msk [vmem:[#allocation5] sm:$0x3] %vm1231, %v1688
          %v1690 = vld [vmem:[#allocation6] sm:$0x3]
          %v1691 = vsel %vm1681, %v1636, %v1690
          %1692 = vst.msk [vmem:[#allocation6] sm:$0x3] %vm1231, %v1691
          %v1693 = vld [vmem:[#allocation7] sm:$0x3]
          %v1694 = vsel %vm1681, %v1648, %v1693
          %1695 = vst.msk [vmem:[#allocation7] sm:$0x3] %vm1231, %v1694
          %v1696 = vld [vmem:[#allocation8] sm:$0x3]
          %v1697 = vsel %vm1681, %v1660, %v1696
          %1698 = vst.msk [vmem:[#allocation8] sm:$0x3] %vm1231, %v1697
          %v1699 = vsel %vm1590, -inf, %v1556
          %v1700 = vsel %vm1591, -inf, %v1557
          %v1701 = vld [vmem:[#allocation3] sm:$0x3]
          %v1702 = vsel %vm1231, %v1701, inf
          %1703 = vmin.xlane.f32.xlu0 %v1702
          %v1704 = vpop.xlane.xlu0 %1703
          %v1705 = vsel %vm1031, %v1699, -inf
          %v1706 = vsel %vm1031, %v1700, -inf
          %v1707 = vmax.f32 %v1705, %v1706
          %1708 = vmax.xlane.f32.xlu0 %v1707
          %v1709 = vpop.xlane.xlu0 %1708
          %vm1710 = vcmp.gt.f32.partialorder %v1709, %v1704
          %vm1711 = vcmp.eq.f32.partialorder %v1699, %v1709
          %vm1712 = vcmp.eq.f32.partialorder %v1700, %v1709
          %v1713 = vsel %vm1711, %v1261, 256
          %v1714 = vsel %vm1712, %v1262, 256
          %v1715 = vsel %vm1031, %v1713, 2147483647
          %v1716 = vsel %vm1031, %v1714, 2147483647
          %vm1717 = vcmp.lt.s32.totalorder %v1715, %v1716
          %v1718 = vsel %vm1717, %v1715, %v1716
          %v1719 = vand.u32 %v1718, 65535
          %v1720 = vshra.s32 %v1718, 16
          %v1721 = vcvt.s32.f32 %v1719
          %v1722 = vcvt.s32.f32 %v1720
          %1723 = vmin.xlane.f32.xlu0 %v1722
          %v1724 = vpop.xlane.xlu0 %1723
          %vm1725 = vcmp.eq.f32.partialorder %v1722, %v1724
          %v1726 = vsel %vm1725, %v1721, inf
          %1727 = vmin.xlane.f32.xlu0 %v1726
          %v1728 = vpop.xlane.xlu0 %1727
          %v1729 = vcvt.f32.s32 %v1728
          %v1730 = vcvt.f32.s32 %v1724
          %v1731 = vshll.u32 %v1730, 16
          %v1732 = vadd.s32 %v1731, %v1729
          %vm1733 = vcmp.eq.s32.totalorder %v1261, %v1732
          %vm1734 = vcmp.eq.s32.totalorder %v1262, %v1732
          %v1735 = vsel %vm1733, 1, 0
          %v1736 = vsel %vm1734, 1, 0
          %v1737 = vcvt.s32.f32 %v1735
          %v1738 = vcvt.s32.f32 %v1736
          %v1741 = vrot.slane %v1738, 6
          %v1742 = vsel %vm1031, %v1737, %v1741
          %v1744 = vmul.f32 %v1227, %v1742
          %1746 = vst [vmem:[#allocation1] ss:$4 sm:$0xff] %v1744
          %v1747 = vld.sshfl [vmem:[#allocation1] sm:$0xff pattern:$0x73625140]
          %v1748 = vld.sshfl [vmem:[#allocation1 + $0x8] sm:$0xff pattern:$0x73625140]
          %v1751 = vsel %vm1031, %v1747, 0.0
          %v1752 = vsel %vm1031, %v1748, 0.0
          %v1753 = vadd.f32 %v1751, %v1752
          %1754 = vadd.xlane.f32.xlu0 %v1753
          %v1755 = vpop.xlane.xlu0 %1754
          %v1756 = vmul.f32 %v1228, %v1742
          %1758 = vst [vmem:[#allocation1] ss:$4 sm:$0xff] %v1756
          %v1759 = vld.sshfl [vmem:[#allocation1] sm:$0xff pattern:$0x73625140]
          %v1760 = vld.sshfl [vmem:[#allocation1 + $0x8] sm:$0xff pattern:$0x73625140]
          %v1763 = vsel %vm1031, %v1759, 0.0
          %v1764 = vsel %vm1031, %v1760, 0.0
          %v1765 = vadd.f32 %v1763, %v1764
          %1766 = vadd.xlane.f32.xlu0 %v1765
          %v1767 = vpop.xlane.xlu0 %1766
          %v1768 = vmul.f32 %v1229, %v1742
          %1770 = vst [vmem:[#allocation1] ss:$4 sm:$0xff] %v1768
          %v1771 = vld.sshfl [vmem:[#allocation1] sm:$0xff pattern:$0x73625140]
          %v1772 = vld.sshfl [vmem:[#allocation1 + $0x8] sm:$0xff pattern:$0x73625140]
          %v1775 = vsel %vm1031, %v1771, 0.0
          %v1776 = vsel %vm1031, %v1772, 0.0
          %v1777 = vadd.f32 %v1775, %v1776
          %1778 = vadd.xlane.f32.xlu0 %v1777
          %v1779 = vpop.xlane.xlu0 %1778
          %v1780 = vmul.f32 %v1017, %v1742
          %1782 = vst [vmem:[#allocation1] ss:$4 sm:$0xff] %v1780
          %v1783 = vld.sshfl [vmem:[#allocation1] sm:$0xff pattern:$0x73625140]
          %v1784 = vld.sshfl [vmem:[#allocation1 + $0x8] sm:$0xff pattern:$0x73625140]
          %v1787 = vsel %vm1031, %v1783, 0.0
          %v1788 = vsel %vm1031, %v1784, 0.0
          %v1789 = vadd.f32 %v1787, %v1788
          %1790 = vadd.xlane.f32.xlu0 %v1789
          %v1791 = vpop.xlane.xlu0 %1790
          %v1792 = vmul.f32 %v1023, %v1742
          %1794 = vst [vmem:[#allocation1] ss:$4 sm:$0xff] %v1792
          %v1795 = vld.sshfl [vmem:[#allocation1] sm:$0xff pattern:$0x73625140]
          %v1796 = vld.sshfl [vmem:[#allocation1 + $0x8] sm:$0xff pattern:$0x73625140]
          %v1799 = vsel %vm1031, %v1795, 0.0
          %v1800 = vsel %vm1031, %v1796, 0.0
          %v1801 = vadd.f32 %v1799, %v1800
          %1802 = vadd.xlane.f32.xlu0 %v1801
          %v1803 = vpop.xlane.xlu0 %1802
          %vm1804 = vcmp.eq.f32.partialorder %v1701, %v1704
          %v1805 = vsel %vm1804, %v1261, 8
          %v1806 = vsel %vm1231, %v1805, 2147483647
          %v1807 = vand.u32 %v1806, 65535
          %v1808 = vshra.s32 %v1806, 16
          %v1809 = vcvt.s32.f32 %v1807
          %v1810 = vcvt.s32.f32 %v1808
          %1811 = vmin.xlane.f32.xlu0 %v1810
          %v1812 = vpop.xlane.xlu0 %1811
          %vm1813 = vcmp.eq.f32.partialorder %v1810, %v1812
          %v1814 = vsel %vm1813, %v1809, inf
          %1815 = vmin.xlane.f32.xlu0 %v1814
          %v1816 = vpop.xlane.xlu0 %1815
          %v1817 = vcvt.f32.s32 %v1816
          %v1818 = vcvt.f32.s32 %v1812
          %v1819 = vshll.u32 %v1818, 16
          %v1820 = vadd.s32 %v1819, %v1817
          %vm1821 = vcmp.eq.s32.totalorder %v1261, %v1820
          %v1822 = vsel %vm1710, 1, 0
          %vm1823 = vcmp.eq.s32.totalorder %v1822, 1
          %vm1824 = vmand %vm1821, %vm1823
          %v1825 = vsel %vm1824, %v1709, %v1701
          %1826 = vst.msk [vmem:[#allocation3] sm:$0x3] %vm1231, %v1825
          %v1827 = vld [vmem:[#allocation4] sm:$0x3]
          %v1828 = vsel %vm1824, %v1755, %v1827
          %1829 = vst.msk [vmem:[#allocation4] sm:$0x3] %vm1231, %v1828
          %v1830 = vld [vmem:[#allocation5] sm:$0x3]
          %v1831 = vsel %vm1824, %v1767, %v1830
          %1832 = vst.msk [vmem:[#allocation5] sm:$0x3] %vm1231, %v1831
          %v1833 = vld [vmem:[#allocation6] sm:$0x3]
          %v1834 = vsel %vm1824, %v1779, %v1833
          %1835 = vst.msk [vmem:[#allocation6] sm:$0x3] %vm1231, %v1834
          %v1836 = vld [vmem:[#allocation7] sm:$0x3]
          %v1837 = vsel %vm1824, %v1791, %v1836
          %1838 = vst.msk [vmem:[#allocation7] sm:$0x3] %vm1231, %v1837
          %v1839 = vld [vmem:[#allocation8] sm:$0x3]
          %v1840 = vsel %vm1824, %v1803, %v1839
          %1841 = vst.msk [vmem:[#allocation8] sm:$0x3] %vm1231, %v1840
          %v1842 = vsel %vm1733, -inf, %v1699
          %v1843 = vsel %vm1734, -inf, %v1700
          %v1844 = vld [vmem:[#allocation3] sm:$0x3]
          %v1845 = vsel %vm1231, %v1844, inf
          %1846 = vmin.xlane.f32.xlu0 %v1845
          %v1847 = vpop.xlane.xlu0 %1846
          %v1848 = vsel %vm1031, %v1842, -inf
          %v1849 = vsel %vm1031, %v1843, -inf
          %v1850 = vmax.f32 %v1848, %v1849
          %1851 = vmax.xlane.f32.xlu0 %v1850
          %v1852 = vpop.xlane.xlu0 %1851
          %vm1853 = vcmp.gt.f32.partialorder %v1852, %v1847
          %vm1854 = vcmp.eq.f32.partialorder %v1842, %v1852
          %vm1855 = vcmp.eq.f32.partialorder %v1843, %v1852
          %v1856 = vsel %vm1854, %v1261, 256
          %v1857 = vsel %vm1855, %v1262, 256
          %v1858 = vsel %vm1031, %v1856, 2147483647
          %v1859 = vsel %vm1031, %v1857, 2147483647
          %vm1860 = vcmp.lt.s32.totalorder %v1858, %v1859
          %v1861 = vsel %vm1860, %v1858, %v1859
          %v1862 = vand.u32 %v1861, 65535
          %v1863 = vshra.s32 %v1861, 16
          %v1864 = vcvt.s32.f32 %v1862
          %v1865 = vcvt.s32.f32 %v1863
          %1866 = vmin.xlane.f32.xlu0 %v1865
          %v1867 = vpop.xlane.xlu0 %1866
          %vm1868 = vcmp.eq.f32.partialorder %v1865, %v1867
          %v1869 = vsel %vm1868, %v1864, inf
          %1870 = vmin.xlane.f32.xlu0 %v1869
          %v1871 = vpop.xlane.xlu0 %1870
          %v1872 = vcvt.f32.s32 %v1871
          %v1873 = vcvt.f32.s32 %v1867
          %v1874 = vshll.u32 %v1873, 16
          %v1875 = vadd.s32 %v1874, %v1872
          %vm1876 = vcmp.eq.s32.totalorder %v1261, %v1875
          %vm1877 = vcmp.eq.s32.totalorder %v1262, %v1875
          %v1878 = vsel %vm1876, 1, 0
          %v1879 = vsel %vm1877, 1, 0
          %v1880 = vcvt.s32.f32 %v1878
          %v1881 = vcvt.s32.f32 %v1879
          %v1884 = vrot.slane %v1881, 6
          %v1885 = vsel %vm1031, %v1880, %v1884
          %v1887 = vmul.f32 %v1227, %v1885
          %1889 = vst [vmem:[#allocation1] ss:$4 sm:$0xff] %v1887
          %v1890 = vld.sshfl [vmem:[#allocation1] sm:$0xff pattern:$0x73625140]
          %v1891 = vld.sshfl [vmem:[#allocation1 + $0x8] sm:$0xff pattern:$0x73625140]
          %v1894 = vsel %vm1031, %v1890, 0.0
          %v1895 = vsel %vm1031, %v1891, 0.0
          %v1896 = vadd.f32 %v1894, %v1895
          %1897 = vadd.xlane.f32.xlu0 %v1896
          %v1898 = vpop.xlane.xlu0 %1897
          %v1899 = vmul.f32 %v1228, %v1885
          %1901 = vst [vmem:[#allocation1] ss:$4 sm:$0xff] %v1899
          %v1902 = vld.sshfl [vmem:[#allocation1] sm:$0xff pattern:$0x73625140]
          %v1903 = vld.sshfl [vmem:[#allocation1 + $0x8] sm:$0xff pattern:$0x73625140]
          %v1906 = vsel %vm1031, %v1902, 0.0
          %v1907 = vsel %vm1031, %v1903, 0.0
          %v1908 = vadd.f32 %v1906, %v1907
          %1909 = vadd.xlane.f32.xlu0 %v1908
          %v1910 = vpop.xlane.xlu0 %1909
          %v1911 = vmul.f32 %v1229, %v1885
          %1913 = vst [vmem:[#allocation1] ss:$4 sm:$0xff] %v1911
          %v1914 = vld.sshfl [vmem:[#allocation1] sm:$0xff pattern:$0x73625140]
          %v1915 = vld.sshfl [vmem:[#allocation1 + $0x8] sm:$0xff pattern:$0x73625140]
          %v1918 = vsel %vm1031, %v1914, 0.0
          %v1919 = vsel %vm1031, %v1915, 0.0
          %v1920 = vadd.f32 %v1918, %v1919
          %1921 = vadd.xlane.f32.xlu0 %v1920
          %v1922 = vpop.xlane.xlu0 %1921
          %v1923 = vmul.f32 %v1017, %v1885
          %1925 = vst [vmem:[#allocation1] ss:$4 sm:$0xff] %v1923
          %v1926 = vld.sshfl [vmem:[#allocation1] sm:$0xff pattern:$0x73625140]
          %v1927 = vld.sshfl [vmem:[#allocation1 + $0x8] sm:$0xff pattern:$0x73625140]
          %v1930 = vsel %vm1031, %v1926, 0.0
          %v1931 = vsel %vm1031, %v1927, 0.0
          %v1932 = vadd.f32 %v1930, %v1931
          %1933 = vadd.xlane.f32.xlu0 %v1932
          %v1934 = vpop.xlane.xlu0 %1933
          %v1935 = vmul.f32 %v1023, %v1885
          %1937 = vst [vmem:[#allocation1] ss:$4 sm:$0xff] %v1935
          %v1938 = vld.sshfl [vmem:[#allocation1] sm:$0xff pattern:$0x73625140]
          %v1939 = vld.sshfl [vmem:[#allocation1 + $0x8] sm:$0xff pattern:$0x73625140]
          %v1942 = vsel %vm1031, %v1938, 0.0
          %v1943 = vsel %vm1031, %v1939, 0.0
          %v1944 = vadd.f32 %v1942, %v1943
          %1945 = vadd.xlane.f32.xlu0 %v1944
          %v1946 = vpop.xlane.xlu0 %1945
          %vm1947 = vcmp.eq.f32.partialorder %v1844, %v1847
          %v1948 = vsel %vm1947, %v1261, 8
          %v1949 = vsel %vm1231, %v1948, 2147483647
          %v1950 = vand.u32 %v1949, 65535
          %v1951 = vshra.s32 %v1949, 16
          %v1952 = vcvt.s32.f32 %v1950
          %v1953 = vcvt.s32.f32 %v1951
          %1954 = vmin.xlane.f32.xlu0 %v1953
          %v1955 = vpop.xlane.xlu0 %1954
          %vm1956 = vcmp.eq.f32.partialorder %v1953, %v1955
          %v1957 = vsel %vm1956, %v1952, inf
          %1958 = vmin.xlane.f32.xlu0 %v1957
          %v1959 = vpop.xlane.xlu0 %1958
          %v1960 = vcvt.f32.s32 %v1959
          %v1961 = vcvt.f32.s32 %v1955
          %v1962 = vshll.u32 %v1961, 16
          %v1963 = vadd.s32 %v1962, %v1960
          %vm1964 = vcmp.eq.s32.totalorder %v1261, %v1963
          %v1965 = vsel %vm1853, 1, 0
          %vm1966 = vcmp.eq.s32.totalorder %v1965, 1
          %vm1967 = vmand %vm1964, %vm1966
          %v1968 = vsel %vm1967, %v1852, %v1844
          %1969 = vst.msk [vmem:[#allocation3] sm:$0x3] %vm1231, %v1968
          %v1970 = vld [vmem:[#allocation4] sm:$0x3]
          %v1971 = vsel %vm1967, %v1898, %v1970
          %1972 = vst.msk [vmem:[#allocation4] sm:$0x3] %vm1231, %v1971
          %v1973 = vld [vmem:[#allocation5] sm:$0x3]
          %v1974 = vsel %vm1967, %v1910, %v1973
          %1975 = vst.msk [vmem:[#allocation5] sm:$0x3] %vm1231, %v1974
          %v1976 = vld [vmem:[#allocation6] sm:$0x3]
          %v1977 = vsel %vm1967, %v1922, %v1976
          %1978 = vst.msk [vmem:[#allocation6] sm:$0x3] %vm1231, %v1977
          %v1979 = vld [vmem:[#allocation7] sm:$0x3]
          %v1980 = vsel %vm1967, %v1934, %v1979
          %1981 = vst.msk [vmem:[#allocation7] sm:$0x3] %vm1231, %v1980
          %v1982 = vld [vmem:[#allocation8] sm:$0x3]
          %v1983 = vsel %vm1967, %v1946, %v1982
          %1984 = vst.msk [vmem:[#allocation8] sm:$0x3] %vm1231, %v1983
          %v1985 = vsel %vm1876, -inf, %v1842
          %v1986 = vsel %vm1877, -inf, %v1843
          %v1987 = vld [vmem:[#allocation3] sm:$0x3]
          %v1988 = vsel %vm1231, %v1987, inf
          %1989 = vmin.xlane.f32.xlu0 %v1988
          %v1990 = vpop.xlane.xlu0 %1989
          %v1991 = vsel %vm1031, %v1985, -inf
          %v1992 = vsel %vm1031, %v1986, -inf
          %v1993 = vmax.f32 %v1991, %v1992
          %1994 = vmax.xlane.f32.xlu0 %v1993
          %v1995 = vpop.xlane.xlu0 %1994
          %vm1996 = vcmp.gt.f32.partialorder %v1995, %v1990
          %vm1997 = vcmp.eq.f32.partialorder %v1985, %v1995
          %vm1998 = vcmp.eq.f32.partialorder %v1986, %v1995
          %v1999 = vsel %vm1997, %v1261, 256
          %v2000 = vsel %vm1998, %v1262, 256
          %v2001 = vsel %vm1031, %v1999, 2147483647
          %v2002 = vsel %vm1031, %v2000, 2147483647
          %vm2003 = vcmp.lt.s32.totalorder %v2001, %v2002
          %v2004 = vsel %vm2003, %v2001, %v2002
          %v2005 = vand.u32 %v2004, 65535
          %v2006 = vshra.s32 %v2004, 16
          %v2007 = vcvt.s32.f32 %v2005
          %v2008 = vcvt.s32.f32 %v2006
          %2009 = vmin.xlane.f32.xlu0 %v2008
          %v2010 = vpop.xlane.xlu0 %2009
          %vm2011 = vcmp.eq.f32.partialorder %v2008, %v2010
          %v2012 = vsel %vm2011, %v2007, inf
          %2013 = vmin.xlane.f32.xlu0 %v2012
          %v2014 = vpop.xlane.xlu0 %2013
          %v2015 = vcvt.f32.s32 %v2014
          %v2016 = vcvt.f32.s32 %v2010
          %v2017 = vshll.u32 %v2016, 16
          %v2018 = vadd.s32 %v2017, %v2015
          %vm2019 = vcmp.eq.s32.totalorder %v1261, %v2018
          %vm2020 = vcmp.eq.s32.totalorder %v1262, %v2018
          %v2021 = vsel %vm2019, 1, 0
          %v2022 = vsel %vm2020, 1, 0
          %v2023 = vcvt.s32.f32 %v2021
          %v2024 = vcvt.s32.f32 %v2022
          %v2027 = vrot.slane %v2024, 6
          %v2028 = vsel %vm1031, %v2023, %v2027
          %v2030 = vmul.f32 %v1227, %v2028
          %2032 = vst [vmem:[#allocation1] ss:$4 sm:$0xff] %v2030
          %v2033 = vld.sshfl [vmem:[#allocation1] sm:$0xff pattern:$0x73625140]
          %v2034 = vld.sshfl [vmem:[#allocation1 + $0x8] sm:$0xff pattern:$0x73625140]
          %v2037 = vsel %vm1031, %v2033, 0.0
          %v2038 = vsel %vm1031, %v2034, 0.0
          %v2039 = vadd.f32 %v2037, %v2038
          %2040 = vadd.xlane.f32.xlu0 %v2039
          %v2041 = vpop.xlane.xlu0 %2040
          %v2042 = vmul.f32 %v1228, %v2028
          %2044 = vst [vmem:[#allocation1] ss:$4 sm:$0xff] %v2042
          %v2045 = vld.sshfl [vmem:[#allocation1] sm:$0xff pattern:$0x73625140]
          %v2046 = vld.sshfl [vmem:[#allocation1 + $0x8] sm:$0xff pattern:$0x73625140]
          %v2049 = vsel %vm1031, %v2045, 0.0
          %v2050 = vsel %vm1031, %v2046, 0.0
          %v2051 = vadd.f32 %v2049, %v2050
          %2052 = vadd.xlane.f32.xlu0 %v2051
          %v2053 = vpop.xlane.xlu0 %2052
          %v2054 = vmul.f32 %v1229, %v2028
          %2056 = vst [vmem:[#allocation1] ss:$4 sm:$0xff] %v2054
          %v2057 = vld.sshfl [vmem:[#allocation1] sm:$0xff pattern:$0x73625140]
          %v2058 = vld.sshfl [vmem:[#allocation1 + $0x8] sm:$0xff pattern:$0x73625140]
          %v2061 = vsel %vm1031, %v2057, 0.0
          %v2062 = vsel %vm1031, %v2058, 0.0
          %v2063 = vadd.f32 %v2061, %v2062
          %2064 = vadd.xlane.f32.xlu0 %v2063
          %v2065 = vpop.xlane.xlu0 %2064
          %v2066 = vmul.f32 %v1017, %v2028
          %2068 = vst [vmem:[#allocation1] ss:$4 sm:$0xff] %v2066
          %v2069 = vld.sshfl [vmem:[#allocation1] sm:$0xff pattern:$0x73625140]
          %v2070 = vld.sshfl [vmem:[#allocation1 + $0x8] sm:$0xff pattern:$0x73625140]
          %v2073 = vsel %vm1031, %v2069, 0.0
          %v2074 = vsel %vm1031, %v2070, 0.0
          %v2075 = vadd.f32 %v2073, %v2074
          %2076 = vadd.xlane.f32.xlu0 %v2075
          %v2077 = vpop.xlane.xlu0 %2076
          %v2078 = vmul.f32 %v1023, %v2028
          %2080 = vst [vmem:[#allocation1] ss:$4 sm:$0xff] %v2078
          %v2081 = vld.sshfl [vmem:[#allocation1] sm:$0xff pattern:$0x73625140]
          %v2082 = vld.sshfl [vmem:[#allocation1 + $0x8] sm:$0xff pattern:$0x73625140]
          %v2085 = vsel %vm1031, %v2081, 0.0
          %v2086 = vsel %vm1031, %v2082, 0.0
          %v2087 = vadd.f32 %v2085, %v2086
          %2088 = vadd.xlane.f32.xlu0 %v2087
          %v2089 = vpop.xlane.xlu0 %2088
          %vm2090 = vcmp.eq.f32.partialorder %v1987, %v1990
          %v2091 = vsel %vm2090, %v1261, 8
          %v2092 = vsel %vm1231, %v2091, 2147483647
          %v2093 = vand.u32 %v2092, 65535
          %v2094 = vshra.s32 %v2092, 16
          %v2095 = vcvt.s32.f32 %v2093
          %v2096 = vcvt.s32.f32 %v2094
          %2097 = vmin.xlane.f32.xlu0 %v2096
          %v2098 = vpop.xlane.xlu0 %2097
          %vm2099 = vcmp.eq.f32.partialorder %v2096, %v2098
          %v2100 = vsel %vm2099, %v2095, inf
          %2101 = vmin.xlane.f32.xlu0 %v2100
          %v2102 = vpop.xlane.xlu0 %2101
          %v2103 = vcvt.f32.s32 %v2102
          %v2104 = vcvt.f32.s32 %v2098
          %v2105 = vshll.u32 %v2104, 16
          %v2106 = vadd.s32 %v2105, %v2103
          %vm2107 = vcmp.eq.s32.totalorder %v1261, %v2106
          %v2108 = vsel %vm1996, 1, 0
          %vm2109 = vcmp.eq.s32.totalorder %v2108, 1
          %vm2110 = vmand %vm2107, %vm2109
          %v2111 = vsel %vm2110, %v1995, %v1987
          %2112 = vst.msk [vmem:[#allocation3] sm:$0x3] %vm1231, %v2111
          %v2113 = vld [vmem:[#allocation4] sm:$0x3]
          %v2114 = vsel %vm2110, %v2041, %v2113
          %2115 = vst.msk [vmem:[#allocation4] sm:$0x3] %vm1231, %v2114
          %v2116 = vld [vmem:[#allocation5] sm:$0x3]
          %v2117 = vsel %vm2110, %v2053, %v2116
          %2118 = vst.msk [vmem:[#allocation5] sm:$0x3] %vm1231, %v2117
          %v2119 = vld [vmem:[#allocation6] sm:$0x3]
          %v2120 = vsel %vm2110, %v2065, %v2119
          %2121 = vst.msk [vmem:[#allocation6] sm:$0x3] %vm1231, %v2120
          %v2122 = vld [vmem:[#allocation7] sm:$0x3]
          %v2123 = vsel %vm2110, %v2077, %v2122
          %2124 = vst.msk [vmem:[#allocation7] sm:$0x3] %vm1231, %v2123
          %v2125 = vld [vmem:[#allocation8] sm:$0x3]
          %v2126 = vsel %vm2110, %v2089, %v2125
          %2127 = vst.msk [vmem:[#allocation8] sm:$0x3] %vm1231, %v2126
          %v2128 = vsel %vm2019, -inf, %v1985
          %v2129 = vsel %vm2020, -inf, %v1986
          %v2130 = vld [vmem:[#allocation3] sm:$0x3]
          %v2131 = vsel %vm1231, %v2130, inf
          %2132 = vmin.xlane.f32.xlu0 %v2131
          %v2133 = vpop.xlane.xlu0 %2132
          %v2134 = vsel %vm1031, %v2128, -inf
          %v2135 = vsel %vm1031, %v2129, -inf
          %v2136 = vmax.f32 %v2134, %v2135
          %2137 = vmax.xlane.f32.xlu0 %v2136
          %v2138 = vpop.xlane.xlu0 %2137
          %vm2139 = vcmp.gt.f32.partialorder %v2138, %v2133
          %vm2140 = vcmp.eq.f32.partialorder %v2128, %v2138
          %vm2141 = vcmp.eq.f32.partialorder %v2129, %v2138
          %v2142 = vsel %vm2140, %v1261, 256
          %v2143 = vsel %vm2141, %v1262, 256
          %v2144 = vsel %vm1031, %v2142, 2147483647
          %v2145 = vsel %vm1031, %v2143, 2147483647
          %vm2146 = vcmp.lt.s32.totalorder %v2144, %v2145
          %v2147 = vsel %vm2146, %v2144, %v2145
          %v2148 = vand.u32 %v2147, 65535
          %v2149 = vshra.s32 %v2147, 16
          %v2150 = vcvt.s32.f32 %v2148
          %v2151 = vcvt.s32.f32 %v2149
          %2152 = vmin.xlane.f32.xlu0 %v2151
          %v2153 = vpop.xlane.xlu0 %2152
          %vm2154 = vcmp.eq.f32.partialorder %v2151, %v2153
          %v2155 = vsel %vm2154, %v2150, inf
          %2156 = vmin.xlane.f32.xlu0 %v2155
          %v2157 = vpop.xlane.xlu0 %2156
          %v2158 = vcvt.f32.s32 %v2157
          %v2159 = vcvt.f32.s32 %v2153
          %v2160 = vshll.u32 %v2159, 16
          %v2161 = vadd.s32 %v2160, %v2158
          %vm2162 = vcmp.eq.s32.totalorder %v1261, %v2161
          %vm2163 = vcmp.eq.s32.totalorder %v1262, %v2161
          %v2164 = vsel %vm2162, 1, 0
          %v2165 = vsel %vm2163, 1, 0
          %v2166 = vcvt.s32.f32 %v2164
          %v2167 = vcvt.s32.f32 %v2165
          %v2170 = vrot.slane %v2167, 6
          %v2171 = vsel %vm1031, %v2166, %v2170
          %v2173 = vmul.f32 %v1227, %v2171
          %2175 = vst [vmem:[#allocation1] ss:$4 sm:$0xff] %v2173
          %v2176 = vld.sshfl [vmem:[#allocation1] sm:$0xff pattern:$0x73625140]
          %v2177 = vld.sshfl [vmem:[#allocation1 + $0x8] sm:$0xff pattern:$0x73625140]
          %v2180 = vsel %vm1031, %v2176, 0.0
          %v2181 = vsel %vm1031, %v2177, 0.0
          %v2182 = vadd.f32 %v2180, %v2181
          %2183 = vadd.xlane.f32.xlu0 %v2182
          %v2184 = vpop.xlane.xlu0 %2183
          %v2185 = vmul.f32 %v1228, %v2171
          %2187 = vst [vmem:[#allocation1] ss:$4 sm:$0xff] %v2185
          %v2188 = vld.sshfl [vmem:[#allocation1] sm:$0xff pattern:$0x73625140]
          %v2189 = vld.sshfl [vmem:[#allocation1 + $0x8] sm:$0xff pattern:$0x73625140]
          %v2192 = vsel %vm1031, %v2188, 0.0
          %v2193 = vsel %vm1031, %v2189, 0.0
          %v2194 = vadd.f32 %v2192, %v2193
          %2195 = vadd.xlane.f32.xlu0 %v2194
          %v2196 = vpop.xlane.xlu0 %2195
          %v2197 = vmul.f32 %v1229, %v2171
          %2199 = vst [vmem:[#allocation1] ss:$4 sm:$0xff] %v2197
          %v2200 = vld.sshfl [vmem:[#allocation1] sm:$0xff pattern:$0x73625140]
          %v2201 = vld.sshfl [vmem:[#allocation1 + $0x8] sm:$0xff pattern:$0x73625140]
          %v2204 = vsel %vm1031, %v2200, 0.0
          %v2205 = vsel %vm1031, %v2201, 0.0
          %v2206 = vadd.f32 %v2204, %v2205
          %2207 = vadd.xlane.f32.xlu0 %v2206
          %v2208 = vpop.xlane.xlu0 %2207
          %v2209 = vmul.f32 %v1017, %v2171
          %2211 = vst [vmem:[#allocation1] ss:$4 sm:$0xff] %v2209
          %v2212 = vld.sshfl [vmem:[#allocation1] sm:$0xff pattern:$0x73625140]
          %v2213 = vld.sshfl [vmem:[#allocation1 + $0x8] sm:$0xff pattern:$0x73625140]
          %v2216 = vsel %vm1031, %v2212, 0.0
          %v2217 = vsel %vm1031, %v2213, 0.0
          %v2218 = vadd.f32 %v2216, %v2217
          %2219 = vadd.xlane.f32.xlu0 %v2218
          %v2220 = vpop.xlane.xlu0 %2219
          %v2221 = vmul.f32 %v1023, %v2171
          %2223 = vst [vmem:[#allocation1] ss:$4 sm:$0xff] %v2221
          %v2224 = vld.sshfl [vmem:[#allocation1] sm:$0xff pattern:$0x73625140]
          %v2225 = vld.sshfl [vmem:[#allocation1 + $0x8] sm:$0xff pattern:$0x73625140]
          %v2228 = vsel %vm1031, %v2224, 0.0
          %v2229 = vsel %vm1031, %v2225, 0.0
          %v2230 = vadd.f32 %v2228, %v2229
          %2231 = vadd.xlane.f32.xlu0 %v2230
          %v2232 = vpop.xlane.xlu0 %2231
          %vm2233 = vcmp.eq.f32.partialorder %v2130, %v2133
          %v2234 = vsel %vm2233, %v1261, 8
          %v2235 = vsel %vm1231, %v2234, 2147483647
          %v2236 = vand.u32 %v2235, 65535
          %v2237 = vshra.s32 %v2235, 16
          %v2238 = vcvt.s32.f32 %v2236
          %v2239 = vcvt.s32.f32 %v2237
          %2240 = vmin.xlane.f32.xlu0 %v2239
          %v2241 = vpop.xlane.xlu0 %2240
          %vm2242 = vcmp.eq.f32.partialorder %v2239, %v2241
          %v2243 = vsel %vm2242, %v2238, inf
          %2244 = vmin.xlane.f32.xlu0 %v2243
          %v2245 = vpop.xlane.xlu0 %2244
          %v2246 = vcvt.f32.s32 %v2245
          %v2247 = vcvt.f32.s32 %v2241
          %v2248 = vshll.u32 %v2247, 16
          %v2249 = vadd.s32 %v2248, %v2246
          %vm2250 = vcmp.eq.s32.totalorder %v1261, %v2249
          %v2251 = vsel %vm2139, 1, 0
          %vm2252 = vcmp.eq.s32.totalorder %v2251, 1
          %vm2253 = vmand %vm2250, %vm2252
          %v2254 = vsel %vm2253, %v2138, %v2130
          %2255 = vst.msk [vmem:[#allocation3] sm:$0x3] %vm1231, %v2254
          %v2256 = vld [vmem:[#allocation4] sm:$0x3]
          %v2257 = vsel %vm2253, %v2184, %v2256
          %2258 = vst.msk [vmem:[#allocation4] sm:$0x3] %vm1231, %v2257
          %v2259 = vld [vmem:[#allocation5] sm:$0x3]
          %v2260 = vsel %vm2253, %v2196, %v2259
          %2261 = vst.msk [vmem:[#allocation5] sm:$0x3] %vm1231, %v2260
          %v2262 = vld [vmem:[#allocation6] sm:$0x3]
          %v2263 = vsel %vm2253, %v2208, %v2262
          %2264 = vst.msk [vmem:[#allocation6] sm:$0x3] %vm1231, %v2263
          %v2265 = vld [vmem:[#allocation7] sm:$0x3]
          %v2266 = vsel %vm2253, %v2220, %v2265
          %2267 = vst.msk [vmem:[#allocation7] sm:$0x3] %vm1231, %v2266
          %v2268 = vld [vmem:[#allocation8] sm:$0x3]
          %v2269 = vsel %vm2253, %v2232, %v2268
          %2270 = vst.msk [vmem:[#allocation8] sm:$0x3] %vm1231, %v2269
          %v2271 = vsel %vm2162, -inf, %v2128
          %v2272 = vsel %vm2163, -inf, %v2129
          %v2273 = vld [vmem:[#allocation3] sm:$0x3]
          %v2274 = vsel %vm1231, %v2273, inf
          %2275 = vmin.xlane.f32.xlu0 %v2274
          %v2276 = vpop.xlane.xlu0 %2275
          %v2277 = vsel %vm1031, %v2271, -inf
          %v2278 = vsel %vm1031, %v2272, -inf
          %v2279 = vmax.f32 %v2277, %v2278
          %2280 = vmax.xlane.f32.xlu0 %v2279
          %v2281 = vpop.xlane.xlu0 %2280
          %vm2282 = vcmp.gt.f32.partialorder %v2281, %v2276
          %vm2283 = vcmp.eq.f32.partialorder %v2271, %v2281
          %vm2284 = vcmp.eq.f32.partialorder %v2272, %v2281
          %v2285 = vsel %vm2283, %v1261, 256
          %v2286 = vsel %vm2284, %v1262, 256
          %v2287 = vsel %vm1031, %v2285, 2147483647
          %v2288 = vsel %vm1031, %v2286, 2147483647
          %vm2289 = vcmp.lt.s32.totalorder %v2287, %v2288
          %v2290 = vsel %vm2289, %v2287, %v2288
          %v2291 = vand.u32 %v2290, 65535
          %v2292 = vshra.s32 %v2290, 16
          %v2293 = vcvt.s32.f32 %v2291
          %v2294 = vcvt.s32.f32 %v2292
          %2295 = vmin.xlane.f32.xlu0 %v2294
          %v2296 = vpop.xlane.xlu0 %2295
          %vm2297 = vcmp.eq.f32.partialorder %v2294, %v2296
          %v2298 = vsel %vm2297, %v2293, inf
          %2299 = vmin.xlane.f32.xlu0 %v2298
          %v2300 = vpop.xlane.xlu0 %2299
          %v2301 = vcvt.f32.s32 %v2300
          %v2302 = vcvt.f32.s32 %v2296
          %v2303 = vshll.u32 %v2302, 16
          %v2304 = vadd.s32 %v2303, %v2301
          %vm2305 = vcmp.eq.s32.totalorder %v1261, %v2304
          %vm2306 = vcmp.eq.s32.totalorder %v1262, %v2304
          %v2307 = vsel %vm2305, 1, 0
          %v2308 = vsel %vm2306, 1, 0
          %v2309 = vcvt.s32.f32 %v2307
          %v2310 = vcvt.s32.f32 %v2308
          %v2313 = vrot.slane %v2310, 6
          %v2314 = vsel %vm1031, %v2309, %v2313
          %v2316 = vmul.f32 %v1227, %v2314
          %2318 = vst [vmem:[#allocation1] ss:$4 sm:$0xff] %v2316
          %v2319 = vld.sshfl [vmem:[#allocation1] sm:$0xff pattern:$0x73625140]
          %v2320 = vld.sshfl [vmem:[#allocation1 + $0x8] sm:$0xff pattern:$0x73625140]
          %v2323 = vsel %vm1031, %v2319, 0.0
          %v2324 = vsel %vm1031, %v2320, 0.0
          %v2325 = vadd.f32 %v2323, %v2324
          %2326 = vadd.xlane.f32.xlu0 %v2325
          %v2327 = vpop.xlane.xlu0 %2326
          %v2328 = vmul.f32 %v1228, %v2314
          %2330 = vst [vmem:[#allocation1] ss:$4 sm:$0xff] %v2328
          %v2331 = vld.sshfl [vmem:[#allocation1] sm:$0xff pattern:$0x73625140]
          %v2332 = vld.sshfl [vmem:[#allocation1 + $0x8] sm:$0xff pattern:$0x73625140]
          %v2335 = vsel %vm1031, %v2331, 0.0
          %v2336 = vsel %vm1031, %v2332, 0.0
          %v2337 = vadd.f32 %v2335, %v2336
          %2338 = vadd.xlane.f32.xlu0 %v2337
          %v2339 = vpop.xlane.xlu0 %2338
          %v2340 = vmul.f32 %v1229, %v2314
          %2342 = vst [vmem:[#allocation1] ss:$4 sm:$0xff] %v2340
          %v2343 = vld.sshfl [vmem:[#allocation1] sm:$0xff pattern:$0x73625140]
          %v2344 = vld.sshfl [vmem:[#allocation1 + $0x8] sm:$0xff pattern:$0x73625140]
          %v2347 = vsel %vm1031, %v2343, 0.0
          %v2348 = vsel %vm1031, %v2344, 0.0
          %v2349 = vadd.f32 %v2347, %v2348
          %2350 = vadd.xlane.f32.xlu0 %v2349
          %v2351 = vpop.xlane.xlu0 %2350
          %v2352 = vmul.f32 %v1017, %v2314
          %2354 = vst [vmem:[#allocation1] ss:$4 sm:$0xff] %v2352
          %v2355 = vld.sshfl [vmem:[#allocation1] sm:$0xff pattern:$0x73625140]
          %v2356 = vld.sshfl [vmem:[#allocation1 + $0x8] sm:$0xff pattern:$0x73625140]
          %v2359 = vsel %vm1031, %v2355, 0.0
          %v2360 = vsel %vm1031, %v2356, 0.0
          %v2361 = vadd.f32 %v2359, %v2360
          %2362 = vadd.xlane.f32.xlu0 %v2361
          %v2363 = vpop.xlane.xlu0 %2362
          %v2364 = vmul.f32 %v1023, %v2314
          %2366 = vst [vmem:[#allocation1] ss:$4 sm:$0xff] %v2364
          %v2367 = vld.sshfl [vmem:[#allocation1] sm:$0xff pattern:$0x73625140]
          %v2368 = vld.sshfl [vmem:[#allocation1 + $0x8] sm:$0xff pattern:$0x73625140]
          %v2371 = vsel %vm1031, %v2367, 0.0
          %v2372 = vsel %vm1031, %v2368, 0.0
          %v2373 = vadd.f32 %v2371, %v2372
          %2374 = vadd.xlane.f32.xlu0 %v2373
          %v2375 = vpop.xlane.xlu0 %2374
          %vm2376 = vcmp.eq.f32.partialorder %v2273, %v2276
          %v2377 = vsel %vm2376, %v1261, 8
          %v2378 = vsel %vm1231, %v2377, 2147483647
          %v2379 = vand.u32 %v2378, 65535
          %v2380 = vshra.s32 %v2378, 16
          %v2381 = vcvt.s32.f32 %v2379
          %v2382 = vcvt.s32.f32 %v2380
          %2383 = vmin.xlane.f32.xlu0 %v2382
          %v2384 = vpop.xlane.xlu0 %2383
          %vm2385 = vcmp.eq.f32.partialorder %v2382, %v2384
          %v2386 = vsel %vm2385, %v2381, inf
          %2387 = vmin.xlane.f32.xlu0 %v2386
          %v2388 = vpop.xlane.xlu0 %2387
          %v2389 = vcvt.f32.s32 %v2388
          %v2390 = vcvt.f32.s32 %v2384
          %v2391 = vshll.u32 %v2390, 16
          %v2392 = vadd.s32 %v2391, %v2389
          %vm2393 = vcmp.eq.s32.totalorder %v1261, %v2392
          %v2394 = vsel %vm2282, 1, 0
          %vm2395 = vcmp.eq.s32.totalorder %v2394, 1
          %vm2396 = vmand %vm2393, %vm2395
          %v2397 = vsel %vm2396, %v2281, %v2273
          %2398 = vst.msk [vmem:[#allocation3] sm:$0x3] %vm1231, %v2397
          %v2399 = vld [vmem:[#allocation4] sm:$0x3]
          %v2400 = vsel %vm2396, %v2327, %v2399
          %2401 = vst.msk [vmem:[#allocation4] sm:$0x3] %vm1231, %v2400
          %v2402 = vld [vmem:[#allocation5] sm:$0x3]
          %v2403 = vsel %vm2396, %v2339, %v2402
          %2404 = vst.msk [vmem:[#allocation5] sm:$0x3] %vm1231, %v2403
          %v2405 = vld [vmem:[#allocation6] sm:$0x3]
          %v2406 = vsel %vm2396, %v2351, %v2405
          %2407 = vst.msk [vmem:[#allocation6] sm:$0x3] %vm1231, %v2406
          %v2408 = vld [vmem:[#allocation7] sm:$0x3]
          %v2409 = vsel %vm2396, %v2363, %v2408
          %2410 = vst.msk [vmem:[#allocation7] sm:$0x3] %vm1231, %v2409
          %v2411 = vld [vmem:[#allocation8] sm:$0x3]
          %v2412 = vsel %vm2396, %v2375, %v2411
          %2413 = vst.msk [vmem:[#allocation8] sm:$0x3] %vm1231, %v2412
        $region124: #{tpu_custom_call.1} parent=67 // pred_fallthru
          _
        %p2414 = scmp.eq.s32.totalorder %s45, 3
        // Predicated region
        $region125: #{tpu_custom_call.1} parent=67 // pred_check
          %p2415 = pneg %p2414
        $region126: #{tpu_custom_call.1} parent=67 // pred_check_branch
          %2417 = sbr.rel (%p2415) target = $region128
        $region127: #{tpu_custom_call.1} parent=67 // pred_region
          %s2418 = sld [smem:[#allocation2 + $0x6]]
          %s2419 = smax.f32 %s2418, 1.0
          %s2420 = sld [smem:[#allocation2 + $0x7]]
          %s2421 = smax.f32 %s2420, 1.0
          %s2422 = sld [smem:[#allocation2 + $0x8]]
          %s2423 = smax.f32 %s2422, 1.0
          %s2424 = sld [smem:[#allocation2 + $0x1]]
          %v2425 = vld [vmem:[#allocation4] sm:$0x3]
          %v2426 = vsel %vm1231, %v2425, 0.0
          %2427 = vadd.xlane.f32.xlu0 %v2426
          %v2428 = vpop.xlane.xlu0 %2427
          %v2429 = vrot.slane %v2428, 4
          %v2430 = vadd.f32 %v2428, %v2429
          %v2431 = vrot.slane %v2430, 2
          %v2432 = vadd.f32 %v2430, %v2431
          %v2433 = vrot.slane %v2432, 1
          %v2434 = vadd.f32 %v2432, %v2433
          %s2435 = vtos %v2434
          %s2436 = ssub.f32 %s2424, %s2435
          %s2437 = sld [smem:[#allocation2 + $0x2]]
          %v2438 = vld [vmem:[#allocation5] sm:$0x3]
          %v2439 = vsel %vm1231, %v2438, 0.0
          %2440 = vadd.xlane.f32.xlu0 %v2439
          %v2441 = vpop.xlane.xlu0 %2440
          %v2442 = vrot.slane %v2441, 4
          %v2443 = vadd.f32 %v2441, %v2442
          %v2444 = vrot.slane %v2443, 2
          %v2445 = vadd.f32 %v2443, %v2444
          %v2446 = vrot.slane %v2445, 1
          %v2447 = vadd.f32 %v2445, %v2446
          %s2448 = vtos %v2447
          %s2449 = ssub.f32 %s2437, %s2448
          %s2450 = sld [smem:[#allocation2 + $0x3]]
          %v2451 = vld [vmem:[#allocation6] sm:$0x3]
          %v2452 = vsel %vm1231, %v2451, 0.0
          %2453 = vadd.xlane.f32.xlu0 %v2452
          %v2454 = vpop.xlane.xlu0 %2453
          %v2455 = vrot.slane %v2454, 4
          %v2456 = vadd.f32 %v2454, %v2455
          %v2457 = vrot.slane %v2456, 2
          %v2458 = vadd.f32 %v2456, %v2457
          %v2459 = vrot.slane %v2458, 1
          %v2460 = vadd.f32 %v2458, %v2459
          %s2461 = vtos %v2460
          %s2462 = ssub.f32 %s2450, %s2461
          %s2463 = sld [smem:[#allocation2 + $0x4]]
          %v2464 = vld [vmem:[#allocation7] sm:$0x3]
          %v2465 = vsel %vm1231, %v2464, 0.0
          %2466 = vadd.xlane.f32.xlu0 %v2465
          %v2467 = vpop.xlane.xlu0 %2466
          %v2468 = vrot.slane %v2467, 4
          %v2469 = vadd.f32 %v2467, %v2468
          %v2470 = vrot.slane %v2469, 2
          %v2471 = vadd.f32 %v2469, %v2470
          %v2472 = vrot.slane %v2471, 1
          %v2473 = vadd.f32 %v2471, %v2472
          %s2474 = vtos %v2473
          %s2475 = ssub.f32 %s2463, %s2474
          %s2476 = sld [smem:[#allocation2 + $0x5]]
          %v2477 = vld [vmem:[#allocation8] sm:$0x3]
          %v2478 = vsel %vm1231, %v2477, 0.0
          %2479 = vadd.xlane.f32.xlu0 %v2478
          %v2480 = vpop.xlane.xlu0 %2479
          %v2481 = vrot.slane %v2480, 4
          %v2482 = vadd.f32 %v2480, %v2481
          %v2483 = vrot.slane %v2482, 2
          %v2484 = vadd.f32 %v2482, %v2483
          %v2485 = vrot.slane %v2484, 1
          %v2486 = vadd.f32 %v2484, %v2485
          %s2487 = vtos %v2486
          %s2488 = ssub.f32 %s2476, %s2487
          %s2489 = sld [smem:[#allocation2]]
          %s2490 = sadd.f32 %s2436, %s2489
          %v2491 = vstv %s2419
          %v2492 = vrcp.pop %v2491
          %v2493 = vmul.f32 %v2491, %v2492
          %v2494 = vsub.f32 1.0, %v2493
          %v2495 = vmul.f32 %v2492, %v2494
          %v2496 = vadd.f32 %v2492, %v2495
          %vm2497 = vweird.f32 %v2491
          %vm2498 = vweird.f32 %v2492
          %vm2499 = vmor %vm2497, %vm2498
          %v2500 = vsel %vm2499, %v2492, %v2496
          %v2501 = vand.u32 2147483647, %v2491
          %vm2502 = vcmp.eq.f32.partialorder %v2501, 8.507059e+37
          %v2503 = vand.u32 %v2491, 2147483648
          %v2504 = vor.u32 1.1754944e-38, %v2503
          %v2505 = vsel %vm2502, %v2504, %v2500
          %s2506 = vtos %v2505
          %s2507 = smul.f32 %s2490, %s2506
          %s2508 = scalar_lea.smem [#allocation29], 0
          %2509 = sst [smem:[%s2508]] %s2507
          %v2510 = vstv %s2419
          %v2511 = vrcp.pop %v2510
          %v2512 = vmul.f32 %v2510, %v2511
          %v2513 = vsub.f32 1.0, %v2512
          %v2514 = vmul.f32 %v2511, %v2513
          %v2515 = vadd.f32 %v2511, %v2514
          %vm2516 = vweird.f32 %v2510
          %vm2517 = vweird.f32 %v2511
          %vm2518 = vmor %vm2516, %vm2517
          %v2519 = vsel %vm2518, %v2511, %v2515
          %v2520 = vand.u32 2147483647, %v2510
          %vm2521 = vcmp.eq.f32.partialorder %v2520, 8.507059e+37
          %v2522 = vand.u32 %v2510, 2147483648
          %v2523 = vor.u32 1.1754944e-38, %v2522
          %v2524 = vsel %vm2521, %v2523, %v2519
          %s2525 = vtos %v2524
          %s2526 = smul.f32 %s2449, %s2525
          %s2527 = scalar_lea.smem [#allocation29], 1
          %2528 = sst [smem:[%s2527]] %s2526
          %v2529 = vstv %s2421
          %v2530 = vrcp.pop %v2529
          %v2531 = vmul.f32 %v2529, %v2530
          %v2532 = vsub.f32 1.0, %v2531
          %v2533 = vmul.f32 %v2530, %v2532
          %v2534 = vadd.f32 %v2530, %v2533
          %vm2535 = vweird.f32 %v2529
          %vm2536 = vweird.f32 %v2530
          %vm2537 = vmor %vm2535, %vm2536
          %v2538 = vsel %vm2537, %v2530, %v2534
          %v2539 = vand.u32 2147483647, %v2529
          %vm2540 = vcmp.eq.f32.partialorder %v2539, 8.507059e+37
          %v2541 = vand.u32 %v2529, 2147483648
          %v2542 = vor.u32 1.1754944e-38, %v2541
          %v2543 = vsel %vm2540, %v2542, %v2538
          %s2544 = vtos %v2543
          %s2545 = smul.f32 %s2462, %s2544
          %s2546 = scalar_lea.smem [#allocation29], 2
          %2547 = sst [smem:[%s2546]] %s2545
          %v2548 = vstv %s2423
          %v2549 = vrcp.pop %v2548
          %v2550 = vmul.f32 %v2548, %v2549
          %v2551 = vsub.f32 1.0, %v2550
          %v2552 = vmul.f32 %v2549, %v2551
          %v2553 = vadd.f32 %v2549, %v2552
          %vm2554 = vweird.f32 %v2548
          %vm2555 = vweird.f32 %v2549
          %vm2556 = vmor %vm2554, %vm2555
          %v2557 = vsel %vm2556, %v2549, %v2553
          %v2558 = vand.u32 2147483647, %v2548
          %vm2559 = vcmp.eq.f32.partialorder %v2558, 8.507059e+37
          %v2560 = vand.u32 %v2548, 2147483648
          %v2561 = vor.u32 1.1754944e-38, %v2560
          %v2562 = vsel %vm2559, %v2561, %v2557
          %s2563 = vtos %v2562
          %s2564 = smul.f32 %s2475, %s2563
          %s2565 = scalar_lea.smem [#allocation29], 3
          %2566 = sst [smem:[%s2565]] %s2564
          %v2567 = vstv %s2419
          %v2568 = vrcp.pop %v2567
          %v2569 = vmul.f32 %v2567, %v2568
          %v2570 = vsub.f32 1.0, %v2569
          %v2571 = vmul.f32 %v2568, %v2570
          %v2572 = vadd.f32 %v2568, %v2571
          %vm2573 = vweird.f32 %v2567
          %vm2574 = vweird.f32 %v2568
          %vm2575 = vmor %vm2573, %vm2574
          %v2576 = vsel %vm2575, %v2568, %v2572
          %v2577 = vand.u32 2147483647, %v2567
          %vm2578 = vcmp.eq.f32.partialorder %v2577, 8.507059e+37
          %v2579 = vand.u32 %v2567, 2147483648
          %v2580 = vor.u32 1.1754944e-38, %v2579
          %v2581 = vsel %vm2578, %v2580, %v2576
          %s2582 = vtos %v2581
          %s2583 = smul.f32 %s2488, %s2582
          %s2584 = scalar_lea.smem [#allocation29], 4
          %2585 = sst [smem:[%s2584]] %s2583
          %s2586 = scalar_lea.smem [#allocation29], 5
          %2587 = sst [smem:[%s2586]] 0.0
          %s2588 = scalar_lea.smem [#allocation29], 6
          %2589 = sst [smem:[%s2588]] 0.0
          %s2590 = scalar_lea.smem [#allocation29], 7
          %2591 = sst [smem:[%s2590]] 0.0
        $region128: #{tpu_custom_call.1} parent=67 // pred_fallthru
          _
        // Predicated region
        $region129: #{tpu_custom_call.1} parent=67 // pred_check
          %p2592 = pneg %p370
        $region130: #{tpu_custom_call.1} parent=67 // pred_check_branch
          %2594 = sbr.rel (%p2592) target = $region132
        $region131: #{tpu_custom_call.1} parent=67 // pred_region
          %2596 = vsyncadd [#allocation11], 0
          %s2598 = sshll.u32 %s12, 4
          %s2599 = int_to_ptr.hbm [resolvable:$true] %s2598
          %2601 = dma.smem_to_hbm [#allocation29], 16, %s2599, [#allocation11]
        $region132: #{tpu_custom_call.1} parent=67 // pred_fallthru
          _
        // Predicated region
        $region133: #{tpu_custom_call.1} parent=67 // pred_check
          %p2602 = pneg %p370
        $region134: #{tpu_custom_call.1} parent=67 // pred_check_branch
          %2604 = sbr.rel (%p2602) target = $region136
        $region135: #{tpu_custom_call.1} parent=67 // pred_region
          %2606 = dma.done [#allocation11], 16
        $region136: #{tpu_custom_call.1} parent=67 // pred_fallthru
          _
        %2607 = sfence
      $region68: #{tpu_custom_call.1} parent=5 // pred_fallthru
        _
      %p2608 = scmp.le.s32.totalorder 2, %s40
      // Predicated region
      $region137: #{tpu_custom_call.1} parent=5 // pred_check
        %p2609 = pneg %p2608
      $region138: #{tpu_custom_call.1} parent=5 // pred_check_branch
        %2611 = sbr.rel (%p2609) target = $region140
      $region139: #{tpu_custom_call.1} parent=5 // pred_region
        %s2612 = ssub.s32 %s40, 2
      $region140: #{tpu_custom_call.1} parent=5 // pred_fallthru
        _
    $region6: #{tpu_custom_call.1} parent=1 // loop_footer
      %s44 = sadd.s32 1, %s40
    $region7: #{tpu_custom_call.1} parent=1 // loop_footer_branch
      %39 = sbr.rel target = $region3
    $region8: #{tpu_custom_call.1} parent=1 // loop_exit
      _
    %2613 = vsyncpa [#allocation10], 1
    %s2614 = scalar_lea.sflag [#allocation10], 1
    %2615 = vsyncpa %s2614, 1
    %2616 = vsyncpa [#allocation13], 1
    %s2617 = scalar_lea.sflag [#allocation13], 1
    %2618 = vsyncpa %s2617, 1
    %2619 = vsyncpa [#allocation16], 1
    %s2620 = scalar_lea.sflag [#allocation16], 1
    %2621 = vsyncpa %s2620, 1
    %2622 = vsyncpa [#allocation19], 1
    %s2623 = scalar_lea.sflag [#allocation19], 1
    %2624 = vsyncpa %s2623, 1
    %2625 = vsyncpa [#allocation22], 1
    %s2626 = scalar_lea.sflag [#allocation22], 1
    %2627 = vsyncpa %s2626, 1
    %2628 = vsyncpa [#allocation25], 1
    %s2629 = scalar_lea.sflag [#allocation25], 1
    %2630 = vsyncpa %s2629, 1
    %2631 = vsyncpa [#allocation28], 1
    %s2632 = scalar_lea.sflag [#allocation28], 1
    %2633 = vsyncpa %s2632, 1
    %2634 = vsyncpa [#allocation11], 1
    %s2635 = scalar_lea.sflag [#allocation11], 1
    %2636 = vsyncpa %s2635, 1

</llo_original>
